<compile_context>
chip_gen: v7x
topology: tpu7x:2x2x1
jax: 0.10.0
libtpu: 0.0.40
codegen_flags: <defaults>
</compile_context>

<pallas_src>
import functools
import math
from typing import NamedTuple

import jax
import jax.numpy as jnp
from jax.experimental import pallas as pl
from jax.experimental.pallas import tpu as pltpu


LANE = 128          # TPU lane width: pad GEMM N (out-channels) to this
BN_EPS = 1e-5       # torch.nn.BatchNorm2d default eps
LRELU_ALPHA = 0.2   # LeakyReLU slope used by ConvBlockEnc


def _round_up(x, m):
    return (x + m - 1) // m * m


class EncoderCfg(NamedTuple):
    input_nc: int
    ngf: int
    nz_enc: int
    img_sz: int

    @property
    def n_layers(self):
        return int(math.log2(self.img_sz))        # builder.get_num_layers

    @property
    def n_pyr(self):
        return self.n_layers - 3

    @property
    def cin_pad(self):
        # pad input channels so the layer-0 GEMM K = 16*cin_pad is lane dense
        return _round_up(self.input_nc, 8)


# ---------------------------------------------------------------------------
# Fused encoder kernel: layer-0 GEMM + pyramid conv/BN/LeakyReLU + head, VMEM
# ---------------------------------------------------------------------------
def _make_fused_kernel(cfg: EncoderCfg, B: int, chans):
    n_pyr = cfg.n_pyr

    def kernel(*refs):
        o_ref = refs[-1]
        p0 = refs[0][...]                 # (B*Ho*Ho, 16*cin_pad) bf16 patches
        w0 = refs[1][...]                 # (16*cin_pad, 128) bf16
        b0 = refs[2][...]                 # (1, 128) f32

        # ---- layer 0: input conv (k=4,s=2,p=1) + LeakyReLU -----------------
        # im2col patch matrix was prebuilt (bf16, tile-aligned) in the wrapper,
        # so layer 0 is a single MXU push + f32 epilogue.
        y = jnp.dot(p0, w0, preferred_element_type=jnp.float32) + b0
        y = jnp.maximum(y, LRELU_ALPHA * y)            # LeakyReLU(0.2), f32
        c = chans[0]
        # early bf16: all subsequent relayout (pad / s2d / concat) is half-width
        flat = y[:, :c].astype(jnp.bfloat16)           # drop padded out-chans
        S = cfg.img_sz // 2
        idx = 3

        # ---- pyramid blocks: conv(k=4,s=2,p=1) + BatchNorm + LeakyReLU -----
        for li in range(n_pyr):
            w = refs[idx][...]            # (16*c, 128) bf16
            bi = refs[idx + 1][...]       # (1, 128) f32
            gi = refs[idx + 2][...]
            bti = refs[idx + 3][...]
            idx += 4

            act = flat.reshape(B, S, S, c)             # bf16
            # zero-pad spatially (p=1) via bf16 concat -- stays in vregs/VMEM
            zc = jnp.zeros((B, S, 1, c), jnp.bfloat16)
            zr = jnp.zeros((B, 1, S + 2, c), jnp.bfloat16)
            ap = jnp.concatenate([zc, act, zc], axis=2)
            ap = jnp.concatenate([zr, ap, zr], axis=1)        # (B, S+2, S+2, c)
            Hp2 = S + 2

            # in-kernel space-to-depth via leading/sublane splits + indexing,
            # now on bf16 (half the XLU/vreg traffic of the f32 version)
            blocks = {}
            for r in range(2):
                xr = ap.reshape(B, Hp2 // 2, 2, Hp2, c)[:, :, r, :, :]
                for s in range(2):
                    blocks[(r, s)] = xr.reshape(
                        B, Hp2 // 2, Hp2 // 2, 2, c)[:, :, :, s, :]

            So = S // 2
            pieces = [blocks[(r, s)][:, oa:oa + So, ob:ob + So, :]
                      for oa in range(2) for ob in range(2)
                      for r in range(2) for s in range(2)]
            p = jnp.concatenate(pieces, axis=-1).reshape(B * So * So, 16 * c)

            y = jnp.dot(p, w, preferred_element_type=jnp.float32) + bi
            # training-mode BatchNorm2d: stats over the full (B, Ho, Wo) row
            # axis -- exact because the whole layer is resident (un-tiled).
            # Padded lanes stay exactly 0 (zero weight/bias/gamma/beta pads).
            mean = jnp.mean(y, axis=0, keepdims=True)
            var = jnp.mean(jnp.square(y - mean), axis=0, keepdims=True)
            y = (y - mean) * jax.lax.rsqrt(var + BN_EPS) * gi + bti
            y = jnp.maximum(y, LRELU_ALPHA * y)

            c = chans[li + 1]
            flat = y[:, :c].astype(jnp.bfloat16)
            S = So

        # ---- head: conv(k=4, s=1, p=0) over the final 4x4 map --------------
        wh = refs[idx][...]               # (16*c, 128) bf16
        bh = refs[idx + 1][...]           # (1, 128) f32
        flat3 = flat.reshape(B, S * S, c)
        p = jnp.concatenate([flat3[:, i, :] for i in range(S * S)], axis=-1)
        y = jnp.dot(p, wh, preferred_element_type=jnp.float32) + bh
        o_ref[...] = y                                   # (B, 128) lane-dense

    return kernel


# ---------------------------------------------------------------------------
# Parameters (PyTorch layout) + one-time packing into kernel layout
# ---------------------------------------------------------------------------
def _xavier_uniform(key, shape):
    fan_in = shape[1] * shape[2] * shape[3]
    fan_out = shape[0] * shape[2] * shape[3]
    limit = math.sqrt(6.0 / (fan_in + fan_out))
    return jax.random.uniform(key, shape, jnp.float32, -limit, limit)


def init_encoder_params(key, cfg: EncoderCfg):
    """PyTorch-layout parameters: Conv2d weight (C_out, C_in, 4, 4)."""
    keys = jax.random.split(key, cfg.n_layers)
    layers = [dict(w=_xavier_uniform(keys[0], (cfg.ngf, cfg.input_nc, 4, 4)),
                   b=jnp.zeros((cfg.ngf,), jnp.float32))]
    for i in range(cfg.n_pyr):
        cin = cfg.ngf * 2 ** i
        layers.append(dict(w=_xavier_uniform(keys[1 + i], (2 * cin, cin, 4, 4)),
                           b=jnp.zeros((2 * cin,), jnp.float32),
                           gamma=jnp.ones((2 * cin,), jnp.float32),
                           beta=jnp.zeros((2 * cin,), jnp.float32)))
    cin = cfg.ngf * 2 ** (cfg.n_layers - 3)
    layers.append(dict(w=_xavier_uniform(keys[-1], (cfg.nz_enc, cin, 4, 4)),
                       b=jnp.zeros((cfg.nz_enc,), jnp.float32)))
    return layers


def _pad_lanes(x, npad):
    return jnp.pad(x, [(0, 0)] * (x.ndim - 1) + [(0, npad - x.shape[-1])])


def _assert_lane_pad_zero(x, real_n):
    """'pads are zero' invariant (review): padded out-channel lanes must be
    exactly zero so BN/LeakyReLU keep them at 0 and they never leak into the
    sliced activations."""
    if x.shape[-1] > real_n:
        assert bool(jnp.all(x[..., real_n:] == 0)), "nonzero lane padding"


def _pack_conv_weight(w, cin_pad):
    """(C_out,C_in,4,4) -> (16*cin_pad, C_out), K ordered (kh, kw, ci).
    Matches the wrapper-built layer-0 patch matrix and the head patch order."""
    cin = w.shape[1]
    w = jnp.pad(w, ((0, 0), (0, cin_pad - cin), (0, 0), (0, 0)))
    return jnp.transpose(w, (2, 3, 1, 0)).reshape(16 * cin_pad, w.shape[0])


def _pack_s2d_weight(w, cin_pad):
    """(C_out,C_in,4,4) -> (16*cin_pad, C_out) with K ordered (a,b,r,s,ci),
    kh = 2a + r, kw = 2b + s, matching the in-kernel space-to-depth patches."""
    cout, cin = w.shape[0], w.shape[1]
    w = jnp.pad(w, ((0, 0), (0, cin_pad - cin), (0, 0), (0, 0)))
    w = jnp.transpose(w, (2, 3, 1, 0))                # (kh, kw, ci, co)
    w = w.reshape(2, 2, 2, 2, cin_pad, cout)          # (a, r, b, s, ci, co)
    w = jnp.transpose(w, (0, 2, 1, 3, 4, 5))          # (a, b, r, s, ci, co)
    return w.reshape(16 * cin_pad, cout)


def pack_encoder_params(layers, cfg: EncoderCfg):
    """One-time repack: transposes/permutes/pads/bf16-casts hoisted off the
    forward hot path.  Lane padding is asserted to be zero (BN correctness)."""
    n0 = _round_up(cfg.ngf, LANE)
    w0 = _pad_lanes(_pack_conv_weight(layers[0]["w"], cfg.cin_pad), n0)
    b0 = _pad_lanes(layers[0]["b"], n0).reshape(1, n0)
    _assert_lane_pad_zero(w0, cfg.ngf)
    _assert_lane_pad_zero(b0, cfg.ngf)
    packed = {"w0": w0.astype(jnp.bfloat16), "b0": b0}

    pyr = []
    for i in range(cfg.n_pyr):
        lay = layers[1 + i]
        cout, cin = lay["w"].shape[0], lay["w"].shape[1]
        npad = _round_up(cout, LANE)
        lw = _pad_lanes(_pack_s2d_weight(lay["w"], cin), npad)
        lb = _pad_lanes(lay["b"], npad).reshape(1, npad)
        lg = _pad_lanes(lay["gamma"], npad).reshape(1, npad)
        lbt = _pad_lanes(lay["beta"], npad).reshape(1, npad)
        for arr in (lw, lb, lg, lbt):
            _assert_lane_pad_zero(arr, cout)
        pyr.append((lw.astype(jnp.bfloat16), lb, lg, lbt))
    packed["pyr"] = tuple(pyr)

    nh = _round_up(cfg.nz_enc, LANE)
    cin = layers[-1]["w"].shape[1]
    wh = _pad_lanes(_pack_conv_weight(layers[-1]["w"], cin), nh)
    bh = _pad_lanes(layers[-1]["b"], nh).reshape(1, nh)
    _assert_lane_pad_zero(wh, cfg.nz_enc)
    _assert_lane_pad_zero(bh, cfg.nz_enc)
    packed["wh"] = wh.astype(jnp.bfloat16)
    packed["bh"] = bh
    return packed


# ---------------------------------------------------------------------------
# Forward: one jit'ed wrapper around one fused pallas_call
# ---------------------------------------------------------------------------
@functools.partial(jax.jit, static_argnums=2)
def encoder_forward(packed, x_nchw, cfg: EncoderCfg):
    B = x_nchw.shape[0]
    cp = cfg.cin_pad
    Ho = cfg.img_sz // 2

    # Layer-0 im2col in XLA (toy sizes only, per review): NCHW -> NHWC, bf16,
    # spatial pad=1, channel pad, 16 strided (kh,kw) windows lane-concatenated
    # into one tile-aligned (B*Ho*Ho, 16*cin_pad) bf16 patch matrix.
    x = jnp.transpose(x_nchw, (0, 2, 3, 1)).astype(jnp.bfloat16)
    x = jnp.pad(x, ((0, 0), (1, 1), (1, 1), (0, cp - cfg.input_nc)))
    cols = [x[:, kh:kh + 2 * Ho:2, kw:kw + 2 * Ho:2, :]
            for kh in range(4) for kw in range(4)]
    p0 = jnp.concatenate(cols, axis=-1).reshape(B * Ho * Ho, 16 * cp)

    chans = [cfg.ngf * 2 ** i for i in range(cfg.n_pyr + 1)]
    nh = _round_up(cfg.nz_enc, LANE)

    args = [p0, packed["w0"], packed["b0"]]
    for lw, lb, lg, lbt in packed["pyr"]:
        args += [lw, lb, lg, lbt]
    args += [packed["wh"], packed["bh"]]

    # honest (un-padded) cost hint for the XLA scheduler
    flops = 2 * (B * Ho * Ho) * (16 * cfg.input_nc) * cfg.ngf
    trans = 0
    s = Ho
    for i in range(cfg.n_pyr):
        cin = cfg.ngf * 2 ** i
        s //= 2
        flops += 2 * (B * s * s) * (16 * cin) * (2 * cin)
        trans += 2 * cin                       # one rsqrt per real BN channel
    flops += 2 * B * (16 * chans[-1]) * cfg.nz_enc
    bytes_acc = sum(int(a.size) * a.dtype.itemsize for a in args) + B * nh * 4

    vmem = pl.BlockSpec(memory_space=pltpu.MemorySpace.VMEM)
    out = pl.pallas_call(
        _make_fused_kernel(cfg, B, chans),
        out_shape=jax.ShapeDtypeStruct((B, nh), jnp.float32),
        in_specs=[vmem] * len(args),
        out_specs=vmem,
        cost_estimate=pl.CostEstimate(flops=flops,
                                      transcendentals=trans,
                                      bytes_accessed=bytes_acc),
    )(*args)

    out = out[:, :cfg.nz_enc].reshape(B, cfg.nz_enc, 1, 1)   # NCHW, 1x1 spatial
    # use_skips=False -> Encoder.forward returns (net(input), None)
    return out, None


# ---------------------------------------------------------------------------
# Pure-JAX reference (f32) for a correctness check
# ---------------------------------------------------------------------------
def _reference_forward(layers, x_nchw, cfg: EncoderCfg):
    dn = ("NCHW", "OIHW", "NCHW")
    hi = jax.lax.Precision.HIGHEST
    h = jax.lax.conv_general_dilated(x_nchw, layers[0]["w"], (2, 2),
                                     ((1, 1), (1, 1)), dimension_numbers=dn,
                                     precision=hi)
    h = h + layers[0]["b"].reshape(1, -1, 1, 1)
    h = jnp.maximum(h, LRELU_ALPHA * h)
    for i in range(cfg.n_pyr):
        lay = layers[1 + i]
        h = jax.lax.conv_general_dilated(h, lay["w"], (2, 2), ((1, 1), (1, 1)),
                                         dimension_numbers=dn, precision=hi)
        h = h + lay["b"].reshape(1, -1, 1, 1)
        mean = jnp.mean(h, axis=(0, 2, 3), keepdims=True)
        var = jnp.mean(jnp.square(h - mean), axis=(0, 2, 3), keepdims=True)
        h = (h - mean) * jax.lax.rsqrt(var + BN_EPS)
        h = h * lay["gamma"].reshape(1, -1, 1, 1) + lay["beta"].reshape(1, -1, 1, 1)
        h = jnp.maximum(h, LRELU_ALPHA * h)
    lay = layers[-1]
    h = jax.lax.conv_general_dilated(h, lay["w"], (1, 1), ((0, 0), (0, 0)),
                                     dimension_numbers=dn, precision=hi)
    return h + lay["b"].reshape(1, -1, 1, 1)


if __name__ == "__main__":
    cfg = EncoderCfg(input_nc=4, ngf=8, nz_enc=32, img_sz=16)
    B = 2

    key = jax.random.PRNGKey(0)
    k_params, k_x = jax.random.split(key)
    layers = init_encoder_params(k_params, cfg)
    packed = pack_encoder_params(layers, cfg)
    x = jax.random.normal(k_x, (B, cfg.input_nc, cfg.img_sz, cfg.img_sz),
                          jnp.float32)

    out, skips = encoder_forward(packed, x, cfg)
    out = jax.block_until_ready(out)

    assert out.shape == (B, cfg.nz_enc, 1, 1), out.shape
    assert skips is None
    assert bool(jnp.all(jnp.isfinite(out)))

    # correctness vs. pure-JAX f32 reference (kernel uses bf16 MXU operands;
    # the relayout-in-bf16 change is value-preserving, so the tolerance is the
    # same bf16-operand tolerance as before)
    ref = _reference_forward(layers, x, cfg)
    max_err = float(jnp.max(jnp.abs(out - ref)))
    assert max_err < 0.15, f"max abs error vs reference: {max_err}"

    print("KERNEL_OK")
</pallas_src>

<mosaic_0001>
module attributes {stable_mosaic.version = 11 : i64} {
  func.func @kernel(%arg0: memref<128x128xbf16, #tpu.memory_space<vmem>>, %arg1: memref<128x128xbf16, #tpu.memory_space<vmem>>, %arg2: memref<1x128xf32, #tpu.memory_space<vmem>>, %arg3: memref<128x128xbf16, #tpu.memory_space<vmem>>, %arg4: memref<1x128xf32, #tpu.memory_space<vmem>>, %arg5: memref<1x128xf32, #tpu.memory_space<vmem>>, %arg6: memref<1x128xf32, #tpu.memory_space<vmem>>, %arg7: memref<256x128xbf16, #tpu.memory_space<vmem>>, %arg8: memref<1x128xf32, #tpu.memory_space<vmem>>, %arg9: memref<2x128xf32, #tpu.memory_space<vmem>>) attributes {dimension_semantics = [], scalar_prefetch = 0 : i64, scratch_operands = 0 : i64, tpu.core_type = #tpu.core_type<tc>} {
    %c0 = arith.constant 0 : index
    %c0_0 = arith.constant 0 : index
    %0 = vector.load %arg0[%c0, %c0_0] : memref<128x128xbf16, #tpu.memory_space<vmem>>, vector<128x128xbf16>
    %c0_1 = arith.constant 0 : index
    %c0_2 = arith.constant 0 : index
    %1 = vector.load %arg1[%c0_1, %c0_2] : memref<128x128xbf16, #tpu.memory_space<vmem>>, vector<128x128xbf16>
    %c0_3 = arith.constant 0 : index
    %c0_4 = arith.constant 0 : index
    %2 = vector.load %arg2[%c0_3, %c0_4] : memref<1x128xf32, #tpu.memory_space<vmem>>, vector<1x128xf32>
    %cst = arith.constant dense<0.000000e+00> : vector<128x128xf32>
    %3 = tpu.matmul %0, %1, %cst {dimension_numbers = #tpu.dot_dimension_numbers<[1], [0], [0], [1], [0, 0, 1, 1], [], []>} : vector<128x128xbf16>, vector<128x128xbf16>, vector<128x128xf32> -> vector<128x128xf32>
    %4 = vector.broadcast %2 : vector<1x128xf32> to vector<128x128xf32>
    %5 = arith.addf %3, %4 : vector<128x128xf32>
    %cst_5 = arith.constant 2.000000e-01 : f32
    %6 = vector.broadcast %cst_5 : f32 to vector<128x128xf32>
    %7 = arith.mulf %6, %5 : vector<128x128xf32>
    %8 = arith.maximumf %5, %7 : vector<128x128xf32>
    %9 = vector.extract_strided_slice %8 {offsets = [0, 0], sizes = [128, 8], strides = [1, 1]} : vector<128x128xf32> to vector<128x8xf32>
    %10 = arith.truncf %9 : vector<128x8xf32> to vector<128x8xbf16>
    %c0_6 = arith.constant 0 : index
    %c0_7 = arith.constant 0 : index
    %11 = vector.load %arg3[%c0_6, %c0_7] : memref<128x128xbf16, #tpu.memory_space<vmem>>, vector<128x128xbf16>
    %c0_8 = arith.constant 0 : index
    %c0_9 = arith.constant 0 : index
    %12 = vector.load %arg4[%c0_8, %c0_9] : memref<1x128xf32, #tpu.memory_space<vmem>>, vector<1x128xf32>
    %c0_10 = arith.constant 0 : index
    %c0_11 = arith.constant 0 : index
    %13 = vector.load %arg5[%c0_10, %c0_11] : memref<1x128xf32, #tpu.memory_space<vmem>>, vector<1x128xf32>
    %c0_12 = arith.constant 0 : index
    %c0_13 = arith.constant 0 : index
    %14 = vector.load %arg6[%c0_12, %c0_13] : memref<1x128xf32, #tpu.memory_space<vmem>>, vector<1x128xf32>
    %15 = vector.shape_cast %10 : vector<128x8xbf16> to vector<2x8x8x8xbf16>
    %cst_14 = arith.constant 0.000000e+00 : bf16
    %16 = vector.broadcast %cst_14 : bf16 to vector<2x8x1x8xbf16>
    %cst_15 = arith.constant 0.000000e+00 : bf16
    %17 = vector.broadcast %cst_15 : bf16 to vector<2x1x10x8xbf16>
    %18 = tpu.concatenate %16, %15, %16 in 2 : vector<2x8x1x8xbf16>, vector<2x8x8x8xbf16>, vector<2x8x1x8xbf16> -> vector<2x8x10x8xbf16>
    %19 = tpu.concatenate %17, %18, %17 in 1 : vector<2x1x10x8xbf16>, vector<2x8x10x8xbf16>, vector<2x1x10x8xbf16> -> vector<2x10x10x8xbf16>
    %20 = vector.shape_cast %19 : vector<2x10x10x8xbf16> to vector<2x5x2x10x8xbf16>
    %21 = vector.extract_strided_slice %20 {offsets = [0, 0, 0, 0, 0], sizes = [2, 5, 1, 10, 8], strides = [1, 1, 1, 1, 1]} : vector<2x5x2x10x8xbf16> to vector<2x5x1x10x8xbf16>
    %22 = vector.shape_cast %21 : vector<2x5x1x10x8xbf16> to vector<2x5x10x8xbf16>
    %23 = vector.shape_cast %22 : vector<2x5x10x8xbf16> to vector<2x5x5x2x8xbf16>
    %24 = vector.extract_strided_slice %23 {offsets = [0, 0, 0, 0, 0], sizes = [2, 5, 5, 1, 8], strides = [1, 1, 1, 1, 1]} : vector<2x5x5x2x8xbf16> to vector<2x5x5x1x8xbf16>
    %25 = vector.shape_cast %24 : vector<2x5x5x1x8xbf16> to vector<2x5x5x8xbf16>
    %26 = vector.shape_cast %22 : vector<2x5x10x8xbf16> to vector<2x5x5x2x8xbf16>
    %27 = vector.extract_strided_slice %26 {offsets = [0, 0, 0, 1, 0], sizes = [2, 5, 5, 1, 8], strides = [1, 1, 1, 1, 1]} : vector<2x5x5x2x8xbf16> to vector<2x5x5x1x8xbf16>
    %28 = vector.shape_cast %27 : vector<2x5x5x1x8xbf16> to vector<2x5x5x8xbf16>
    %29 = vector.shape_cast %19 : vector<2x10x10x8xbf16> to vector<2x5x2x10x8xbf16>
    %30 = vector.extract_strided_slice %29 {offsets = [0, 0, 1, 0, 0], sizes = [2, 5, 1, 10, 8], strides = [1, 1, 1, 1, 1]} : vector<2x5x2x10x8xbf16> to vector<2x5x1x10x8xbf16>
    %31 = vector.shape_cast %30 : vector<2x5x1x10x8xbf16> to vector<2x5x10x8xbf16>
    %32 = vector.shape_cast %31 : vector<2x5x10x8xbf16> to vector<2x5x5x2x8xbf16>
    %33 = vector.extract_strided_slice %32 {offsets = [0, 0, 0, 0, 0], sizes = [2, 5, 5, 1, 8], strides = [1, 1, 1, 1, 1]} : vector<2x5x5x2x8xbf16> to vector<2x5x5x1x8xbf16>
    %34 = vector.shape_cast %33 : vector<2x5x5x1x8xbf16> to vector<2x5x5x8xbf16>
    %35 = vector.shape_cast %31 : vector<2x5x10x8xbf16> to vector<2x5x5x2x8xbf16>
    %36 = vector.extract_strided_slice %35 {offsets = [0, 0, 0, 1, 0], sizes = [2, 5, 5, 1, 8], strides = [1, 1, 1, 1, 1]} : vector<2x5x5x2x8xbf16> to vector<2x5x5x1x8xbf16>
    %37 = vector.shape_cast %36 : vector<2x5x5x1x8xbf16> to vector<2x5x5x8xbf16>
    %38 = vector.extract_strided_slice %25 {offsets = [0, 0, 0, 0], sizes = [2, 4, 4, 8], strides = [1, 1, 1, 1]} : vector<2x5x5x8xbf16> to vector<2x4x4x8xbf16>
    %39 = vector.extract_strided_slice %28 {offsets = [0, 0, 0, 0], sizes = [2, 4, 4, 8], strides = [1, 1, 1, 1]} : vector<2x5x5x8xbf16> to vector<2x4x4x8xbf16>
    %40 = vector.extract_strided_slice %34 {offsets = [0, 0, 0, 0], sizes = [2, 4, 4, 8], strides = [1, 1, 1, 1]} : vector<2x5x5x8xbf16> to vector<2x4x4x8xbf16>
    %41 = vector.extract_strided_slice %37 {offsets = [0, 0, 0, 0], sizes = [2, 4, 4, 8], strides = [1, 1, 1, 1]} : vector<2x5x5x8xbf16> to vector<2x4x4x8xbf16>
    %42 = vector.extract_strided_slice %25 {offsets = [0, 0, 1, 0], sizes = [2, 4, 4, 8], strides = [1, 1, 1, 1]} : vector<2x5x5x8xbf16> to vector<2x4x4x8xbf16>
    %43 = vector.extract_strided_slice %28 {offsets = [0, 0, 1, 0], sizes = [2, 4, 4, 8], strides = [1, 1, 1, 1]} : vector<2x5x5x8xbf16> to vector<2x4x4x8xbf16>
    %44 = vector.extract_strided_slice %34 {offsets = [0, 0, 1, 0], sizes = [2, 4, 4, 8], strides = [1, 1, 1, 1]} : vector<2x5x5x8xbf16> to vector<2x4x4x8xbf16>
    %45 = vector.extract_strided_slice %37 {offsets = [0, 0, 1, 0], sizes = [2, 4, 4, 8], strides = [1, 1, 1, 1]} : vector<2x5x5x8xbf16> to vector<2x4x4x8xbf16>
    %46 = vector.extract_strided_slice %25 {offsets = [0, 1, 0, 0], sizes = [2, 4, 4, 8], strides = [1, 1, 1, 1]} : vector<2x5x5x8xbf16> to vector<2x4x4x8xbf16>
    %47 = vector.extract_strided_slice %28 {offsets = [0, 1, 0, 0], sizes = [2, 4, 4, 8], strides = [1, 1, 1, 1]} : vector<2x5x5x8xbf16> to vector<2x4x4x8xbf16>
    %48 = vector.extract_strided_slice %34 {offsets = [0, 1, 0, 0], sizes = [2, 4, 4, 8], strides = [1, 1, 1, 1]} : vector<2x5x5x8xbf16> to vector<2x4x4x8xbf16>
    %49 = vector.extract_strided_slice %37 {offsets = [0, 1, 0, 0], sizes = [2, 4, 4, 8], strides = [1, 1, 1, 1]} : vector<2x5x5x8xbf16> to vector<2x4x4x8xbf16>
    %50 = vector.extract_strided_slice %25 {offsets = [0, 1, 1, 0], sizes = [2, 4, 4, 8], strides = [1, 1, 1, 1]} : vector<2x5x5x8xbf16> to vector<2x4x4x8xbf16>
    %51 = vector.extract_strided_slice %28 {offsets = [0, 1, 1, 0], sizes = [2, 4, 4, 8], strides = [1, 1, 1, 1]} : vector<2x5x5x8xbf16> to vector<2x4x4x8xbf16>
    %52 = vector.extract_strided_slice %34 {offsets = [0, 1, 1, 0], sizes = [2, 4, 4, 8], strides = [1, 1, 1, 1]} : vector<2x5x5x8xbf16> to vector<2x4x4x8xbf16>
    %53 = vector.extract_strided_slice %37 {offsets = [0, 1, 1, 0], sizes = [2, 4, 4, 8], strides = [1, 1, 1, 1]} : vector<2x5x5x8xbf16> to vector<2x4x4x8xbf16>
    %54 = tpu.concatenate %38, %39, %40, %41, %42, %43, %44, %45, %46, %47, %48, %49, %50, %51, %52, %53 in 3 : vector<2x4x4x8xbf16>, vector<2x4x4x8xbf16>, vector<2x4x4x8xbf16>, vector<2x4x4x8xbf16>, vector<2x4x4x8xbf16>, vector<2x4x4x8xbf16>, vector<2x4x4x8xbf16>, vector<2x4x4x8xbf16>, vector<2x4x4x8xbf16>, vector<2x4x4x8xbf16>, vector<2x4x4x8xbf16>, vector<2x4x4x8xbf16>, vector<2x4x4x8xbf16>, vector<2x4x4x8xbf16>, vector<2x4x4x8xbf16>, vector<2x4x4x8xbf16> -> vector<2x4x4x128xbf16>
    %55 = vector.shape_cast %54 : vector<2x4x4x128xbf16> to vector<32x128xbf16>
    %cst_16 = arith.constant dense<0.000000e+00> : vector<32x128xf32>
    %56 = tpu.matmul %55, %11, %cst_16 {dimension_numbers = #tpu.dot_dimension_numbers<[1], [0], [0], [1], [0, 0, 1, 1], [], []>} : vector<32x128xbf16>, vector<128x128xbf16>, vector<32x128xf32> -> vector<32x128xf32>
    %57 = vector.broadcast %12 : vector<1x128xf32> to vector<32x128xf32>
    %58 = arith.addf %56, %57 : vector<32x128xf32>
    %cst_17 = arith.constant dense<0.000000e+00> : vector<128xf32>
    %59 = vector.multi_reduction <add>, %58, %cst_17 [0] : vector<32x128xf32> to vector<128xf32>
    %60 = vector.shape_cast %59 : vector<128xf32> to vector<1x128xf32>
    %cst_18 = arith.constant 3.200000e+01 : f32
    %61 = vector.broadcast %cst_18 : f32 to vector<1x128xf32>
    %62 = arith.divf %60, %61 : vector<1x128xf32>
    %63 = vector.broadcast %62 : vector<1x128xf32> to vector<32x128xf32>
    %64 = arith.subf %58, %63 : vector<32x128xf32>
    %65 = arith.mulf %64, %64 : vector<32x128xf32>
    %cst_19 = arith.constant dense<0.000000e+00> : vector<128xf32>
    %66 = vector.multi_reduction <add>, %65, %cst_19 [0] : vector<32x128xf32> to vector<128xf32>
    %67 = vector.shape_cast %66 : vector<128xf32> to vector<1x128xf32>
    %cst_20 = arith.constant 3.200000e+01 : f32
    %68 = vector.broadcast %cst_20 : f32 to vector<1x128xf32>
    %69 = arith.divf %67, %68 : vector<1x128xf32>
    %70 = vector.broadcast %62 : vector<1x128xf32> to vector<32x128xf32>
    %71 = arith.subf %58, %70 : vector<32x128xf32>
    %cst_21 = arith.constant 9.99999974E-6 : f32
    %72 = vector.broadcast %cst_21 : f32 to vector<1x128xf32>
    %73 = arith.addf %69, %72 : vector<1x128xf32>
    %74 = math.rsqrt %73 : vector<1x128xf32>
    %75 = vector.broadcast %74 : vector<1x128xf32> to vector<32x128xf32>
    %76 = arith.mulf %71, %75 : vector<32x128xf32>
    %77 = vector.broadcast %13 : vector<1x128xf32> to vector<32x128xf32>
    %78 = arith.mulf %76, %77 : vector<32x128xf32>
    %79 = vector.broadcast %14 : vector<1x128xf32> to vector<32x128xf32>
    %80 = arith.addf %78, %79 : vector<32x128xf32>
    %cst_22 = arith.constant 2.000000e-01 : f32
    %81 = vector.broadcast %cst_22 : f32 to vector<32x128xf32>
    %82 = arith.mulf %81, %80 : vector<32x128xf32>
    %83 = arith.maximumf %80, %82 : vector<32x128xf32>
    %84 = vector.extract_strided_slice %83 {offsets = [0, 0], sizes = [32, 16], strides = [1, 1]} : vector<32x128xf32> to vector<32x16xf32>
    %85 = arith.truncf %84 : vector<32x16xf32> to vector<32x16xbf16>
    %c0_23 = arith.constant 0 : index
    %c0_24 = arith.constant 0 : index
    %86 = vector.load %arg7[%c0_23, %c0_24] : memref<256x128xbf16, #tpu.memory_space<vmem>>, vector<256x128xbf16>
    %c0_25 = arith.constant 0 : index
    %c0_26 = arith.constant 0 : index
    %87 = vector.load %arg8[%c0_25, %c0_26] : memref<1x128xf32, #tpu.memory_space<vmem>>, vector<1x128xf32>
    %88 = vector.shape_cast %85 : vector<32x16xbf16> to vector<2x16x16xbf16>
    %89 = vector.extract_strided_slice %88 {offsets = [0, 0, 0], sizes = [2, 1, 16], strides = [1, 1, 1]} : vector<2x16x16xbf16> to vector<2x1x16xbf16>
    %90 = vector.shape_cast %89 : vector<2x1x16xbf16> to vector<2x16xbf16>
    %91 = vector.extract_strided_slice %88 {offsets = [0, 1, 0], sizes = [2, 1, 16], strides = [1, 1, 1]} : vector<2x16x16xbf16> to vector<2x1x16xbf16>
    %92 = vector.shape_cast %91 : vector<2x1x16xbf16> to vector<2x16xbf16>
    %93 = vector.extract_strided_slice %88 {offsets = [0, 2, 0], sizes = [2, 1, 16], strides = [1, 1, 1]} : vector<2x16x16xbf16> to vector<2x1x16xbf16>
    %94 = vector.shape_cast %93 : vector<2x1x16xbf16> to vector<2x16xbf16>
    %95 = vector.extract_strided_slice %88 {offsets = [0, 3, 0], sizes = [2, 1, 16], strides = [1, 1, 1]} : vector<2x16x16xbf16> to vector<2x1x16xbf16>
    %96 = vector.shape_cast %95 : vector<2x1x16xbf16> to vector<2x16xbf16>
    %97 = vector.extract_strided_slice %88 {offsets = [0, 4, 0], sizes = [2, 1, 16], strides = [1, 1, 1]} : vector<2x16x16xbf16> to vector<2x1x16xbf16>
    %98 = vector.shape_cast %97 : vector<2x1x16xbf16> to vector<2x16xbf16>
    %99 = vector.extract_strided_slice %88 {offsets = [0, 5, 0], sizes = [2, 1, 16], strides = [1, 1, 1]} : vector<2x16x16xbf16> to vector<2x1x16xbf16>
    %100 = vector.shape_cast %99 : vector<2x1x16xbf16> to vector<2x16xbf16>
    %101 = vector.extract_strided_slice %88 {offsets = [0, 6, 0], sizes = [2, 1, 16], strides = [1, 1, 1]} : vector<2x16x16xbf16> to vector<2x1x16xbf16>
    %102 = vector.shape_cast %101 : vector<2x1x16xbf16> to vector<2x16xbf16>
    %103 = vector.extract_strided_slice %88 {offsets = [0, 7, 0], sizes = [2, 1, 16], strides = [1, 1, 1]} : vector<2x16x16xbf16> to vector<2x1x16xbf16>
    %104 = vector.shape_cast %103 : vector<2x1x16xbf16> to vector<2x16xbf16>
    %105 = vector.extract_strided_slice %88 {offsets = [0, 8, 0], sizes = [2, 1, 16], strides = [1, 1, 1]} : vector<2x16x16xbf16> to vector<2x1x16xbf16>
    %106 = vector.shape_cast %105 : vector<2x1x16xbf16> to vector<2x16xbf16>
    %107 = vector.extract_strided_slice %88 {offsets = [0, 9, 0], sizes = [2, 1, 16], strides = [1, 1, 1]} : vector<2x16x16xbf16> to vector<2x1x16xbf16>
    %108 = vector.shape_cast %107 : vector<2x1x16xbf16> to vector<2x16xbf16>
    %109 = vector.extract_strided_slice %88 {offsets = [0, 10, 0], sizes = [2, 1, 16], strides = [1, 1, 1]} : vector<2x16x16xbf16> to vector<2x1x16xbf16>
    %110 = vector.shape_cast %109 : vector<2x1x16xbf16> to vector<2x16xbf16>
    %111 = vector.extract_strided_slice %88 {offsets = [0, 11, 0], sizes = [2, 1, 16], strides = [1, 1, 1]} : vector<2x16x16xbf16> to vector<2x1x16xbf16>
    %112 = vector.shape_cast %111 : vector<2x1x16xbf16> to vector<2x16xbf16>
    %113 = vector.extract_strided_slice %88 {offsets = [0, 12, 0], sizes = [2, 1, 16], strides = [1, 1, 1]} : vector<2x16x16xbf16> to vector<2x1x16xbf16>
    %114 = vector.shape_cast %113 : vector<2x1x16xbf16> to vector<2x16xbf16>
    %115 = vector.extract_strided_slice %88 {offsets = [0, 13, 0], sizes = [2, 1, 16], strides = [1, 1, 1]} : vector<2x16x16xbf16> to vector<2x1x16xbf16>
    %116 = vector.shape_cast %115 : vector<2x1x16xbf16> to vector<2x16xbf16>
    %117 = vector.extract_strided_slice %88 {offsets = [0, 14, 0], sizes = [2, 1, 16], strides = [1, 1, 1]} : vector<2x16x16xbf16> to vector<2x1x16xbf16>
    %118 = vector.shape_cast %117 : vector<2x1x16xbf16> to vector<2x16xbf16>
    %119 = vector.extract_strided_slice %88 {offsets = [0, 15, 0], sizes = [2, 1, 16], strides = [1, 1, 1]} : vector<2x16x16xbf16> to vector<2x1x16xbf16>
    %120 = vector.shape_cast %119 : vector<2x1x16xbf16> to vector<2x16xbf16>
    %121 = tpu.concatenate %90, %92, %94, %96, %98, %100, %102, %104, %106, %108, %110, %112, %114, %116, %118, %120 in 1 : vector<2x16xbf16>, vector<2x16xbf16>, vector<2x16xbf16>, vector<2x16xbf16>, vector<2x16xbf16>, vector<2x16xbf16>, vector<2x16xbf16>, vector<2x16xbf16>, vector<2x16xbf16>, vector<2x16xbf16>, vector<2x16xbf16>, vector<2x16xbf16>, vector<2x16xbf16>, vector<2x16xbf16>, vector<2x16xbf16>, vector<2x16xbf16> -> vector<2x256xbf16>
    %cst_27 = arith.constant dense<0.000000e+00> : vector<2x128xf32>
    %122 = tpu.matmul %121, %86, %cst_27 {dimension_numbers = #tpu.dot_dimension_numbers<[1], [0], [0], [1], [0, 0, 1, 1], [], []>} : vector<2x256xbf16>, vector<256x128xbf16>, vector<2x128xf32> -> vector<2x128xf32>
    %123 = vector.broadcast %87 : vector<1x128xf32> to vector<2x128xf32>
    %124 = arith.addf %122, %123 : vector<2x128xf32>
    %c0_28 = arith.constant 0 : index
    %c0_29 = arith.constant 0 : index
    %125 = vector.load %arg9[%c0_28, %c0_29] : memref<2x128xf32, #tpu.memory_space<vmem>>, vector<2x128xf32>
    tpu.vector_store %arg9[%c0_28, %c0_29], %124 {strides = array<i32>} : memref<2x128xf32, #tpu.memory_space<vmem>>, vector<2x128xf32>,
    return
  }
}

</mosaic_0001>

<llo_original>
// kernel: encoder_forward.1
$region0: #{encoder_forward.1}
  #allocation0 [shape = 'u32[]', space=smem, size = 0x4, offset = 0x4, fixed_abs, tag = 'smem constant byte address 0x4 - core index']
  #allocation1 [shape = 'u32[144,128]{1,0:T(1,128)}', space=vmem, size = 0x12000, scoped, tag = 'internal scratch']
  %s0 = inlined_call_operand.vmem [shape: bf16[128,128], index: 0, kind: input, shape index: {}]
  %s1 = inlined_call_operand.vmem [shape: bf16[128,128], index: 1, kind: input, shape index: {}]
  %s2 = inlined_call_operand.vmem [shape: f32[1,128], index: 2, kind: input, shape index: {}]
  %s3 = inlined_call_operand.vmem [shape: bf16[128,128], index: 3, kind: input, shape index: {}]
  %s4 = inlined_call_operand.vmem [shape: f32[1,128], index: 4, kind: input, shape index: {}]
  %s5 = inlined_call_operand.vmem [shape: f32[1,128], index: 5, kind: input, shape index: {}]
  %s6 = inlined_call_operand.vmem [shape: f32[1,128], index: 6, kind: input, shape index: {}]
  %s7 = inlined_call_operand.vmem [shape: bf16[256,128], index: 7, kind: input, shape index: {}]
  %s8 = inlined_call_operand.vmem [shape: f32[1,128], index: 8, kind: input, shape index: {}]
  %s9 = inlined_call_operand.hbm [shape: f32[2,128], index: 9, kind: output, shape index: {}]
  %s10 = sld [smem:[#allocation0]]
  $region46: #{encoder_forward.1} parent=0
    _
  %s12 = ssub.s32 1, %s10
  %s13 = scalar_select 0, %s12, %s10
  $region1: #{encoder_forward.1} parent=0
    #allocation2 [shape = 'u8[1024]{0}', space=vmem, size = 0x400, scoped, tag = 'output window, operand 0, single buffered']
    #allocation3 [shape = 's32[1]{0}', space=sflag, size = 0x4, scoped, tag = 'scoped memory for encoder_forward.1']
    %14 = vsyncpa [#allocation3], 0
    // Predicated region
    $region2: #{encoder_forward.1} parent=1 // pred_check
      _
    $region3: #{encoder_forward.1} parent=1 // pred_check_branch
      %16 = sbr.rel (0) target = $region5
    $region4: #{encoder_forward.1} parent=1 // pred_region
      _
    $region5: #{encoder_forward.1} parent=1 // pred_fallthru
      _
    // Predicated region
    $region6: #{encoder_forward.1} parent=1 // pred_check
      _
    $region7: #{encoder_forward.1} parent=1 // pred_check_branch
      %18 = sbr.rel (0) target = $region9
    $region8: #{encoder_forward.1} parent=1 // pred_region
      _
    $region9: #{encoder_forward.1} parent=1 // pred_fallthru
      _
    // Predicated region
    $region10: #{encoder_forward.1} parent=1 // pred_check
      _
    $region11: #{encoder_forward.1} parent=1 // pred_check_branch
      %20 = sbr.rel (0) target = $region13
    $region12: #{encoder_forward.1} parent=1 // pred_region
      _
    $region13: #{encoder_forward.1} parent=1 // pred_fallthru
      _
    // Predicated region
    $region14: #{encoder_forward.1} parent=1 // pred_check
      _
    $region15: #{encoder_forward.1} parent=1 // pred_check_branch
      %22 = sbr.rel (0) target = $region17
    $region16: #{encoder_forward.1} parent=1 // pred_region
      _
    $region17: #{encoder_forward.1} parent=1 // pred_fallthru
      _
    // Predicated region
    $region18: #{encoder_forward.1} parent=1 // pred_check
      _
    $region19: #{encoder_forward.1} parent=1 // pred_check_branch
      %24 = sbr.rel (0) target = $region21
    $region20: #{encoder_forward.1} parent=1 // pred_region
      _
    $region21: #{encoder_forward.1} parent=1 // pred_fallthru
      _
    // Predicated region
    $region22: #{encoder_forward.1} parent=1 // pred_check
      _
    $region23: #{encoder_forward.1} parent=1 // pred_check_branch
      %26 = sbr.rel (0) target = $region25
    $region24: #{encoder_forward.1} parent=1 // pred_region
      _
    $region25: #{encoder_forward.1} parent=1 // pred_fallthru
      _
    // Predicated region
    $region26: #{encoder_forward.1} parent=1 // pred_check
      _
    $region27: #{encoder_forward.1} parent=1 // pred_check_branch
      %28 = sbr.rel (0) target = $region29
    $region28: #{encoder_forward.1} parent=1 // pred_region
      _
    $region29: #{encoder_forward.1} parent=1 // pred_fallthru
      _
    // Predicated region
    $region30: #{encoder_forward.1} parent=1 // pred_check
      _
    $region31: #{encoder_forward.1} parent=1 // pred_check_branch
      %30 = sbr.rel (0) target = $region33
    $region32: #{encoder_forward.1} parent=1 // pred_region
      _
    $region33: #{encoder_forward.1} parent=1 // pred_fallthru
      _
    // Predicated region
    $region34: #{encoder_forward.1} parent=1 // pred_check
      _
    $region35: #{encoder_forward.1} parent=1 // pred_check_branch
      %32 = sbr.rel (0) target = $region37
    $region36: #{encoder_forward.1} parent=1 // pred_region
      _
    $region37: #{encoder_forward.1} parent=1 // pred_fallthru
      _
    %v34 = vld [vmem:[%s0] sm:$0xf]
    %v35 = vld [vmem:[%s0 + $0x4] sm:$0xf]
    %v36 = vld [vmem:[%s0 + $0x8] sm:$0xf]
    %v37 = vld [vmem:[%s0 + $0xc] sm:$0xf]
    %v38 = vld [vmem:[%s0 + $0x10] sm:$0xf]
    %v39 = vld [vmem:[%s0 + $0x14] sm:$0xf]
    %v40 = vld [vmem:[%s0 + $0x18] sm:$0xf]
    %v41 = vld [vmem:[%s0 + $0x1c] sm:$0xf]
    %v42 = vld [vmem:[%s0 + $0x20] sm:$0xf]
    %v43 = vld [vmem:[%s0 + $0x24] sm:$0xf]
    %v44 = vld [vmem:[%s0 + $0x28] sm:$0xf]
    %v45 = vld [vmem:[%s0 + $0x2c] sm:$0xf]
    %v46 = vld [vmem:[%s0 + $0x30] sm:$0xf]
    %v47 = vld [vmem:[%s0 + $0x34] sm:$0xf]
    %v48 = vld [vmem:[%s0 + $0x38] sm:$0xf]
    %v49 = vld [vmem:[%s0 + $0x3c] sm:$0xf]
    %v50 = vld [vmem:[%s1] sm:$0xf]
    %v51 = vld [vmem:[%s1 + $0x4] sm:$0xf]
    %v52 = vld [vmem:[%s1 + $0x8] sm:$0xf]
    %v53 = vld [vmem:[%s1 + $0xc] sm:$0xf]
    %v54 = vld [vmem:[%s1 + $0x10] sm:$0xf]
    %v55 = vld [vmem:[%s1 + $0x14] sm:$0xf]
    %v56 = vld [vmem:[%s1 + $0x18] sm:$0xf]
    %v57 = vld [vmem:[%s1 + $0x1c] sm:$0xf]
    %v58 = vld [vmem:[%s1 + $0x20] sm:$0xf]
    %v59 = vld [vmem:[%s1 + $0x24] sm:$0xf]
    %v60 = vld [vmem:[%s1 + $0x28] sm:$0xf]
    %v61 = vld [vmem:[%s1 + $0x2c] sm:$0xf]
    %v62 = vld [vmem:[%s1 + $0x30] sm:$0xf]
    %v63 = vld [vmem:[%s1 + $0x34] sm:$0xf]
    %v64 = vld [vmem:[%s1 + $0x38] sm:$0xf]
    %v65 = vld [vmem:[%s1 + $0x3c] sm:$0xf]
    %v66 = vld [vmem:[%s2] sm:$0x1]
    %v68 = vlaneseq
    %v69 = vshrl.u32 %v68, 7
    %v70 = vsub.s32 0, %v69
    %v71 = vrot.slane %v66, %v70
    %v89 = vunpack.c.l.b16 %v34
    %v90 = vunpack.c.l.b16 %v35
    %v91 = vunpack.c.l.b16 %v36
    %v92 = vunpack.c.l.b16 %v37
    %v93 = vunpack.c.l.b16 %v38
    %v94 = vunpack.c.l.b16 %v39
    %v95 = vunpack.c.l.b16 %v40
    %v96 = vunpack.c.l.b16 %v41
    %v97 = vunpack.c.l.b16 %v42
    %v98 = vunpack.c.l.b16 %v43
    %v99 = vunpack.c.l.b16 %v44
    %v100 = vunpack.c.l.b16 %v45
    %v101 = vunpack.c.l.b16 %v46
    %v102 = vunpack.c.l.b16 %v47
    %v103 = vunpack.c.l.b16 %v48
    %v104 = vunpack.c.l.b16 %v49
    %v105 = vpack.c.b16 %v90, %v89
    %v106 = vpack.c.b16 %v92, %v91
    %v107 = vpack.c.b16 %v94, %v93
    %v108 = vpack.c.b16 %v96, %v95
    %v109 = vpack.c.b16 %v98, %v97
    %v110 = vpack.c.b16 %v100, %v99
    %v111 = vpack.c.b16 %v102, %v101
    %v112 = vpack.c.b16 %v104, %v103
    %v137 = vunpack.c.l.b16 %v50
    %v138 = vunpack.c.l.b16 %v51
    %v139 = vunpack.c.l.b16 %v52
    %v140 = vunpack.c.l.b16 %v53
    %v141 = vunpack.c.l.b16 %v54
    %v142 = vunpack.c.l.b16 %v55
    %v143 = vunpack.c.l.b16 %v56
    %v144 = vunpack.c.l.b16 %v57
    %v145 = vunpack.c.l.b16 %v58
    %v146 = vunpack.c.l.b16 %v59
    %v147 = vunpack.c.l.b16 %v60
    %v148 = vunpack.c.l.b16 %v61
    %v149 = vunpack.c.l.b16 %v62
    %v150 = vunpack.c.l.b16 %v63
    %v151 = vunpack.c.l.b16 %v64
    %v152 = vunpack.c.l.b16 %v65
    %v153 = vpack.c.b16 %v138, %v137
    %v154 = vpack.c.b16 %v140, %v139
    %v155 = vpack.c.b16 %v142, %v141
    %v156 = vpack.c.b16 %v144, %v143
    %v157 = vpack.c.b16 %v146, %v145
    %v158 = vpack.c.b16 %v148, %v147
    %v159 = vpack.c.b16 %v150, %v149
    %v160 = vpack.c.b16 %v152, %v151
    %169 = vmatprep.subr.bf16.mxu0 0
    %170 = vmatpush1.bf16.msra.mxu0 %v153
    %171 = vmatprep.subr.bf16.mxu0 0
    %172 = vmatpush1.bf16.msra.mxu0 %v154
    %173 = vmatprep.subr.bf16.mxu0 0
    %174 = vmatpush1.bf16.msra.mxu0 %v155
    %175 = vmatprep.subr.bf16.mxu0 0
    %176 = vmatpush1.bf16.msra.mxu0 %v156
    %177 = vmatprep.subr.bf16.mxu0 0
    %178 = vmatpush1.bf16.msra.mxu0 %v157
    %179 = vmatprep.subr.bf16.mxu0 0
    %180 = vmatpush1.bf16.msra.mxu0 %v158
    %181 = vmatprep.subr.bf16.mxu0 0
    %182 = vmatpush1.bf16.msra.mxu0 %v159
    %183 = vmatprep.subr.bf16.mxu0 0
    %184 = vmatpush1.bf16.msra.mxu0 %v160
    %185 = vmatprep.subr.bf16.mxu0 0
    %186 = vmatpush1.bf16.msra.mxu0 0
    %187 = vmatprep.subr.bf16.mxu0 0
    %188 = vmatpush1.bf16.msra.mxu0 0
    %189 = vmatprep.subr.bf16.mxu0 0
    %190 = vmatpush1.bf16.msra.mxu0 0
    %191 = vmatprep.subr.bf16.mxu0 0
    %192 = vmatpush1.bf16.msra.mxu0 0
    %193 = vmatprep.subr.bf16.mxu0 0
    %194 = vmatpush1.bf16.msra.mxu0 0
    %195 = vmatprep.subr.bf16.mxu0 0
    %196 = vmatpush1.bf16.msra.mxu0 0
    %197 = vmatprep.subr.bf16.mxu0 0
    %198 = vmatpush1.bf16.msra.mxu0 0
    %199 = vmatprep.subr.bf16.mxu0 0
    %200 = vmatpush1.bf16.msra.mxu0 0
    %201 = vmatprep.mubr.bf16.mxu0 0
    %202 = vmatmul.mubr.bf16.gmra.mrb[0].mxu0 %v105
    %v203 = vpop.f32.mrb[0].mxu0
    %v204 = vadd.f32 %v71, %v203
    %v205 = vpop.f32.mrb[0].mxu0
    %v206 = vpop.f32.mrb[0].mxu0
    %v207 = vadd.f32 %v71, %v206
    %v208 = vpop.f32.mrb[0].mxu0
    %209 = vmatprep.mubr.bf16.mxu0 0
    %210 = vmatmul.mubr.bf16.gmra.mrb[0].mxu0 %v106
    %v211 = vpop.f32.mrb[0].mxu0
    %v212 = vadd.f32 %v71, %v211
    %v213 = vpop.f32.mrb[0].mxu0
    %v214 = vpop.f32.mrb[0].mxu0
    %v215 = vadd.f32 %v71, %v214
    %v216 = vpop.f32.mrb[0].mxu0
    %217 = vmatprep.mubr.bf16.mxu0 0
    %218 = vmatmul.mubr.bf16.gmra.mrb[0].mxu0 %v107
    %v219 = vpop.f32.mrb[0].mxu0
    %v220 = vadd.f32 %v71, %v219
    %v221 = vpop.f32.mrb[0].mxu0
    %v222 = vpop.f32.mrb[0].mxu0
    %v223 = vadd.f32 %v71, %v222
    %v224 = vpop.f32.mrb[0].mxu0
    %225 = vmatprep.mubr.bf16.mxu0 0
    %226 = vmatmul.mubr.bf16.gmra.mrb[0].mxu0 %v108
    %v227 = vpop.f32.mrb[0].mxu0
    %v228 = vadd.f32 %v71, %v227
    %v229 = vpop.f32.mrb[0].mxu0
    %v230 = vpop.f32.mrb[0].mxu0
    %v231 = vadd.f32 %v71, %v230
    %v232 = vpop.f32.mrb[0].mxu0
    %233 = vmatprep.mubr.bf16.mxu0 0
    %234 = vmatmul.mubr.bf16.gmra.mrb[0].mxu0 %v109
    %v235 = vpop.f32.mrb[0].mxu0
    %v236 = vadd.f32 %v71, %v235
    %v237 = vpop.f32.mrb[0].mxu0
    %v238 = vpop.f32.mrb[0].mxu0
    %v239 = vadd.f32 %v71, %v238
    %v240 = vpop.f32.mrb[0].mxu0
    %241 = vmatprep.mubr.bf16.mxu0 0
    %242 = vmatmul.mubr.bf16.gmra.mrb[0].mxu0 %v110
    %v243 = vpop.f32.mrb[0].mxu0
    %v244 = vadd.f32 %v71, %v243
    %v245 = vpop.f32.mrb[0].mxu0
    %v246 = vpop.f32.mrb[0].mxu0
    %v247 = vadd.f32 %v71, %v246
    %v248 = vpop.f32.mrb[0].mxu0
    %249 = vmatprep.mubr.bf16.mxu0 0
    %250 = vmatmul.mubr.bf16.gmra.mrb[0].mxu0 %v111
    %v251 = vpop.f32.mrb[0].mxu0
    %v252 = vadd.f32 %v71, %v251
    %v253 = vpop.f32.mrb[0].mxu0
    %v254 = vpop.f32.mrb[0].mxu0
    %v255 = vadd.f32 %v71, %v254
    %v256 = vpop.f32.mrb[0].mxu0
    %257 = vmatprep.mubr.bf16.mxu0 0
    %258 = vmatmul.mubr.bf16.gmra.mrb[0].mxu0 %v112
    %v259 = vpop.f32.mrb[0].mxu0
    %v260 = vadd.f32 %v71, %v259
    %v261 = vpop.f32.mrb[0].mxu0
    %v262 = vpop.f32.mrb[0].mxu0
    %v263 = vadd.f32 %v71, %v262
    %v264 = vpop.f32.mrb[0].mxu0
    %265 = vdwg.mxu0
    %v266 = vmul.f32 %v204, 0.2
    %v267 = vmul.f32 %v207, 0.2
    %v268 = vmul.f32 %v212, 0.2
    %v269 = vmul.f32 %v215, 0.2
    %v270 = vmul.f32 %v220, 0.2
    %v271 = vmul.f32 %v223, 0.2
    %v272 = vmul.f32 %v228, 0.2
    %v273 = vmul.f32 %v231, 0.2
    %v274 = vmul.f32 %v236, 0.2
    %v275 = vmul.f32 %v239, 0.2
    %v276 = vmul.f32 %v244, 0.2
    %v277 = vmul.f32 %v247, 0.2
    %v278 = vmul.f32 %v252, 0.2
    %v279 = vmul.f32 %v255, 0.2
    %v280 = vmul.f32 %v260, 0.2
    %v281 = vmul.f32 %v263, 0.2
    %v282 = vmax.f32 %v204, %v266
    %v283 = vmax.f32 %v207, %v267
    %v284 = vmax.f32 %v212, %v268
    %v285 = vmax.f32 %v215, %v269
    %v286 = vmax.f32 %v220, %v270
    %v287 = vmax.f32 %v223, %v271
    %v288 = vmax.f32 %v228, %v272
    %v289 = vmax.f32 %v231, %v273
    %v290 = vmax.f32 %v236, %v274
    %v291 = vmax.f32 %v239, %v275
    %v292 = vmax.f32 %v244, %v276
    %v293 = vmax.f32 %v247, %v277
    %v294 = vmax.f32 %v252, %v278
    %v295 = vmax.f32 %v255, %v279
    %v296 = vmax.f32 %v260, %v280
    %v297 = vmax.f32 %v263, %v281
    %v298 = vpack.c.bf16 %v283, %v282
    %v299 = vpack.c.bf16 %v285, %v284
    %v300 = vpack.c.bf16 %v287, %v286
    %v301 = vpack.c.bf16 %v289, %v288
    %v302 = vpack.c.bf16 %v291, %v290
    %v303 = vpack.c.bf16 %v293, %v292
    %v304 = vpack.c.bf16 %v295, %v294
    %v305 = vpack.c.bf16 %v297, %v296
    %v306 = vld [vmem:[%s3] sm:$0xf]
    %v307 = vld [vmem:[%s3 + $0x4] sm:$0xf]
    %v308 = vld [vmem:[%s3 + $0x8] sm:$0xf]
    %v309 = vld [vmem:[%s3 + $0xc] sm:$0xf]
    %v310 = vld [vmem:[%s3 + $0x10] sm:$0xf]
    %v311 = vld [vmem:[%s3 + $0x14] sm:$0xf]
    %v312 = vld [vmem:[%s3 + $0x18] sm:$0xf]
    %v313 = vld [vmem:[%s3 + $0x1c] sm:$0xf]
    %v314 = vld [vmem:[%s3 + $0x20] sm:$0xf]
    %v315 = vld [vmem:[%s3 + $0x24] sm:$0xf]
    %v316 = vld [vmem:[%s3 + $0x28] sm:$0xf]
    %v317 = vld [vmem:[%s3 + $0x2c] sm:$0xf]
    %v318 = vld [vmem:[%s3 + $0x30] sm:$0xf]
    %v319 = vld [vmem:[%s3 + $0x34] sm:$0xf]
    %v320 = vld [vmem:[%s3 + $0x38] sm:$0xf]
    %v321 = vld [vmem:[%s3 + $0x3c] sm:$0xf]
    %v322 = vld [vmem:[%s4] sm:$0x1]
    %v323 = vld [vmem:[%s5] sm:$0x1]
    %v324 = vld [vmem:[%s6] sm:$0x1]
    %v333 = vunpack.c.l.b16 %v298
    %v334 = vunpack.c.h.b16 %v298
    %v335 = vunpack.c.l.b16 %v299
    %v336 = vunpack.c.h.b16 %v299
    %v337 = vunpack.c.l.b16 %v300
    %v338 = vunpack.c.h.b16 %v300
    %v339 = vunpack.c.l.b16 %v301
    %v340 = vunpack.c.h.b16 %v301
    %v341 = vunpack.c.l.b16 %v302
    %v342 = vunpack.c.h.b16 %v302
    %v343 = vunpack.c.l.b16 %v303
    %v344 = vunpack.c.h.b16 %v303
    %v345 = vunpack.c.l.b16 %v304
    %v346 = vunpack.c.h.b16 %v304
    %v347 = vunpack.c.l.b16 %v305
    %v348 = vunpack.c.h.b16 %v305
    %v349 = vpack.c.b16 %v333, %v333
    %v350 = vpack.c.b16 %v334, %v334
    %v351 = vpack.c.b16 %v335, %v335
    %v352 = vpack.c.b16 %v336, %v336
    %v353 = vpack.c.b16 %v337, %v337
    %v354 = vpack.c.b16 %v338, %v338
    %v355 = vpack.c.b16 %v339, %v339
    %v356 = vpack.c.b16 %v340, %v340
    %v357 = vpack.c.b16 %v341, %v341
    %v358 = vpack.c.b16 %v342, %v342
    %v359 = vpack.c.b16 %v343, %v343
    %v360 = vpack.c.b16 %v344, %v344
    %v361 = vpack.c.b16 %v345, %v345
    %v362 = vpack.c.b16 %v346, %v346
    %v363 = vpack.c.b16 %v347, %v347
    %v364 = vpack.c.b16 %v348, %v348
    %v366 = vshrl.u32 %v349, 16
    %v368 = vrot.slane %v366, 7
    %v369 = vshll.u32 %v349, 16
    %v371 = vor.u32 %v368, %v369
    %v373 = vshrl.u32 %v350, 16
    %v375 = vrot.slane %v373, 7
    %v376 = vshll.u32 %v350, 16
    %v378 = vor.u32 %v375, %v376
    %v380 = vshrl.u32 %v351, 16
    %v382 = vrot.slane %v380, 7
    %v383 = vshll.u32 %v351, 16
    %v385 = vor.u32 %v382, %v383
    %v387 = vshrl.u32 %v352, 16
    %v389 = vrot.slane %v387, 7
    %v390 = vshll.u32 %v352, 16
    %v392 = vor.u32 %v389, %v390
    %v394 = vshrl.u32 %v353, 16
    %v396 = vrot.slane %v394, 7
    %v397 = vshll.u32 %v353, 16
    %v399 = vor.u32 %v396, %v397
    %v401 = vshrl.u32 %v354, 16
    %v403 = vrot.slane %v401, 7
    %v404 = vshll.u32 %v354, 16
    %v406 = vor.u32 %v403, %v404
    %v408 = vshrl.u32 %v355, 16
    %v410 = vrot.slane %v408, 7
    %v411 = vshll.u32 %v355, 16
    %v413 = vor.u32 %v410, %v411
    %v415 = vshrl.u32 %v356, 16
    %v417 = vrot.slane %v415, 7
    %v418 = vshll.u32 %v356, 16
    %v420 = vor.u32 %v417, %v418
    %v422 = vshrl.u32 %v357, 16
    %v424 = vrot.slane %v422, 7
    %v425 = vshll.u32 %v357, 16
    %v427 = vor.u32 %v424, %v425
    %v429 = vshrl.u32 %v358, 16
    %v431 = vrot.slane %v429, 7
    %v432 = vshll.u32 %v358, 16
    %v434 = vor.u32 %v431, %v432
    %v436 = vshrl.u32 %v359, 16
    %v438 = vrot.slane %v436, 7
    %v439 = vshll.u32 %v359, 16
    %v441 = vor.u32 %v438, %v439
    %v443 = vshrl.u32 %v360, 16
    %v445 = vrot.slane %v443, 7
    %v446 = vshll.u32 %v360, 16
    %v448 = vor.u32 %v445, %v446
    %v450 = vshrl.u32 %v361, 16
    %v452 = vrot.slane %v450, 7
    %v453 = vshll.u32 %v361, 16
    %v455 = vor.u32 %v452, %v453
    %v457 = vshrl.u32 %v362, 16
    %v459 = vrot.slane %v457, 7
    %v460 = vshll.u32 %v362, 16
    %v462 = vor.u32 %v459, %v460
    %v464 = vshrl.u32 %v363, 16
    %v466 = vrot.slane %v464, 7
    %v467 = vshll.u32 %v363, 16
    %v469 = vor.u32 %v466, %v467
    %v471 = vshrl.u32 %v364, 16
    %v473 = vrot.slane %v471, 7
    %v474 = vshll.u32 %v364, 16
    %v476 = vor.u32 %v473, %v474
    %vm493 = vcmask 1040384
    %vm494 = vsmask.f32 256
    %vm495 = vmand %vm493, %vm494
    %v496 = vsel %vm495, 0, %v371
    %v497 = vsel %vm495, 0, %v378
    %v498 = vsel %vm495, 0, %v385
    %v499 = vsel %vm495, 0, %v392
    %v500 = vsel %vm495, 0, %v399
    %v501 = vsel %vm495, 0, %v406
    %v502 = vsel %vm495, 0, %v413
    %v503 = vsel %vm495, 0, %v420
    %v504 = vsel %vm495, 0, %v427
    %v505 = vsel %vm495, 0, %v434
    %v506 = vsel %vm495, 0, %v441
    %v507 = vsel %vm495, 0, %v448
    %v508 = vsel %vm495, 0, %v455
    %v509 = vsel %vm495, 0, %v462
    %v510 = vsel %vm495, 0, %v469
    %v511 = vsel %vm495, 0, %v476
    %vm512 = vcmask 1044480
    %vm513 = vsmask.f32 4352
    %vm514 = vmand %vm512, %vm513
    %v515 = vsel %vm514, %v496, 0
    %v516 = vsel %vm514, %v497, 0
    %v517 = vsel %vm514, %v498, 0
    %v518 = vsel %vm514, %v499, 0
    %v519 = vsel %vm514, %v500, 0
    %v520 = vsel %vm514, %v501, 0
    %v521 = vsel %vm514, %v502, 0
    %v522 = vsel %vm514, %v503, 0
    %v523 = vsel %vm514, %v504, 0
    %v524 = vsel %vm514, %v505, 0
    %v525 = vsel %vm514, %v506, 0
    %v526 = vsel %vm514, %v507, 0
    %v527 = vsel %vm514, %v508, 0
    %v528 = vsel %vm514, %v509, 0
    %v529 = vsel %vm514, %v510, 0
    %v530 = vsel %vm514, %v511, 0
    %v540 = vcombine.high 0, 0
    %v542 = vunpack.c.l.s4 1966171168
    %v543 = vunpack.c.0.s8 %v542
    %v544 = vlaneseq
    %v545 = vshrl.u32 %v544, 7
    %v546 = vsub.s32 %v543, %v545
    %v547 = vrot.slane 0, %v546
    %v549 = vunpack.c.l.s4 1966171168
    %v550 = vunpack.c.0.s8 %v549
    %v551 = vlaneseq
    %v552 = vshrl.u32 %v551, 7
    %v553 = vsub.s32 %v550, %v552
    %v554 = vrot.slane %v540, %v553
    %v555 = vcombine.high %v547, %v547
    %v557 = vunpack.c.l.s4 1966171168
    %v558 = vunpack.c.0.s8 %v557
    %v559 = vlaneseq
    %v560 = vshrl.u32 %v559, 7
    %v561 = vsub.s32 %v558, %v560
    %v562 = vrot.slane %v547, %v561
    %v564 = vunpack.c.l.s4 1966171168
    %v565 = vunpack.c.0.s8 %v564
    %v566 = vlaneseq
    %v567 = vshrl.u32 %v566, 7
    %v568 = vsub.s32 %v565, %v567
    %v569 = vrot.slane %v554, %v568
    %v571 = vunpack.c.l.s4 1966171168
    %v572 = vunpack.c.0.s8 %v571
    %v573 = vlaneseq
    %v574 = vshrl.u32 %v573, 7
    %v575 = vsub.s32 %v572, %v574
    %v576 = vrot.slane %v555, %v575
    %v577 = vcombine.high %v562, %v562
    %v578 = vcombine.high %v576, %v576
    %v579 = vcombine.high %v516, %v516
    %v581 = vunpack.c.l.s4 1966171168
    %v582 = vunpack.c.0.s8 %v581
    %v583 = vlaneseq
    %v584 = vshrl.u32 %v583, 7
    %v585 = vsub.s32 %v582, %v584
    %v586 = vrot.slane %v516, %v585
    %v588 = vunpack.c.l.s4 1966171168
    %v589 = vunpack.c.0.s8 %v588
    %v590 = vlaneseq
    %v591 = vshrl.u32 %v590, 7
    %v592 = vsub.s32 %v589, %v591
    %v593 = vrot.slane %v579, %v592
    %v594 = vcombine.high %v586, %v586
    %v596 = vunpack.c.l.s4 1966171168
    %v597 = vunpack.c.0.s8 %v596
    %v598 = vlaneseq
    %v599 = vshrl.u32 %v598, 7
    %v600 = vsub.s32 %v597, %v599
    %v601 = vrot.slane %v586, %v600
    %v603 = vunpack.c.l.s4 1966171168
    %v604 = vunpack.c.0.s8 %v603
    %v605 = vlaneseq
    %v606 = vshrl.u32 %v605, 7
    %v607 = vsub.s32 %v604, %v606
    %v608 = vrot.slane %v593, %v607
    %v610 = vunpack.c.l.s4 1966171168
    %v611 = vunpack.c.0.s8 %v610
    %v612 = vlaneseq
    %v613 = vshrl.u32 %v612, 7
    %v614 = vsub.s32 %v611, %v613
    %v615 = vrot.slane %v594, %v614
    %v616 = vcombine.high %v601, %v601
    %v617 = vcombine.high %v615, %v615
    %v618 = vcombine.high %v518, %v518
    %v620 = vunpack.c.l.s4 1966171168
    %v621 = vunpack.c.0.s8 %v620
    %v622 = vlaneseq
    %v623 = vshrl.u32 %v622, 7
    %v624 = vsub.s32 %v621, %v623
    %v625 = vrot.slane %v518, %v624
    %v627 = vunpack.c.l.s4 1966171168
    %v628 = vunpack.c.0.s8 %v627
    %v629 = vlaneseq
    %v630 = vshrl.u32 %v629, 7
    %v631 = vsub.s32 %v628, %v630
    %v632 = vrot.slane %v618, %v631
    %v633 = vcombine.high %v625, %v625
    %v635 = vunpack.c.l.s4 1966171168
    %v636 = vunpack.c.0.s8 %v635
    %v637 = vlaneseq
    %v638 = vshrl.u32 %v637, 7
    %v639 = vsub.s32 %v636, %v638
    %v640 = vrot.slane %v625, %v639
    %v642 = vunpack.c.l.s4 1966171168
    %v643 = vunpack.c.0.s8 %v642
    %v644 = vlaneseq
    %v645 = vshrl.u32 %v644, 7
    %v646 = vsub.s32 %v643, %v645
    %v647 = vrot.slane %v632, %v646
    %v649 = vunpack.c.l.s4 1966171168
    %v650 = vunpack.c.0.s8 %v649
    %v651 = vlaneseq
    %v652 = vshrl.u32 %v651, 7
    %v653 = vsub.s32 %v650, %v652
    %v654 = vrot.slane %v633, %v653
    %v655 = vcombine.high %v640, %v640
    %v656 = vcombine.high %v654, %v654
    %v657 = vcombine.high %v520, %v520
    %v659 = vunpack.c.l.s4 1966171168
    %v660 = vunpack.c.0.s8 %v659
    %v661 = vlaneseq
    %v662 = vshrl.u32 %v661, 7
    %v663 = vsub.s32 %v660, %v662
    %v664 = vrot.slane %v520, %v663
    %v666 = vunpack.c.l.s4 1966171168
    %v667 = vunpack.c.0.s8 %v666
    %v668 = vlaneseq
    %v669 = vshrl.u32 %v668, 7
    %v670 = vsub.s32 %v667, %v669
    %v671 = vrot.slane %v657, %v670
    %v672 = vcombine.high %v664, %v664
    %v674 = vunpack.c.l.s4 1966171168
    %v675 = vunpack.c.0.s8 %v674
    %v676 = vlaneseq
    %v677 = vshrl.u32 %v676, 7
    %v678 = vsub.s32 %v675, %v677
    %v679 = vrot.slane %v664, %v678
    %v681 = vunpack.c.l.s4 1966171168
    %v682 = vunpack.c.0.s8 %v681
    %v683 = vlaneseq
    %v684 = vshrl.u32 %v683, 7
    %v685 = vsub.s32 %v682, %v684
    %v686 = vrot.slane %v671, %v685
    %v688 = vunpack.c.l.s4 1966171168
    %v689 = vunpack.c.0.s8 %v688
    %v690 = vlaneseq
    %v691 = vshrl.u32 %v690, 7
    %v692 = vsub.s32 %v689, %v691
    %v693 = vrot.slane %v672, %v692
    %v694 = vcombine.high %v679, %v679
    %v695 = vcombine.high %v693, %v693
    %v696 = vcombine.high %v522, %v522
    %v698 = vunpack.c.l.s4 1966171168
    %v699 = vunpack.c.0.s8 %v698
    %v700 = vlaneseq
    %v701 = vshrl.u32 %v700, 7
    %v702 = vsub.s32 %v699, %v701
    %v703 = vrot.slane %v522, %v702
    %v705 = vunpack.c.l.s4 1966171168
    %v706 = vunpack.c.0.s8 %v705
    %v707 = vlaneseq
    %v708 = vshrl.u32 %v707, 7
    %v709 = vsub.s32 %v706, %v708
    %v710 = vrot.slane %v696, %v709
    %v711 = vcombine.high %v703, %v703
    %v713 = vunpack.c.l.s4 1966171168
    %v714 = vunpack.c.0.s8 %v713
    %v715 = vlaneseq
    %v716 = vshrl.u32 %v715, 7
    %v717 = vsub.s32 %v714, %v716
    %v718 = vrot.slane %v703, %v717
    %v720 = vunpack.c.l.s4 1966171168
    %v721 = vunpack.c.0.s8 %v720
    %v722 = vlaneseq
    %v723 = vshrl.u32 %v722, 7
    %v724 = vsub.s32 %v721, %v723
    %v725 = vrot.slane %v710, %v724
    %v727 = vunpack.c.l.s4 1966171168
    %v728 = vunpack.c.0.s8 %v727
    %v729 = vlaneseq
    %v730 = vshrl.u32 %v729, 7
    %v731 = vsub.s32 %v728, %v730
    %v732 = vrot.slane %v711, %v731
    %v733 = vcombine.high %v718, %v718
    %v734 = vcombine.high %v732, %v732
    %v735 = vcombine.high %v524, %v524
    %v737 = vunpack.c.l.s4 1966171168
    %v738 = vunpack.c.0.s8 %v737
    %v739 = vlaneseq
    %v740 = vshrl.u32 %v739, 7
    %v741 = vsub.s32 %v738, %v740
    %v742 = vrot.slane %v524, %v741
    %v744 = vunpack.c.l.s4 1966171168
    %v745 = vunpack.c.0.s8 %v744
    %v746 = vlaneseq
    %v747 = vshrl.u32 %v746, 7
    %v748 = vsub.s32 %v745, %v747
    %v749 = vrot.slane %v735, %v748
    %v750 = vcombine.high %v742, %v742
    %v752 = vunpack.c.l.s4 1966171168
    %v753 = vunpack.c.0.s8 %v752
    %v754 = vlaneseq
    %v755 = vshrl.u32 %v754, 7
    %v756 = vsub.s32 %v753, %v755
    %v757 = vrot.slane %v742, %v756
    %v759 = vunpack.c.l.s4 1966171168
    %v760 = vunpack.c.0.s8 %v759
    %v761 = vlaneseq
    %v762 = vshrl.u32 %v761, 7
    %v763 = vsub.s32 %v760, %v762
    %v764 = vrot.slane %v749, %v763
    %v766 = vunpack.c.l.s4 1966171168
    %v767 = vunpack.c.0.s8 %v766
    %v768 = vlaneseq
    %v769 = vshrl.u32 %v768, 7
    %v770 = vsub.s32 %v767, %v769
    %v771 = vrot.slane %v750, %v770
    %v772 = vcombine.high %v757, %v757
    %v773 = vcombine.high %v771, %v771
    %v774 = vcombine.high %v526, %v526
    %v776 = vunpack.c.l.s4 1966171168
    %v777 = vunpack.c.0.s8 %v776
    %v778 = vlaneseq
    %v779 = vshrl.u32 %v778, 7
    %v780 = vsub.s32 %v777, %v779
    %v781 = vrot.slane %v526, %v780
    %v783 = vunpack.c.l.s4 1966171168
    %v784 = vunpack.c.0.s8 %v783
    %v785 = vlaneseq
    %v786 = vshrl.u32 %v785, 7
    %v787 = vsub.s32 %v784, %v786
    %v788 = vrot.slane %v774, %v787
    %v789 = vcombine.high %v781, %v781
    %v791 = vunpack.c.l.s4 1966171168
    %v792 = vunpack.c.0.s8 %v791
    %v793 = vlaneseq
    %v794 = vshrl.u32 %v793, 7
    %v795 = vsub.s32 %v792, %v794
    %v796 = vrot.slane %v781, %v795
    %v798 = vunpack.c.l.s4 1966171168
    %v799 = vunpack.c.0.s8 %v798
    %v800 = vlaneseq
    %v801 = vshrl.u32 %v800, 7
    %v802 = vsub.s32 %v799, %v801
    %v803 = vrot.slane %v788, %v802
    %v805 = vunpack.c.l.s4 1966171168
    %v806 = vunpack.c.0.s8 %v805
    %v807 = vlaneseq
    %v808 = vshrl.u32 %v807, 7
    %v809 = vsub.s32 %v806, %v808
    %v810 = vrot.slane %v789, %v809
    %v811 = vcombine.high %v796, %v796
    %v812 = vcombine.high %v810, %v810
    %v813 = vcombine.high %v528, %v528
    %v815 = vunpack.c.l.s4 1966171168
    %v816 = vunpack.c.0.s8 %v815
    %v817 = vlaneseq
    %v818 = vshrl.u32 %v817, 7
    %v819 = vsub.s32 %v816, %v818
    %v820 = vrot.slane %v528, %v819
    %v822 = vunpack.c.l.s4 1966171168
    %v823 = vunpack.c.0.s8 %v822
    %v824 = vlaneseq
    %v825 = vshrl.u32 %v824, 7
    %v826 = vsub.s32 %v823, %v825
    %v827 = vrot.slane %v813, %v826
    %v828 = vcombine.high %v820, %v820
    %v830 = vunpack.c.l.s4 1966171168
    %v831 = vunpack.c.0.s8 %v830
    %v832 = vlaneseq
    %v833 = vshrl.u32 %v832, 7
    %v834 = vsub.s32 %v831, %v833
    %v835 = vrot.slane %v820, %v834
    %v837 = vunpack.c.l.s4 1966171168
    %v838 = vunpack.c.0.s8 %v837
    %v839 = vlaneseq
    %v840 = vshrl.u32 %v839, 7
    %v841 = vsub.s32 %v838, %v840
    %v842 = vrot.slane %v827, %v841
    %v844 = vunpack.c.l.s4 1966171168
    %v845 = vunpack.c.0.s8 %v844
    %v846 = vlaneseq
    %v847 = vshrl.u32 %v846, 7
    %v848 = vsub.s32 %v845, %v847
    %v849 = vrot.slane %v828, %v848
    %v850 = vcombine.high %v835, %v835
    %v851 = vcombine.high %v849, %v849
    %v852 = vcombine.high %v530, %v530
    %v854 = vunpack.c.l.s4 1966171168
    %v855 = vunpack.c.0.s8 %v854
    %v856 = vlaneseq
    %v857 = vshrl.u32 %v856, 7
    %v858 = vsub.s32 %v855, %v857
    %v859 = vrot.slane %v530, %v858
    %v861 = vunpack.c.l.s4 1966171168
    %v862 = vunpack.c.0.s8 %v861
    %v863 = vlaneseq
    %v864 = vshrl.u32 %v863, 7
    %v865 = vsub.s32 %v862, %v864
    %v866 = vrot.slane %v852, %v865
    %v867 = vcombine.high %v859, %v859
    %v869 = vunpack.c.l.s4 1966171168
    %v870 = vunpack.c.0.s8 %v869
    %v871 = vlaneseq
    %v872 = vshrl.u32 %v871, 7
    %v873 = vsub.s32 %v870, %v872
    %v874 = vrot.slane %v859, %v873
    %v876 = vunpack.c.l.s4 1966171168
    %v877 = vunpack.c.0.s8 %v876
    %v878 = vlaneseq
    %v879 = vshrl.u32 %v878, 7
    %v880 = vsub.s32 %v877, %v879
    %v881 = vrot.slane %v866, %v880
    %v883 = vunpack.c.l.s4 1966171168
    %v884 = vunpack.c.0.s8 %v883
    %v885 = vlaneseq
    %v886 = vshrl.u32 %v885, 7
    %v887 = vsub.s32 %v884, %v886
    %v888 = vrot.slane %v867, %v887
    %v889 = vcombine.high %v874, %v874
    %v890 = vcombine.high %v888, %v888
    %v899 = vcombine.high %v515, %v515
    %v901 = vunpack.c.l.s4 1966171168
    %v902 = vunpack.c.0.s8 %v901
    %v903 = vlaneseq
    %v904 = vshrl.u32 %v903, 7
    %v905 = vsub.s32 %v902, %v904
    %v906 = vrot.slane %v515, %v905
    %v908 = vunpack.c.l.s4 1966171168
    %v909 = vunpack.c.0.s8 %v908
    %v910 = vlaneseq
    %v911 = vshrl.u32 %v910, 7
    %v912 = vsub.s32 %v909, %v911
    %v913 = vrot.slane %v899, %v912
    %v914 = vcombine.high %v906, %v906
    %v916 = vunpack.c.l.s4 1966171168
    %v917 = vunpack.c.0.s8 %v916
    %v918 = vlaneseq
    %v919 = vshrl.u32 %v918, 7
    %v920 = vsub.s32 %v917, %v919
    %v921 = vrot.slane %v906, %v920
    %v923 = vunpack.c.l.s4 1966171168
    %v924 = vunpack.c.0.s8 %v923
    %v925 = vlaneseq
    %v926 = vshrl.u32 %v925, 7
    %v927 = vsub.s32 %v924, %v926
    %v928 = vrot.slane %v913, %v927
    %v930 = vunpack.c.l.s4 1966171168
    %v931 = vunpack.c.0.s8 %v930
    %v932 = vlaneseq
    %v933 = vshrl.u32 %v932, 7
    %v934 = vsub.s32 %v931, %v933
    %v935 = vrot.slane %v914, %v934
    %v936 = vcombine.high %v921, %v921
    %v937 = vcombine.high %v935, %v935
    %v938 = vcombine.high %v517, %v517
    %v940 = vunpack.c.l.s4 1966171168
    %v941 = vunpack.c.0.s8 %v940
    %v942 = vlaneseq
    %v943 = vshrl.u32 %v942, 7
    %v944 = vsub.s32 %v941, %v943
    %v945 = vrot.slane %v517, %v944
    %v947 = vunpack.c.l.s4 1966171168
    %v948 = vunpack.c.0.s8 %v947
    %v949 = vlaneseq
    %v950 = vshrl.u32 %v949, 7
    %v951 = vsub.s32 %v948, %v950
    %v952 = vrot.slane %v938, %v951
    %v953 = vcombine.high %v945, %v945
    %v955 = vunpack.c.l.s4 1966171168
    %v956 = vunpack.c.0.s8 %v955
    %v957 = vlaneseq
    %v958 = vshrl.u32 %v957, 7
    %v959 = vsub.s32 %v956, %v958
    %v960 = vrot.slane %v945, %v959
    %v962 = vunpack.c.l.s4 1966171168
    %v963 = vunpack.c.0.s8 %v962
    %v964 = vlaneseq
    %v965 = vshrl.u32 %v964, 7
    %v966 = vsub.s32 %v963, %v965
    %v967 = vrot.slane %v952, %v966
    %v969 = vunpack.c.l.s4 1966171168
    %v970 = vunpack.c.0.s8 %v969
    %v971 = vlaneseq
    %v972 = vshrl.u32 %v971, 7
    %v973 = vsub.s32 %v970, %v972
    %v974 = vrot.slane %v953, %v973
    %v975 = vcombine.high %v960, %v960
    %v976 = vcombine.high %v974, %v974
    %v977 = vcombine.high %v519, %v519
    %v979 = vunpack.c.l.s4 1966171168
    %v980 = vunpack.c.0.s8 %v979
    %v981 = vlaneseq
    %v982 = vshrl.u32 %v981, 7
    %v983 = vsub.s32 %v980, %v982
    %v984 = vrot.slane %v519, %v983
    %v986 = vunpack.c.l.s4 1966171168
    %v987 = vunpack.c.0.s8 %v986
    %v988 = vlaneseq
    %v989 = vshrl.u32 %v988, 7
    %v990 = vsub.s32 %v987, %v989
    %v991 = vrot.slane %v977, %v990
    %v992 = vcombine.high %v984, %v984
    %v994 = vunpack.c.l.s4 1966171168
    %v995 = vunpack.c.0.s8 %v994
    %v996 = vlaneseq
    %v997 = vshrl.u32 %v996, 7
    %v998 = vsub.s32 %v995, %v997
    %v999 = vrot.slane %v984, %v998
    %v1001 = vunpack.c.l.s4 1966171168
    %v1002 = vunpack.c.0.s8 %v1001
    %v1003 = vlaneseq
    %v1004 = vshrl.u32 %v1003, 7
    %v1005 = vsub.s32 %v1002, %v1004
    %v1006 = vrot.slane %v991, %v1005
    %v1008 = vunpack.c.l.s4 1966171168
    %v1009 = vunpack.c.0.s8 %v1008
    %v1010 = vlaneseq
    %v1011 = vshrl.u32 %v1010, 7
    %v1012 = vsub.s32 %v1009, %v1011
    %v1013 = vrot.slane %v992, %v1012
    %v1014 = vcombine.high %v999, %v999
    %v1015 = vcombine.high %v1013, %v1013
    %v1016 = vcombine.high %v521, %v521
    %v1018 = vunpack.c.l.s4 1966171168
    %v1019 = vunpack.c.0.s8 %v1018
    %v1020 = vlaneseq
    %v1021 = vshrl.u32 %v1020, 7
    %v1022 = vsub.s32 %v1019, %v1021
    %v1023 = vrot.slane %v521, %v1022
    %v1025 = vunpack.c.l.s4 1966171168
    %v1026 = vunpack.c.0.s8 %v1025
    %v1027 = vlaneseq
    %v1028 = vshrl.u32 %v1027, 7
    %v1029 = vsub.s32 %v1026, %v1028
    %v1030 = vrot.slane %v1016, %v1029
    %v1031 = vcombine.high %v1023, %v1023
    %v1033 = vunpack.c.l.s4 1966171168
    %v1034 = vunpack.c.0.s8 %v1033
    %v1035 = vlaneseq
    %v1036 = vshrl.u32 %v1035, 7
    %v1037 = vsub.s32 %v1034, %v1036
    %v1038 = vrot.slane %v1023, %v1037
    %v1040 = vunpack.c.l.s4 1966171168
    %v1041 = vunpack.c.0.s8 %v1040
    %v1042 = vlaneseq
    %v1043 = vshrl.u32 %v1042, 7
    %v1044 = vsub.s32 %v1041, %v1043
    %v1045 = vrot.slane %v1030, %v1044
    %v1047 = vunpack.c.l.s4 1966171168
    %v1048 = vunpack.c.0.s8 %v1047
    %v1049 = vlaneseq
    %v1050 = vshrl.u32 %v1049, 7
    %v1051 = vsub.s32 %v1048, %v1050
    %v1052 = vrot.slane %v1031, %v1051
    %v1053 = vcombine.high %v1038, %v1038
    %v1054 = vcombine.high %v1052, %v1052
    %v1055 = vcombine.high %v523, %v523
    %v1057 = vunpack.c.l.s4 1966171168
    %v1058 = vunpack.c.0.s8 %v1057
    %v1059 = vlaneseq
    %v1060 = vshrl.u32 %v1059, 7
    %v1061 = vsub.s32 %v1058, %v1060
    %v1062 = vrot.slane %v523, %v1061
    %v1064 = vunpack.c.l.s4 1966171168
    %v1065 = vunpack.c.0.s8 %v1064
    %v1066 = vlaneseq
    %v1067 = vshrl.u32 %v1066, 7
    %v1068 = vsub.s32 %v1065, %v1067
    %v1069 = vrot.slane %v1055, %v1068
    %v1070 = vcombine.high %v1062, %v1062
    %v1072 = vunpack.c.l.s4 1966171168
    %v1073 = vunpack.c.0.s8 %v1072
    %v1074 = vlaneseq
    %v1075 = vshrl.u32 %v1074, 7
    %v1076 = vsub.s32 %v1073, %v1075
    %v1077 = vrot.slane %v1062, %v1076
    %v1079 = vunpack.c.l.s4 1966171168
    %v1080 = vunpack.c.0.s8 %v1079
    %v1081 = vlaneseq
    %v1082 = vshrl.u32 %v1081, 7
    %v1083 = vsub.s32 %v1080, %v1082
    %v1084 = vrot.slane %v1069, %v1083
    %v1086 = vunpack.c.l.s4 1966171168
    %v1087 = vunpack.c.0.s8 %v1086
    %v1088 = vlaneseq
    %v1089 = vshrl.u32 %v1088, 7
    %v1090 = vsub.s32 %v1087, %v1089
    %v1091 = vrot.slane %v1070, %v1090
    %v1092 = vcombine.high %v1077, %v1077
    %v1093 = vcombine.high %v1091, %v1091
    %v1094 = vcombine.high %v525, %v525
    %v1096 = vunpack.c.l.s4 1966171168
    %v1097 = vunpack.c.0.s8 %v1096
    %v1098 = vlaneseq
    %v1099 = vshrl.u32 %v1098, 7
    %v1100 = vsub.s32 %v1097, %v1099
    %v1101 = vrot.slane %v525, %v1100
    %v1103 = vunpack.c.l.s4 1966171168
    %v1104 = vunpack.c.0.s8 %v1103
    %v1105 = vlaneseq
    %v1106 = vshrl.u32 %v1105, 7
    %v1107 = vsub.s32 %v1104, %v1106
    %v1108 = vrot.slane %v1094, %v1107
    %v1109 = vcombine.high %v1101, %v1101
    %v1111 = vunpack.c.l.s4 1966171168
    %v1112 = vunpack.c.0.s8 %v1111
    %v1113 = vlaneseq
    %v1114 = vshrl.u32 %v1113, 7
    %v1115 = vsub.s32 %v1112, %v1114
    %v1116 = vrot.slane %v1101, %v1115
    %v1118 = vunpack.c.l.s4 1966171168
    %v1119 = vunpack.c.0.s8 %v1118
    %v1120 = vlaneseq
    %v1121 = vshrl.u32 %v1120, 7
    %v1122 = vsub.s32 %v1119, %v1121
    %v1123 = vrot.slane %v1108, %v1122
    %v1125 = vunpack.c.l.s4 1966171168
    %v1126 = vunpack.c.0.s8 %v1125
    %v1127 = vlaneseq
    %v1128 = vshrl.u32 %v1127, 7
    %v1129 = vsub.s32 %v1126, %v1128
    %v1130 = vrot.slane %v1109, %v1129
    %v1131 = vcombine.high %v1116, %v1116
    %v1132 = vcombine.high %v1130, %v1130
    %v1133 = vcombine.high %v527, %v527
    %v1135 = vunpack.c.l.s4 1966171168
    %v1136 = vunpack.c.0.s8 %v1135
    %v1137 = vlaneseq
    %v1138 = vshrl.u32 %v1137, 7
    %v1139 = vsub.s32 %v1136, %v1138
    %v1140 = vrot.slane %v527, %v1139
    %v1142 = vunpack.c.l.s4 1966171168
    %v1143 = vunpack.c.0.s8 %v1142
    %v1144 = vlaneseq
    %v1145 = vshrl.u32 %v1144, 7
    %v1146 = vsub.s32 %v1143, %v1145
    %v1147 = vrot.slane %v1133, %v1146
    %v1148 = vcombine.high %v1140, %v1140
    %v1150 = vunpack.c.l.s4 1966171168
    %v1151 = vunpack.c.0.s8 %v1150
    %v1152 = vlaneseq
    %v1153 = vshrl.u32 %v1152, 7
    %v1154 = vsub.s32 %v1151, %v1153
    %v1155 = vrot.slane %v1140, %v1154
    %v1157 = vunpack.c.l.s4 1966171168
    %v1158 = vunpack.c.0.s8 %v1157
    %v1159 = vlaneseq
    %v1160 = vshrl.u32 %v1159, 7
    %v1161 = vsub.s32 %v1158, %v1160
    %v1162 = vrot.slane %v1147, %v1161
    %v1164 = vunpack.c.l.s4 1966171168
    %v1165 = vunpack.c.0.s8 %v1164
    %v1166 = vlaneseq
    %v1167 = vshrl.u32 %v1166, 7
    %v1168 = vsub.s32 %v1165, %v1167
    %v1169 = vrot.slane %v1148, %v1168
    %v1170 = vcombine.high %v1155, %v1155
    %v1171 = vcombine.high %v1169, %v1169
    %v1172 = vcombine.high %v529, %v529
    %v1174 = vunpack.c.l.s4 1966171168
    %v1175 = vunpack.c.0.s8 %v1174
    %v1176 = vlaneseq
    %v1177 = vshrl.u32 %v1176, 7
    %v1178 = vsub.s32 %v1175, %v1177
    %v1179 = vrot.slane %v529, %v1178
    %v1181 = vunpack.c.l.s4 1966171168
    %v1182 = vunpack.c.0.s8 %v1181
    %v1183 = vlaneseq
    %v1184 = vshrl.u32 %v1183, 7
    %v1185 = vsub.s32 %v1182, %v1184
    %v1186 = vrot.slane %v1172, %v1185
    %v1187 = vcombine.high %v1179, %v1179
    %v1189 = vunpack.c.l.s4 1966171168
    %v1190 = vunpack.c.0.s8 %v1189
    %v1191 = vlaneseq
    %v1192 = vshrl.u32 %v1191, 7
    %v1193 = vsub.s32 %v1190, %v1192
    %v1194 = vrot.slane %v1179, %v1193
    %v1196 = vunpack.c.l.s4 1966171168
    %v1197 = vunpack.c.0.s8 %v1196
    %v1198 = vlaneseq
    %v1199 = vshrl.u32 %v1198, 7
    %v1200 = vsub.s32 %v1197, %v1199
    %v1201 = vrot.slane %v1186, %v1200
    %v1203 = vunpack.c.l.s4 1966171168
    %v1204 = vunpack.c.0.s8 %v1203
    %v1205 = vlaneseq
    %v1206 = vshrl.u32 %v1205, 7
    %v1207 = vsub.s32 %v1204, %v1206
    %v1208 = vrot.slane %v1187, %v1207
    %v1209 = vcombine.high %v1194, %v1194
    %v1210 = vcombine.high %v1208, %v1208
    %v1212 = vunpack.c.l.s4 1966171168
    %v1213 = vunpack.c.0.s8 %v1212
    %v1214 = vlaneseq
    %v1215 = vshrl.u32 %v1214, 7
    %v1216 = vsub.s32 %v1213, %v1215
    %v1217 = vrot.slane %v562, %v1216
    %v1219 = vunpack.c.l.s4 1966171168
    %v1220 = vunpack.c.0.s8 %v1219
    %v1221 = vlaneseq
    %v1222 = vshrl.u32 %v1221, 7
    %v1223 = vsub.s32 %v1220, %v1222
    %v1224 = vrot.slane %v1217, %v1223
    %v1226 = vunpack.c.l.s4 1966171168
    %v1227 = vunpack.c.0.s8 %v1226
    %v1228 = vlaneseq
    %v1229 = vshrl.u32 %v1228, 7
    %v1230 = vsub.s32 %v1227, %v1229
    %v1231 = vrot.slane %v576, %v1230
    %v1233 = vunpack.c.l.s4 1966171168
    %v1234 = vunpack.c.0.s8 %v1233
    %v1235 = vlaneseq
    %v1236 = vshrl.u32 %v1235, 7
    %v1237 = vsub.s32 %v1234, %v1236
    %v1238 = vrot.slane %v1231, %v1237
    %v1240 = vunpack.c.l.s4 1966171168
    %v1241 = vunpack.c.0.s8 %v1240
    %v1242 = vlaneseq
    %v1243 = vshrl.u32 %v1242, 7
    %v1244 = vsub.s32 %v1241, %v1243
    %v1245 = vrot.slane %v577, %v1244
    %v1247 = vunpack.c.l.s4 1966171168
    %v1248 = vunpack.c.0.s8 %v1247
    %v1249 = vlaneseq
    %v1250 = vshrl.u32 %v1249, 7
    %v1251 = vsub.s32 %v1248, %v1250
    %v1252 = vrot.slane %v1245, %v1251
    %v1254 = vunpack.c.l.s4 1966171168
    %v1255 = vunpack.c.0.s8 %v1254
    %v1256 = vlaneseq
    %v1257 = vshrl.u32 %v1256, 7
    %v1258 = vsub.s32 %v1255, %v1257
    %v1259 = vrot.slane %v578, %v1258
    %v1261 = vunpack.c.l.s4 1966171168
    %v1262 = vunpack.c.0.s8 %v1261
    %v1263 = vlaneseq
    %v1264 = vshrl.u32 %v1263, 7
    %v1265 = vsub.s32 %v1262, %v1264
    %v1266 = vrot.slane %v1259, %v1265
    %v1268 = vunpack.c.l.s4 1966171168
    %v1269 = vunpack.c.0.s8 %v1268
    %v1270 = vlaneseq
    %v1271 = vshrl.u32 %v1270, 7
    %v1272 = vsub.s32 %v1269, %v1271
    %v1273 = vrot.slane %v601, %v1272
    %v1275 = vunpack.c.l.s4 1966171168
    %v1276 = vunpack.c.0.s8 %v1275
    %v1277 = vlaneseq
    %v1278 = vshrl.u32 %v1277, 7
    %v1279 = vsub.s32 %v1276, %v1278
    %v1280 = vrot.slane %v1273, %v1279
    %v1282 = vunpack.c.l.s4 1966171168
    %v1283 = vunpack.c.0.s8 %v1282
    %v1284 = vlaneseq
    %v1285 = vshrl.u32 %v1284, 7
    %v1286 = vsub.s32 %v1283, %v1285
    %v1287 = vrot.slane %v615, %v1286
    %v1289 = vunpack.c.l.s4 1966171168
    %v1290 = vunpack.c.0.s8 %v1289
    %v1291 = vlaneseq
    %v1292 = vshrl.u32 %v1291, 7
    %v1293 = vsub.s32 %v1290, %v1292
    %v1294 = vrot.slane %v1287, %v1293
    %v1296 = vunpack.c.l.s4 1966171168
    %v1297 = vunpack.c.0.s8 %v1296
    %v1298 = vlaneseq
    %v1299 = vshrl.u32 %v1298, 7
    %v1300 = vsub.s32 %v1297, %v1299
    %v1301 = vrot.slane %v616, %v1300
    %v1303 = vunpack.c.l.s4 1966171168
    %v1304 = vunpack.c.0.s8 %v1303
    %v1305 = vlaneseq
    %v1306 = vshrl.u32 %v1305, 7
    %v1307 = vsub.s32 %v1304, %v1306
    %v1308 = vrot.slane %v1301, %v1307
    %v1310 = vunpack.c.l.s4 1966171168
    %v1311 = vunpack.c.0.s8 %v1310
    %v1312 = vlaneseq
    %v1313 = vshrl.u32 %v1312, 7
    %v1314 = vsub.s32 %v1311, %v1313
    %v1315 = vrot.slane %v617, %v1314
    %v1317 = vunpack.c.l.s4 1966171168
    %v1318 = vunpack.c.0.s8 %v1317
    %v1319 = vlaneseq
    %v1320 = vshrl.u32 %v1319, 7
    %v1321 = vsub.s32 %v1318, %v1320
    %v1322 = vrot.slane %v1315, %v1321
    %v1324 = vunpack.c.l.s4 1966171168
    %v1325 = vunpack.c.0.s8 %v1324
    %v1326 = vlaneseq
    %v1327 = vshrl.u32 %v1326, 7
    %v1328 = vsub.s32 %v1325, %v1327
    %v1329 = vrot.slane %v640, %v1328
    %v1331 = vunpack.c.l.s4 1966171168
    %v1332 = vunpack.c.0.s8 %v1331
    %v1333 = vlaneseq
    %v1334 = vshrl.u32 %v1333, 7
    %v1335 = vsub.s32 %v1332, %v1334
    %v1336 = vrot.slane %v1329, %v1335
    %v1338 = vunpack.c.l.s4 1966171168
    %v1339 = vunpack.c.0.s8 %v1338
    %v1340 = vlaneseq
    %v1341 = vshrl.u32 %v1340, 7
    %v1342 = vsub.s32 %v1339, %v1341
    %v1343 = vrot.slane %v654, %v1342
    %v1345 = vunpack.c.l.s4 1966171168
    %v1346 = vunpack.c.0.s8 %v1345
    %v1347 = vlaneseq
    %v1348 = vshrl.u32 %v1347, 7
    %v1349 = vsub.s32 %v1346, %v1348
    %v1350 = vrot.slane %v1343, %v1349
    %v1352 = vunpack.c.l.s4 1966171168
    %v1353 = vunpack.c.0.s8 %v1352
    %v1354 = vlaneseq
    %v1355 = vshrl.u32 %v1354, 7
    %v1356 = vsub.s32 %v1353, %v1355
    %v1357 = vrot.slane %v655, %v1356
    %v1359 = vunpack.c.l.s4 1966171168
    %v1360 = vunpack.c.0.s8 %v1359
    %v1361 = vlaneseq
    %v1362 = vshrl.u32 %v1361, 7
    %v1363 = vsub.s32 %v1360, %v1362
    %v1364 = vrot.slane %v1357, %v1363
    %v1366 = vunpack.c.l.s4 1966171168
    %v1367 = vunpack.c.0.s8 %v1366
    %v1368 = vlaneseq
    %v1369 = vshrl.u32 %v1368, 7
    %v1370 = vsub.s32 %v1367, %v1369
    %v1371 = vrot.slane %v656, %v1370
    %v1373 = vunpack.c.l.s4 1966171168
    %v1374 = vunpack.c.0.s8 %v1373
    %v1375 = vlaneseq
    %v1376 = vshrl.u32 %v1375, 7
    %v1377 = vsub.s32 %v1374, %v1376
    %v1378 = vrot.slane %v1371, %v1377
    %v1380 = vunpack.c.l.s4 1966171168
    %v1381 = vunpack.c.0.s8 %v1380
    %v1382 = vlaneseq
    %v1383 = vshrl.u32 %v1382, 7
    %v1384 = vsub.s32 %v1381, %v1383
    %v1385 = vrot.slane %v679, %v1384
    %v1387 = vunpack.c.l.s4 1966171168
    %v1388 = vunpack.c.0.s8 %v1387
    %v1389 = vlaneseq
    %v1390 = vshrl.u32 %v1389, 7
    %v1391 = vsub.s32 %v1388, %v1390
    %v1392 = vrot.slane %v1385, %v1391
    %v1394 = vunpack.c.l.s4 1966171168
    %v1395 = vunpack.c.0.s8 %v1394
    %v1396 = vlaneseq
    %v1397 = vshrl.u32 %v1396, 7
    %v1398 = vsub.s32 %v1395, %v1397
    %v1399 = vrot.slane %v693, %v1398
    %v1401 = vunpack.c.l.s4 1966171168
    %v1402 = vunpack.c.0.s8 %v1401
    %v1403 = vlaneseq
    %v1404 = vshrl.u32 %v1403, 7
    %v1405 = vsub.s32 %v1402, %v1404
    %v1406 = vrot.slane %v1399, %v1405
    %v1408 = vunpack.c.l.s4 1966171168
    %v1409 = vunpack.c.0.s8 %v1408
    %v1410 = vlaneseq
    %v1411 = vshrl.u32 %v1410, 7
    %v1412 = vsub.s32 %v1409, %v1411
    %v1413 = vrot.slane %v694, %v1412
    %v1415 = vunpack.c.l.s4 1966171168
    %v1416 = vunpack.c.0.s8 %v1415
    %v1417 = vlaneseq
    %v1418 = vshrl.u32 %v1417, 7
    %v1419 = vsub.s32 %v1416, %v1418
    %v1420 = vrot.slane %v1413, %v1419
    %v1422 = vunpack.c.l.s4 1966171168
    %v1423 = vunpack.c.0.s8 %v1422
    %v1424 = vlaneseq
    %v1425 = vshrl.u32 %v1424, 7
    %v1426 = vsub.s32 %v1423, %v1425
    %v1427 = vrot.slane %v695, %v1426
    %v1429 = vunpack.c.l.s4 1966171168
    %v1430 = vunpack.c.0.s8 %v1429
    %v1431 = vlaneseq
    %v1432 = vshrl.u32 %v1431, 7
    %v1433 = vsub.s32 %v1430, %v1432
    %v1434 = vrot.slane %v1427, %v1433
    %v1436 = vunpack.c.l.s4 1966171168
    %v1437 = vunpack.c.0.s8 %v1436
    %v1438 = vlaneseq
    %v1439 = vshrl.u32 %v1438, 7
    %v1440 = vsub.s32 %v1437, %v1439
    %v1441 = vrot.slane %v757, %v1440
    %v1443 = vunpack.c.l.s4 1966171168
    %v1444 = vunpack.c.0.s8 %v1443
    %v1445 = vlaneseq
    %v1446 = vshrl.u32 %v1445, 7
    %v1447 = vsub.s32 %v1444, %v1446
    %v1448 = vrot.slane %v1441, %v1447
    %v1450 = vunpack.c.l.s4 1966171168
    %v1451 = vunpack.c.0.s8 %v1450
    %v1452 = vlaneseq
    %v1453 = vshrl.u32 %v1452, 7
    %v1454 = vsub.s32 %v1451, %v1453
    %v1455 = vrot.slane %v771, %v1454
    %v1457 = vunpack.c.l.s4 1966171168
    %v1458 = vunpack.c.0.s8 %v1457
    %v1459 = vlaneseq
    %v1460 = vshrl.u32 %v1459, 7
    %v1461 = vsub.s32 %v1458, %v1460
    %v1462 = vrot.slane %v1455, %v1461
    %v1464 = vunpack.c.l.s4 1966171168
    %v1465 = vunpack.c.0.s8 %v1464
    %v1466 = vlaneseq
    %v1467 = vshrl.u32 %v1466, 7
    %v1468 = vsub.s32 %v1465, %v1467
    %v1469 = vrot.slane %v772, %v1468
    %v1471 = vunpack.c.l.s4 1966171168
    %v1472 = vunpack.c.0.s8 %v1471
    %v1473 = vlaneseq
    %v1474 = vshrl.u32 %v1473, 7
    %v1475 = vsub.s32 %v1472, %v1474
    %v1476 = vrot.slane %v1469, %v1475
    %v1478 = vunpack.c.l.s4 1966171168
    %v1479 = vunpack.c.0.s8 %v1478
    %v1480 = vlaneseq
    %v1481 = vshrl.u32 %v1480, 7
    %v1482 = vsub.s32 %v1479, %v1481
    %v1483 = vrot.slane %v773, %v1482
    %v1485 = vunpack.c.l.s4 1966171168
    %v1486 = vunpack.c.0.s8 %v1485
    %v1487 = vlaneseq
    %v1488 = vshrl.u32 %v1487, 7
    %v1489 = vsub.s32 %v1486, %v1488
    %v1490 = vrot.slane %v1483, %v1489
    %v1492 = vunpack.c.l.s4 1966171168
    %v1493 = vunpack.c.0.s8 %v1492
    %v1494 = vlaneseq
    %v1495 = vshrl.u32 %v1494, 7
    %v1496 = vsub.s32 %v1493, %v1495
    %v1497 = vrot.slane %v796, %v1496
    %v1499 = vunpack.c.l.s4 1966171168
    %v1500 = vunpack.c.0.s8 %v1499
    %v1501 = vlaneseq
    %v1502 = vshrl.u32 %v1501, 7
    %v1503 = vsub.s32 %v1500, %v1502
    %v1504 = vrot.slane %v1497, %v1503
    %v1506 = vunpack.c.l.s4 1966171168
    %v1507 = vunpack.c.0.s8 %v1506
    %v1508 = vlaneseq
    %v1509 = vshrl.u32 %v1508, 7
    %v1510 = vsub.s32 %v1507, %v1509
    %v1511 = vrot.slane %v810, %v1510
    %v1513 = vunpack.c.l.s4 1966171168
    %v1514 = vunpack.c.0.s8 %v1513
    %v1515 = vlaneseq
    %v1516 = vshrl.u32 %v1515, 7
    %v1517 = vsub.s32 %v1514, %v1516
    %v1518 = vrot.slane %v1511, %v1517
    %v1520 = vunpack.c.l.s4 1966171168
    %v1521 = vunpack.c.0.s8 %v1520
    %v1522 = vlaneseq
    %v1523 = vshrl.u32 %v1522, 7
    %v1524 = vsub.s32 %v1521, %v1523
    %v1525 = vrot.slane %v811, %v1524
    %v1527 = vunpack.c.l.s4 1966171168
    %v1528 = vunpack.c.0.s8 %v1527
    %v1529 = vlaneseq
    %v1530 = vshrl.u32 %v1529, 7
    %v1531 = vsub.s32 %v1528, %v1530
    %v1532 = vrot.slane %v1525, %v1531
    %v1534 = vunpack.c.l.s4 1966171168
    %v1535 = vunpack.c.0.s8 %v1534
    %v1536 = vlaneseq
    %v1537 = vshrl.u32 %v1536, 7
    %v1538 = vsub.s32 %v1535, %v1537
    %v1539 = vrot.slane %v812, %v1538
    %v1541 = vunpack.c.l.s4 1966171168
    %v1542 = vunpack.c.0.s8 %v1541
    %v1543 = vlaneseq
    %v1544 = vshrl.u32 %v1543, 7
    %v1545 = vsub.s32 %v1542, %v1544
    %v1546 = vrot.slane %v1539, %v1545
    %v1548 = vunpack.c.l.s4 1966171168
    %v1549 = vunpack.c.0.s8 %v1548
    %v1550 = vlaneseq
    %v1551 = vshrl.u32 %v1550, 7
    %v1552 = vsub.s32 %v1549, %v1551
    %v1553 = vrot.slane %v835, %v1552
    %v1555 = vunpack.c.l.s4 1966171168
    %v1556 = vunpack.c.0.s8 %v1555
    %v1557 = vlaneseq
    %v1558 = vshrl.u32 %v1557, 7
    %v1559 = vsub.s32 %v1556, %v1558
    %v1560 = vrot.slane %v1553, %v1559
    %v1562 = vunpack.c.l.s4 1966171168
    %v1563 = vunpack.c.0.s8 %v1562
    %v1564 = vlaneseq
    %v1565 = vshrl.u32 %v1564, 7
    %v1566 = vsub.s32 %v1563, %v1565
    %v1567 = vrot.slane %v849, %v1566
    %v1569 = vunpack.c.l.s4 1966171168
    %v1570 = vunpack.c.0.s8 %v1569
    %v1571 = vlaneseq
    %v1572 = vshrl.u32 %v1571, 7
    %v1573 = vsub.s32 %v1570, %v1572
    %v1574 = vrot.slane %v1567, %v1573
    %v1576 = vunpack.c.l.s4 1966171168
    %v1577 = vunpack.c.0.s8 %v1576
    %v1578 = vlaneseq
    %v1579 = vshrl.u32 %v1578, 7
    %v1580 = vsub.s32 %v1577, %v1579
    %v1581 = vrot.slane %v850, %v1580
    %v1583 = vunpack.c.l.s4 1966171168
    %v1584 = vunpack.c.0.s8 %v1583
    %v1585 = vlaneseq
    %v1586 = vshrl.u32 %v1585, 7
    %v1587 = vsub.s32 %v1584, %v1586
    %v1588 = vrot.slane %v1581, %v1587
    %v1590 = vunpack.c.l.s4 1966171168
    %v1591 = vunpack.c.0.s8 %v1590
    %v1592 = vlaneseq
    %v1593 = vshrl.u32 %v1592, 7
    %v1594 = vsub.s32 %v1591, %v1593
    %v1595 = vrot.slane %v851, %v1594
    %v1597 = vunpack.c.l.s4 1966171168
    %v1598 = vunpack.c.0.s8 %v1597
    %v1599 = vlaneseq
    %v1600 = vshrl.u32 %v1599, 7
    %v1601 = vsub.s32 %v1598, %v1600
    %v1602 = vrot.slane %v1595, %v1601
    %v1603 = vunpack.c.l.b16 %v1224
    %v1604 = vunpack.c.l.b16 %v1238
    %v1605 = vunpack.c.l.b16 %v1252
    %v1606 = vunpack.c.l.b16 %v1266
    %v1607 = vunpack.c.l.b16 %v1280
    %v1608 = vunpack.c.l.b16 %v1294
    %v1609 = vunpack.c.l.b16 %v1308
    %v1610 = vunpack.c.l.b16 %v1322
    %v1611 = vunpack.c.l.b16 %v1336
    %v1612 = vunpack.c.l.b16 %v1350
    %v1613 = vunpack.c.l.b16 %v1364
    %v1614 = vunpack.c.l.b16 %v1378
    %v1615 = vunpack.c.l.b16 %v1392
    %v1616 = vunpack.c.l.b16 %v1406
    %v1617 = vunpack.c.l.b16 %v1420
    %v1618 = vunpack.c.l.b16 %v1434
    %v1619 = vunpack.c.l.b16 %v1448
    %v1620 = vunpack.c.l.b16 %v1462
    %v1621 = vunpack.c.l.b16 %v1476
    %v1622 = vunpack.c.l.b16 %v1490
    %v1623 = vunpack.c.l.b16 %v1504
    %v1624 = vunpack.c.l.b16 %v1518
    %v1625 = vunpack.c.l.b16 %v1532
    %v1626 = vunpack.c.l.b16 %v1546
    %v1627 = vunpack.c.l.b16 %v1560
    %v1628 = vunpack.c.l.b16 %v1574
    %v1629 = vunpack.c.l.b16 %v1588
    %v1630 = vunpack.c.l.b16 %v1602
    %v1631 = vrot.slane %v1604, 7
    %vm1632 = vcmask 1041409
    %v1633 = vsel %vm1632, %v1631, %v1603
    %v1634 = vrot.slane %v1605, 6
    %vm1635 = vcmask 1042434
    %v1636 = vsel %vm1635, %v1634, %v1633
    %v1637 = vrot.slane %v1606, 5
    %vm1638 = vcmask 1043459
    %v1639 = vsel %vm1638, %v1637, %v1636
    %v1640 = vrot.slane %v1608, 7
    %v1641 = vsel %vm1632, %v1640, %v1607
    %v1642 = vrot.slane %v1609, 6
    %v1643 = vsel %vm1635, %v1642, %v1641
    %v1644 = vrot.slane %v1610, 5
    %v1645 = vsel %vm1638, %v1644, %v1643
    %v1646 = vrot.slane %v1612, 7
    %v1647 = vsel %vm1632, %v1646, %v1611
    %v1648 = vrot.slane %v1613, 6
    %v1649 = vsel %vm1635, %v1648, %v1647
    %v1650 = vrot.slane %v1614, 5
    %v1651 = vsel %vm1638, %v1650, %v1649
    %v1652 = vrot.slane %v1616, 7
    %v1653 = vsel %vm1632, %v1652, %v1615
    %v1654 = vrot.slane %v1617, 6
    %v1655 = vsel %vm1635, %v1654, %v1653
    %v1656 = vrot.slane %v1618, 5
    %v1657 = vsel %vm1638, %v1656, %v1655
    %v1658 = vrot.slane %v1620, 7
    %v1659 = vsel %vm1632, %v1658, %v1619
    %v1660 = vrot.slane %v1621, 6
    %v1661 = vsel %vm1635, %v1660, %v1659
    %v1662 = vrot.slane %v1622, 5
    %v1663 = vsel %vm1638, %v1662, %v1661
    %v1664 = vrot.slane %v1624, 7
    %v1665 = vsel %vm1632, %v1664, %v1623
    %v1666 = vrot.slane %v1625, 6
    %v1667 = vsel %vm1635, %v1666, %v1665
    %v1668 = vrot.slane %v1626, 5
    %v1669 = vsel %vm1638, %v1668, %v1667
    %v1670 = vrot.slane %v1628, 7
    %v1671 = vsel %vm1632, %v1670, %v1627
    %v1672 = vrot.slane %v1629, 6
    %v1673 = vsel %vm1635, %v1672, %v1671
    %v1674 = vrot.slane %v1630, 5
    %v1675 = vsel %vm1638, %v1674, %v1673
    %v1676 = vpack.c.b16 %v1639, %v1639
    %v1677 = vpack.c.b16 %v1645, %v1645
    %v1678 = vpack.c.b16 %v1651, %v1651
    %v1679 = vpack.c.b16 %v1657, %v1657
    %v1680 = vpack.c.b16 %v1663, %v1663
    %v1681 = vpack.c.b16 %v1669, %v1669
    %v1682 = vpack.c.b16 %v1675, %v1675
    %v1683 = vrot.slane %v1603, 1
    %v1684 = vsel %vm1632, %v1604, %v1683
    %v1685 = vrot.slane %v1605, 7
    %v1686 = vsel %vm1635, %v1685, %v1684
    %v1687 = vrot.slane %v1606, 6
    %v1688 = vsel %vm1638, %v1687, %v1686
    %v1689 = vrot.slane %v1607, 1
    %v1690 = vsel %vm1632, %v1608, %v1689
    %v1691 = vrot.slane %v1609, 7
    %v1692 = vsel %vm1635, %v1691, %v1690
    %v1693 = vrot.slane %v1610, 6
    %v1694 = vsel %vm1638, %v1693, %v1692
    %v1695 = vrot.slane %v1611, 1
    %v1696 = vsel %vm1632, %v1612, %v1695
    %v1697 = vrot.slane %v1613, 7
    %v1698 = vsel %vm1635, %v1697, %v1696
    %v1699 = vrot.slane %v1614, 6
    %v1700 = vsel %vm1638, %v1699, %v1698
    %v1701 = vrot.slane %v1615, 1
    %v1702 = vsel %vm1632, %v1616, %v1701
    %v1703 = vrot.slane %v1617, 7
    %v1704 = vsel %vm1635, %v1703, %v1702
    %v1705 = vrot.slane %v1618, 6
    %v1706 = vsel %vm1638, %v1705, %v1704
    %v1707 = vrot.slane %v1619, 1
    %v1708 = vsel %vm1632, %v1620, %v1707
    %v1709 = vrot.slane %v1621, 7
    %v1710 = vsel %vm1635, %v1709, %v1708
    %v1711 = vrot.slane %v1622, 6
    %v1712 = vsel %vm1638, %v1711, %v1710
    %v1713 = vrot.slane %v1623, 1
    %v1714 = vsel %vm1632, %v1624, %v1713
    %v1715 = vrot.slane %v1625, 7
    %v1716 = vsel %vm1635, %v1715, %v1714
    %v1717 = vrot.slane %v1626, 6
    %v1718 = vsel %vm1638, %v1717, %v1716
    %v1719 = vrot.slane %v1627, 1
    %v1720 = vsel %vm1632, %v1628, %v1719
    %v1721 = vrot.slane %v1629, 7
    %v1722 = vsel %vm1635, %v1721, %v1720
    %v1723 = vrot.slane %v1630, 6
    %v1724 = vsel %vm1638, %v1723, %v1722
    %v1725 = vpack.c.b16 %v1688, %v1688
    %v1726 = vpack.c.b16 %v1694, %v1694
    %v1727 = vpack.c.b16 %v1700, %v1700
    %v1728 = vpack.c.b16 %v1706, %v1706
    %v1729 = vpack.c.b16 %v1712, %v1712
    %v1730 = vpack.c.b16 %v1718, %v1718
    %v1731 = vpack.c.b16 %v1724, %v1724
    %1732 = vrot.lane.b32.xlu0 %v1725, 8
    %v1733 = vpop.permute.xlu0 %1732
    %1734 = vrot.lane.b32.xlu0 %v1726, 8
    %v1735 = vpop.permute.xlu0 %1734
    %1736 = vrot.lane.b32.xlu0 %v1727, 8
    %v1737 = vpop.permute.xlu0 %1736
    %1738 = vrot.lane.b32.xlu0 %v1728, 8
    %v1739 = vpop.permute.xlu0 %1738
    %1740 = vrot.lane.b32.xlu0 %v1729, 8
    %v1741 = vpop.permute.xlu0 %1740
    %1742 = vrot.lane.b32.xlu0 %v1730, 8
    %v1743 = vpop.permute.xlu0 %1742
    %1744 = vrot.lane.b32.xlu0 %v1731, 8
    %v1745 = vpop.permute.xlu0 %1744
    %v1747 = vunpack.c.l.s4 1966171168
    %v1748 = vunpack.c.0.s8 %v1747
    %v1749 = vlaneseq
    %v1750 = vshrl.u32 %v1749, 7
    %v1751 = vsub.s32 %v1748, %v1750
    %v1752 = vrot.slane %v921, %v1751
    %v1754 = vunpack.c.l.s4 1966171168
    %v1755 = vunpack.c.0.s8 %v1754
    %v1756 = vlaneseq
    %v1757 = vshrl.u32 %v1756, 7
    %v1758 = vsub.s32 %v1755, %v1757
    %v1759 = vrot.slane %v1752, %v1758
    %v1761 = vunpack.c.l.s4 1966171168
    %v1762 = vunpack.c.0.s8 %v1761
    %v1763 = vlaneseq
    %v1764 = vshrl.u32 %v1763, 7
    %v1765 = vsub.s32 %v1762, %v1764
    %v1766 = vrot.slane %v935, %v1765
    %v1768 = vunpack.c.l.s4 1966171168
    %v1769 = vunpack.c.0.s8 %v1768
    %v1770 = vlaneseq
    %v1771 = vshrl.u32 %v1770, 7
    %v1772 = vsub.s32 %v1769, %v1771
    %v1773 = vrot.slane %v1766, %v1772
    %v1775 = vunpack.c.l.s4 1966171168
    %v1776 = vunpack.c.0.s8 %v1775
    %v1777 = vlaneseq
    %v1778 = vshrl.u32 %v1777, 7
    %v1779 = vsub.s32 %v1776, %v1778
    %v1780 = vrot.slane %v936, %v1779
    %v1782 = vunpack.c.l.s4 1966171168
    %v1783 = vunpack.c.0.s8 %v1782
    %v1784 = vlaneseq
    %v1785 = vshrl.u32 %v1784, 7
    %v1786 = vsub.s32 %v1783, %v1785
    %v1787 = vrot.slane %v1780, %v1786
    %v1789 = vunpack.c.l.s4 1966171168
    %v1790 = vunpack.c.0.s8 %v1789
    %v1791 = vlaneseq
    %v1792 = vshrl.u32 %v1791, 7
    %v1793 = vsub.s32 %v1790, %v1792
    %v1794 = vrot.slane %v937, %v1793
    %v1796 = vunpack.c.l.s4 1966171168
    %v1797 = vunpack.c.0.s8 %v1796
    %v1798 = vlaneseq
    %v1799 = vshrl.u32 %v1798, 7
    %v1800 = vsub.s32 %v1797, %v1799
    %v1801 = vrot.slane %v1794, %v1800
    %v1803 = vunpack.c.l.s4 1966171168
    %v1804 = vunpack.c.0.s8 %v1803
    %v1805 = vlaneseq
    %v1806 = vshrl.u32 %v1805, 7
    %v1807 = vsub.s32 %v1804, %v1806
    %v1808 = vrot.slane %v960, %v1807
    %v1810 = vunpack.c.l.s4 1966171168
    %v1811 = vunpack.c.0.s8 %v1810
    %v1812 = vlaneseq
    %v1813 = vshrl.u32 %v1812, 7
    %v1814 = vsub.s32 %v1811, %v1813
    %v1815 = vrot.slane %v1808, %v1814
    %v1817 = vunpack.c.l.s4 1966171168
    %v1818 = vunpack.c.0.s8 %v1817
    %v1819 = vlaneseq
    %v1820 = vshrl.u32 %v1819, 7
    %v1821 = vsub.s32 %v1818, %v1820
    %v1822 = vrot.slane %v974, %v1821
    %v1824 = vunpack.c.l.s4 1966171168
    %v1825 = vunpack.c.0.s8 %v1824
    %v1826 = vlaneseq
    %v1827 = vshrl.u32 %v1826, 7
    %v1828 = vsub.s32 %v1825, %v1827
    %v1829 = vrot.slane %v1822, %v1828
    %v1831 = vunpack.c.l.s4 1966171168
    %v1832 = vunpack.c.0.s8 %v1831
    %v1833 = vlaneseq
    %v1834 = vshrl.u32 %v1833, 7
    %v1835 = vsub.s32 %v1832, %v1834
    %v1836 = vrot.slane %v975, %v1835
    %v1838 = vunpack.c.l.s4 1966171168
    %v1839 = vunpack.c.0.s8 %v1838
    %v1840 = vlaneseq
    %v1841 = vshrl.u32 %v1840, 7
    %v1842 = vsub.s32 %v1839, %v1841
    %v1843 = vrot.slane %v1836, %v1842
    %v1845 = vunpack.c.l.s4 1966171168
    %v1846 = vunpack.c.0.s8 %v1845
    %v1847 = vlaneseq
    %v1848 = vshrl.u32 %v1847, 7
    %v1849 = vsub.s32 %v1846, %v1848
    %v1850 = vrot.slane %v976, %v1849
    %v1852 = vunpack.c.l.s4 1966171168
    %v1853 = vunpack.c.0.s8 %v1852
    %v1854 = vlaneseq
    %v1855 = vshrl.u32 %v1854, 7
    %v1856 = vsub.s32 %v1853, %v1855
    %v1857 = vrot.slane %v1850, %v1856
    %v1859 = vunpack.c.l.s4 1966171168
    %v1860 = vunpack.c.0.s8 %v1859
    %v1861 = vlaneseq
    %v1862 = vshrl.u32 %v1861, 7
    %v1863 = vsub.s32 %v1860, %v1862
    %v1864 = vrot.slane %v999, %v1863
    %v1866 = vunpack.c.l.s4 1966171168
    %v1867 = vunpack.c.0.s8 %v1866
    %v1868 = vlaneseq
    %v1869 = vshrl.u32 %v1868, 7
    %v1870 = vsub.s32 %v1867, %v1869
    %v1871 = vrot.slane %v1864, %v1870
    %v1873 = vunpack.c.l.s4 1966171168
    %v1874 = vunpack.c.0.s8 %v1873
    %v1875 = vlaneseq
    %v1876 = vshrl.u32 %v1875, 7
    %v1877 = vsub.s32 %v1874, %v1876
    %v1878 = vrot.slane %v1013, %v1877
    %v1880 = vunpack.c.l.s4 1966171168
    %v1881 = vunpack.c.0.s8 %v1880
    %v1882 = vlaneseq
    %v1883 = vshrl.u32 %v1882, 7
    %v1884 = vsub.s32 %v1881, %v1883
    %v1885 = vrot.slane %v1878, %v1884
    %v1887 = vunpack.c.l.s4 1966171168
    %v1888 = vunpack.c.0.s8 %v1887
    %v1889 = vlaneseq
    %v1890 = vshrl.u32 %v1889, 7
    %v1891 = vsub.s32 %v1888, %v1890
    %v1892 = vrot.slane %v1014, %v1891
    %v1894 = vunpack.c.l.s4 1966171168
    %v1895 = vunpack.c.0.s8 %v1894
    %v1896 = vlaneseq
    %v1897 = vshrl.u32 %v1896, 7
    %v1898 = vsub.s32 %v1895, %v1897
    %v1899 = vrot.slane %v1892, %v1898
    %v1901 = vunpack.c.l.s4 1966171168
    %v1902 = vunpack.c.0.s8 %v1901
    %v1903 = vlaneseq
    %v1904 = vshrl.u32 %v1903, 7
    %v1905 = vsub.s32 %v1902, %v1904
    %v1906 = vrot.slane %v1015, %v1905
    %v1908 = vunpack.c.l.s4 1966171168
    %v1909 = vunpack.c.0.s8 %v1908
    %v1910 = vlaneseq
    %v1911 = vshrl.u32 %v1910, 7
    %v1912 = vsub.s32 %v1909, %v1911
    %v1913 = vrot.slane %v1906, %v1912
    %v1915 = vunpack.c.l.s4 1966171168
    %v1916 = vunpack.c.0.s8 %v1915
    %v1917 = vlaneseq
    %v1918 = vshrl.u32 %v1917, 7
    %v1919 = vsub.s32 %v1916, %v1918
    %v1920 = vrot.slane %v1038, %v1919
    %v1922 = vunpack.c.l.s4 1966171168
    %v1923 = vunpack.c.0.s8 %v1922
    %v1924 = vlaneseq
    %v1925 = vshrl.u32 %v1924, 7
    %v1926 = vsub.s32 %v1923, %v1925
    %v1927 = vrot.slane %v1920, %v1926
    %v1929 = vunpack.c.l.s4 1966171168
    %v1930 = vunpack.c.0.s8 %v1929
    %v1931 = vlaneseq
    %v1932 = vshrl.u32 %v1931, 7
    %v1933 = vsub.s32 %v1930, %v1932
    %v1934 = vrot.slane %v1052, %v1933
    %v1936 = vunpack.c.l.s4 1966171168
    %v1937 = vunpack.c.0.s8 %v1936
    %v1938 = vlaneseq
    %v1939 = vshrl.u32 %v1938, 7
    %v1940 = vsub.s32 %v1937, %v1939
    %v1941 = vrot.slane %v1934, %v1940
    %v1943 = vunpack.c.l.s4 1966171168
    %v1944 = vunpack.c.0.s8 %v1943
    %v1945 = vlaneseq
    %v1946 = vshrl.u32 %v1945, 7
    %v1947 = vsub.s32 %v1944, %v1946
    %v1948 = vrot.slane %v1053, %v1947
    %v1950 = vunpack.c.l.s4 1966171168
    %v1951 = vunpack.c.0.s8 %v1950
    %v1952 = vlaneseq
    %v1953 = vshrl.u32 %v1952, 7
    %v1954 = vsub.s32 %v1951, %v1953
    %v1955 = vrot.slane %v1948, %v1954
    %v1957 = vunpack.c.l.s4 1966171168
    %v1958 = vunpack.c.0.s8 %v1957
    %v1959 = vlaneseq
    %v1960 = vshrl.u32 %v1959, 7
    %v1961 = vsub.s32 %v1958, %v1960
    %v1962 = vrot.slane %v1054, %v1961
    %v1964 = vunpack.c.l.s4 1966171168
    %v1965 = vunpack.c.0.s8 %v1964
    %v1966 = vlaneseq
    %v1967 = vshrl.u32 %v1966, 7
    %v1968 = vsub.s32 %v1965, %v1967
    %v1969 = vrot.slane %v1962, %v1968
    %v1971 = vunpack.c.l.s4 1966171168
    %v1972 = vunpack.c.0.s8 %v1971
    %v1973 = vlaneseq
    %v1974 = vshrl.u32 %v1973, 7
    %v1975 = vsub.s32 %v1972, %v1974
    %v1976 = vrot.slane %v1077, %v1975
    %v1978 = vunpack.c.l.s4 1966171168
    %v1979 = vunpack.c.0.s8 %v1978
    %v1980 = vlaneseq
    %v1981 = vshrl.u32 %v1980, 7
    %v1982 = vsub.s32 %v1979, %v1981
    %v1983 = vrot.slane %v1976, %v1982
    %v1985 = vunpack.c.l.s4 1966171168
    %v1986 = vunpack.c.0.s8 %v1985
    %v1987 = vlaneseq
    %v1988 = vshrl.u32 %v1987, 7
    %v1989 = vsub.s32 %v1986, %v1988
    %v1990 = vrot.slane %v1091, %v1989
    %v1992 = vunpack.c.l.s4 1966171168
    %v1993 = vunpack.c.0.s8 %v1992
    %v1994 = vlaneseq
    %v1995 = vshrl.u32 %v1994, 7
    %v1996 = vsub.s32 %v1993, %v1995
    %v1997 = vrot.slane %v1990, %v1996
    %v1999 = vunpack.c.l.s4 1966171168
    %v2000 = vunpack.c.0.s8 %v1999
    %v2001 = vlaneseq
    %v2002 = vshrl.u32 %v2001, 7
    %v2003 = vsub.s32 %v2000, %v2002
    %v2004 = vrot.slane %v1092, %v2003
    %v2006 = vunpack.c.l.s4 1966171168
    %v2007 = vunpack.c.0.s8 %v2006
    %v2008 = vlaneseq
    %v2009 = vshrl.u32 %v2008, 7
    %v2010 = vsub.s32 %v2007, %v2009
    %v2011 = vrot.slane %v2004, %v2010
    %v2013 = vunpack.c.l.s4 1966171168
    %v2014 = vunpack.c.0.s8 %v2013
    %v2015 = vlaneseq
    %v2016 = vshrl.u32 %v2015, 7
    %v2017 = vsub.s32 %v2014, %v2016
    %v2018 = vrot.slane %v1093, %v2017
    %v2020 = vunpack.c.l.s4 1966171168
    %v2021 = vunpack.c.0.s8 %v2020
    %v2022 = vlaneseq
    %v2023 = vshrl.u32 %v2022, 7
    %v2024 = vsub.s32 %v2021, %v2023
    %v2025 = vrot.slane %v2018, %v2024
    %v2027 = vunpack.c.l.s4 1966171168
    %v2028 = vunpack.c.0.s8 %v2027
    %v2029 = vlaneseq
    %v2030 = vshrl.u32 %v2029, 7
    %v2031 = vsub.s32 %v2028, %v2030
    %v2032 = vrot.slane %v1116, %v2031
    %v2034 = vunpack.c.l.s4 1966171168
    %v2035 = vunpack.c.0.s8 %v2034
    %v2036 = vlaneseq
    %v2037 = vshrl.u32 %v2036, 7
    %v2038 = vsub.s32 %v2035, %v2037
    %v2039 = vrot.slane %v2032, %v2038
    %v2041 = vunpack.c.l.s4 1966171168
    %v2042 = vunpack.c.0.s8 %v2041
    %v2043 = vlaneseq
    %v2044 = vshrl.u32 %v2043, 7
    %v2045 = vsub.s32 %v2042, %v2044
    %v2046 = vrot.slane %v1130, %v2045
    %v2048 = vunpack.c.l.s4 1966171168
    %v2049 = vunpack.c.0.s8 %v2048
    %v2050 = vlaneseq
    %v2051 = vshrl.u32 %v2050, 7
    %v2052 = vsub.s32 %v2049, %v2051
    %v2053 = vrot.slane %v2046, %v2052
    %v2055 = vunpack.c.l.s4 1966171168
    %v2056 = vunpack.c.0.s8 %v2055
    %v2057 = vlaneseq
    %v2058 = vshrl.u32 %v2057, 7
    %v2059 = vsub.s32 %v2056, %v2058
    %v2060 = vrot.slane %v1131, %v2059
    %v2062 = vunpack.c.l.s4 1966171168
    %v2063 = vunpack.c.0.s8 %v2062
    %v2064 = vlaneseq
    %v2065 = vshrl.u32 %v2064, 7
    %v2066 = vsub.s32 %v2063, %v2065
    %v2067 = vrot.slane %v2060, %v2066
    %v2069 = vunpack.c.l.s4 1966171168
    %v2070 = vunpack.c.0.s8 %v2069
    %v2071 = vlaneseq
    %v2072 = vshrl.u32 %v2071, 7
    %v2073 = vsub.s32 %v2070, %v2072
    %v2074 = vrot.slane %v1132, %v2073
    %v2076 = vunpack.c.l.s4 1966171168
    %v2077 = vunpack.c.0.s8 %v2076
    %v2078 = vlaneseq
    %v2079 = vshrl.u32 %v2078, 7
    %v2080 = vsub.s32 %v2077, %v2079
    %v2081 = vrot.slane %v2074, %v2080
    %v2083 = vunpack.c.l.s4 1966171168
    %v2084 = vunpack.c.0.s8 %v2083
    %v2085 = vlaneseq
    %v2086 = vshrl.u32 %v2085, 7
    %v2087 = vsub.s32 %v2084, %v2086
    %v2088 = vrot.slane %v1155, %v2087
    %v2090 = vunpack.c.l.s4 1966171168
    %v2091 = vunpack.c.0.s8 %v2090
    %v2092 = vlaneseq
    %v2093 = vshrl.u32 %v2092, 7
    %v2094 = vsub.s32 %v2091, %v2093
    %v2095 = vrot.slane %v2088, %v2094
    %v2097 = vunpack.c.l.s4 1966171168
    %v2098 = vunpack.c.0.s8 %v2097
    %v2099 = vlaneseq
    %v2100 = vshrl.u32 %v2099, 7
    %v2101 = vsub.s32 %v2098, %v2100
    %v2102 = vrot.slane %v1169, %v2101
    %v2104 = vunpack.c.l.s4 1966171168
    %v2105 = vunpack.c.0.s8 %v2104
    %v2106 = vlaneseq
    %v2107 = vshrl.u32 %v2106, 7
    %v2108 = vsub.s32 %v2105, %v2107
    %v2109 = vrot.slane %v2102, %v2108
    %v2111 = vunpack.c.l.s4 1966171168
    %v2112 = vunpack.c.0.s8 %v2111
    %v2113 = vlaneseq
    %v2114 = vshrl.u32 %v2113, 7
    %v2115 = vsub.s32 %v2112, %v2114
    %v2116 = vrot.slane %v1170, %v2115
    %v2118 = vunpack.c.l.s4 1966171168
    %v2119 = vunpack.c.0.s8 %v2118
    %v2120 = vlaneseq
    %v2121 = vshrl.u32 %v2120, 7
    %v2122 = vsub.s32 %v2119, %v2121
    %v2123 = vrot.slane %v2116, %v2122
    %v2125 = vunpack.c.l.s4 1966171168
    %v2126 = vunpack.c.0.s8 %v2125
    %v2127 = vlaneseq
    %v2128 = vshrl.u32 %v2127, 7
    %v2129 = vsub.s32 %v2126, %v2128
    %v2130 = vrot.slane %v1171, %v2129
    %v2132 = vunpack.c.l.s4 1966171168
    %v2133 = vunpack.c.0.s8 %v2132
    %v2134 = vlaneseq
    %v2135 = vshrl.u32 %v2134, 7
    %v2136 = vsub.s32 %v2133, %v2135
    %v2137 = vrot.slane %v2130, %v2136
    %v2139 = vunpack.c.l.s4 1966171168
    %v2140 = vunpack.c.0.s8 %v2139
    %v2141 = vlaneseq
    %v2142 = vshrl.u32 %v2141, 7
    %v2143 = vsub.s32 %v2140, %v2142
    %v2144 = vrot.slane %v1194, %v2143
    %v2146 = vunpack.c.l.s4 1966171168
    %v2147 = vunpack.c.0.s8 %v2146
    %v2148 = vlaneseq
    %v2149 = vshrl.u32 %v2148, 7
    %v2150 = vsub.s32 %v2147, %v2149
    %v2151 = vrot.slane %v2144, %v2150
    %v2153 = vunpack.c.l.s4 1966171168
    %v2154 = vunpack.c.0.s8 %v2153
    %v2155 = vlaneseq
    %v2156 = vshrl.u32 %v2155, 7
    %v2157 = vsub.s32 %v2154, %v2156
    %v2158 = vrot.slane %v1208, %v2157
    %v2160 = vunpack.c.l.s4 1966171168
    %v2161 = vunpack.c.0.s8 %v2160
    %v2162 = vlaneseq
    %v2163 = vshrl.u32 %v2162, 7
    %v2164 = vsub.s32 %v2161, %v2163
    %v2165 = vrot.slane %v2158, %v2164
    %v2167 = vunpack.c.l.s4 1966171168
    %v2168 = vunpack.c.0.s8 %v2167
    %v2169 = vlaneseq
    %v2170 = vshrl.u32 %v2169, 7
    %v2171 = vsub.s32 %v2168, %v2170
    %v2172 = vrot.slane %v1209, %v2171
    %v2174 = vunpack.c.l.s4 1966171168
    %v2175 = vunpack.c.0.s8 %v2174
    %v2176 = vlaneseq
    %v2177 = vshrl.u32 %v2176, 7
    %v2178 = vsub.s32 %v2175, %v2177
    %v2179 = vrot.slane %v2172, %v2178
    %v2181 = vunpack.c.l.s4 1966171168
    %v2182 = vunpack.c.0.s8 %v2181
    %v2183 = vlaneseq
    %v2184 = vshrl.u32 %v2183, 7
    %v2185 = vsub.s32 %v2182, %v2184
    %v2186 = vrot.slane %v1210, %v2185
    %v2188 = vunpack.c.l.s4 1966171168
    %v2189 = vunpack.c.0.s8 %v2188
    %v2190 = vlaneseq
    %v2191 = vshrl.u32 %v2190, 7
    %v2192 = vsub.s32 %v2189, %v2191
    %v2193 = vrot.slane %v2186, %v2192
    %v2194 = vunpack.c.l.b16 %v1759
    %v2195 = vunpack.c.l.b16 %v1773
    %v2196 = vunpack.c.l.b16 %v1787
    %v2197 = vunpack.c.l.b16 %v1801
    %v2198 = vunpack.c.l.b16 %v1815
    %v2199 = vunpack.c.l.b16 %v1829
    %v2200 = vunpack.c.l.b16 %v1843
    %v2201 = vunpack.c.l.b16 %v1857
    %v2202 = vunpack.c.l.b16 %v1871
    %v2203 = vunpack.c.l.b16 %v1885
    %v2204 = vunpack.c.l.b16 %v1899
    %v2205 = vunpack.c.l.b16 %v1913
    %v2206 = vunpack.c.l.b16 %v1927
    %v2207 = vunpack.c.l.b16 %v1941
    %v2208 = vunpack.c.l.b16 %v1955
    %v2209 = vunpack.c.l.b16 %v1969
    %v2210 = vunpack.c.l.b16 %v1983
    %v2211 = vunpack.c.l.b16 %v1997
    %v2212 = vunpack.c.l.b16 %v2011
    %v2213 = vunpack.c.l.b16 %v2025
    %v2214 = vunpack.c.l.b16 %v2039
    %v2215 = vunpack.c.l.b16 %v2053
    %v2216 = vunpack.c.l.b16 %v2067
    %v2217 = vunpack.c.l.b16 %v2081
    %v2218 = vunpack.c.l.b16 %v2095
    %v2219 = vunpack.c.l.b16 %v2109
    %v2220 = vunpack.c.l.b16 %v2123
    %v2221 = vunpack.c.l.b16 %v2137
    %v2222 = vunpack.c.l.b16 %v2151
    %v2223 = vunpack.c.l.b16 %v2165
    %v2224 = vunpack.c.l.b16 %v2179
    %v2225 = vunpack.c.l.b16 %v2193
    %v2226 = vrot.slane %v2195, 7
    %v2227 = vsel %vm1632, %v2226, %v2194
    %v2228 = vrot.slane %v2196, 6
    %v2229 = vsel %vm1635, %v2228, %v2227
    %v2230 = vrot.slane %v2197, 5
    %v2231 = vsel %vm1638, %v2230, %v2229
    %v2232 = vrot.slane %v2199, 7
    %v2233 = vsel %vm1632, %v2232, %v2198
    %v2234 = vrot.slane %v2200, 6
    %v2235 = vsel %vm1635, %v2234, %v2233
    %v2236 = vrot.slane %v2201, 5
    %v2237 = vsel %vm1638, %v2236, %v2235
    %v2238 = vrot.slane %v2203, 7
    %v2239 = vsel %vm1632, %v2238, %v2202
    %v2240 = vrot.slane %v2204, 6
    %v2241 = vsel %vm1635, %v2240, %v2239
    %v2242 = vrot.slane %v2205, 5
    %v2243 = vsel %vm1638, %v2242, %v2241
    %v2244 = vrot.slane %v2207, 7
    %v2245 = vsel %vm1632, %v2244, %v2206
    %v2246 = vrot.slane %v2208, 6
    %v2247 = vsel %vm1635, %v2246, %v2245
    %v2248 = vrot.slane %v2209, 5
    %v2249 = vsel %vm1638, %v2248, %v2247
    %v2250 = vrot.slane %v2211, 7
    %v2251 = vsel %vm1632, %v2250, %v2210
    %v2252 = vrot.slane %v2212, 6
    %v2253 = vsel %vm1635, %v2252, %v2251
    %v2254 = vrot.slane %v2213, 5
    %v2255 = vsel %vm1638, %v2254, %v2253
    %v2256 = vrot.slane %v2215, 7
    %v2257 = vsel %vm1632, %v2256, %v2214
    %v2258 = vrot.slane %v2216, 6
    %v2259 = vsel %vm1635, %v2258, %v2257
    %v2260 = vrot.slane %v2217, 5
    %v2261 = vsel %vm1638, %v2260, %v2259
    %v2262 = vrot.slane %v2219, 7
    %v2263 = vsel %vm1632, %v2262, %v2218
    %v2264 = vrot.slane %v2220, 6
    %v2265 = vsel %vm1635, %v2264, %v2263
    %v2266 = vrot.slane %v2221, 5
    %v2267 = vsel %vm1638, %v2266, %v2265
    %v2268 = vrot.slane %v2223, 7
    %v2269 = vsel %vm1632, %v2268, %v2222
    %v2270 = vrot.slane %v2224, 6
    %v2271 = vsel %vm1635, %v2270, %v2269
    %v2272 = vrot.slane %v2225, 5
    %v2273 = vsel %vm1638, %v2272, %v2271
    %v2274 = vpack.c.b16 %v2231, %v2231
    %v2275 = vpack.c.b16 %v2237, %v2237
    %v2276 = vpack.c.b16 %v2243, %v2243
    %v2277 = vpack.c.b16 %v2249, %v2249
    %v2278 = vpack.c.b16 %v2255, %v2255
    %v2279 = vpack.c.b16 %v2261, %v2261
    %v2280 = vpack.c.b16 %v2267, %v2267
    %v2281 = vpack.c.b16 %v2273, %v2273
    %2282 = vrot.lane.b32.xlu0 %v2274, 16
    %v2283 = vpop.permute.xlu0 %2282
    %2284 = vrot.lane.b32.xlu0 %v2275, 16
    %v2285 = vpop.permute.xlu0 %2284
    %2286 = vrot.lane.b32.xlu0 %v2276, 16
    %v2287 = vpop.permute.xlu0 %2286
    %2288 = vrot.lane.b32.xlu0 %v2277, 16
    %v2289 = vpop.permute.xlu0 %2288
    %2290 = vrot.lane.b32.xlu0 %v2278, 16
    %v2291 = vpop.permute.xlu0 %2290
    %2292 = vrot.lane.b32.xlu0 %v2279, 16
    %v2293 = vpop.permute.xlu0 %2292
    %2294 = vrot.lane.b32.xlu0 %v2280, 16
    %v2295 = vpop.permute.xlu0 %2294
    %2296 = vrot.lane.b32.xlu0 %v2281, 16
    %v2297 = vpop.permute.xlu0 %2296
    %v2298 = vrot.slane %v2194, 1
    %v2299 = vsel %vm1632, %v2195, %v2298
    %v2300 = vrot.slane %v2196, 7
    %v2301 = vsel %vm1635, %v2300, %v2299
    %v2302 = vrot.slane %v2197, 6
    %v2303 = vsel %vm1638, %v2302, %v2301
    %v2304 = vrot.slane %v2198, 1
    %v2305 = vsel %vm1632, %v2199, %v2304
    %v2306 = vrot.slane %v2200, 7
    %v2307 = vsel %vm1635, %v2306, %v2305
    %v2308 = vrot.slane %v2201, 6
    %v2309 = vsel %vm1638, %v2308, %v2307
    %v2310 = vrot.slane %v2202, 1
    %v2311 = vsel %vm1632, %v2203, %v2310
    %v2312 = vrot.slane %v2204, 7
    %v2313 = vsel %vm1635, %v2312, %v2311
    %v2314 = vrot.slane %v2205, 6
    %v2315 = vsel %vm1638, %v2314, %v2313
    %v2316 = vrot.slane %v2206, 1
    %v2317 = vsel %vm1632, %v2207, %v2316
    %v2318 = vrot.slane %v2208, 7
    %v2319 = vsel %vm1635, %v2318, %v2317
    %v2320 = vrot.slane %v2209, 6
    %v2321 = vsel %vm1638, %v2320, %v2319
    %v2322 = vrot.slane %v2210, 1
    %v2323 = vsel %vm1632, %v2211, %v2322
    %v2324 = vrot.slane %v2212, 7
    %v2325 = vsel %vm1635, %v2324, %v2323
    %v2326 = vrot.slane %v2213, 6
    %v2327 = vsel %vm1638, %v2326, %v2325
    %v2328 = vrot.slane %v2214, 1
    %v2329 = vsel %vm1632, %v2215, %v2328
    %v2330 = vrot.slane %v2216, 7
    %v2331 = vsel %vm1635, %v2330, %v2329
    %v2332 = vrot.slane %v2217, 6
    %v2333 = vsel %vm1638, %v2332, %v2331
    %v2334 = vrot.slane %v2218, 1
    %v2335 = vsel %vm1632, %v2219, %v2334
    %v2336 = vrot.slane %v2220, 7
    %v2337 = vsel %vm1635, %v2336, %v2335
    %v2338 = vrot.slane %v2221, 6
    %v2339 = vsel %vm1638, %v2338, %v2337
    %v2340 = vrot.slane %v2222, 1
    %v2341 = vsel %vm1632, %v2223, %v2340
    %v2342 = vrot.slane %v2224, 7
    %v2343 = vsel %vm1635, %v2342, %v2341
    %v2344 = vrot.slane %v2225, 6
    %v2345 = vsel %vm1638, %v2344, %v2343
    %v2346 = vpack.c.b16 %v2303, %v2303
    %v2347 = vpack.c.b16 %v2309, %v2309
    %v2348 = vpack.c.b16 %v2315, %v2315
    %v2349 = vpack.c.b16 %v2321, %v2321
    %v2350 = vpack.c.b16 %v2327, %v2327
    %v2351 = vpack.c.b16 %v2333, %v2333
    %v2352 = vpack.c.b16 %v2339, %v2339
    %v2353 = vpack.c.b16 %v2345, %v2345
    %2354 = vrot.lane.b32.xlu0 %v2346, 24
    %v2355 = vpop.permute.xlu0 %2354
    %2356 = vrot.lane.b32.xlu0 %v2347, 24
    %v2357 = vpop.permute.xlu0 %2356
    %2358 = vrot.lane.b32.xlu0 %v2348, 24
    %v2359 = vpop.permute.xlu0 %2358
    %2360 = vrot.lane.b32.xlu0 %v2349, 24
    %v2361 = vpop.permute.xlu0 %2360
    %2362 = vrot.lane.b32.xlu0 %v2350, 24
    %v2363 = vpop.permute.xlu0 %2362
    %2364 = vrot.lane.b32.xlu0 %v2351, 24
    %v2365 = vpop.permute.xlu0 %2364
    %2366 = vrot.lane.b32.xlu0 %v2352, 24
    %v2367 = vpop.permute.xlu0 %2366
    %2368 = vrot.lane.b32.xlu0 %v2353, 24
    %v2369 = vpop.permute.xlu0 %2368
    %v2371 = vunpack.c.l.s4 1966171168
    %v2372 = vunpack.c.0.s8 %v2371
    %v2373 = vlaneseq
    %v2374 = vshrl.u32 %v2373, 7
    %v2375 = vsub.s32 %v2372, %v2374
    %v2376 = vrot.slane %v569, %v2375
    %v2378 = vunpack.c.l.s4 1966171168
    %v2379 = vunpack.c.0.s8 %v2378
    %v2380 = vlaneseq
    %v2381 = vshrl.u32 %v2380, 7
    %v2382 = vsub.s32 %v2379, %v2381
    %v2383 = vrot.slane %v2376, %v2382
    %v2385 = vunpack.c.l.s4 1966171168
    %v2386 = vunpack.c.0.s8 %v2385
    %v2387 = vlaneseq
    %v2388 = vshrl.u32 %v2387, 7
    %v2389 = vsub.s32 %v2386, %v2388
    %v2390 = vrot.slane %v608, %v2389
    %v2392 = vunpack.c.l.s4 1966171168
    %v2393 = vunpack.c.0.s8 %v2392
    %v2394 = vlaneseq
    %v2395 = vshrl.u32 %v2394, 7
    %v2396 = vsub.s32 %v2393, %v2395
    %v2397 = vrot.slane %v2390, %v2396
    %v2399 = vunpack.c.l.s4 1966171168
    %v2400 = vunpack.c.0.s8 %v2399
    %v2401 = vlaneseq
    %v2402 = vshrl.u32 %v2401, 7
    %v2403 = vsub.s32 %v2400, %v2402
    %v2404 = vrot.slane %v647, %v2403
    %v2406 = vunpack.c.l.s4 1966171168
    %v2407 = vunpack.c.0.s8 %v2406
    %v2408 = vlaneseq
    %v2409 = vshrl.u32 %v2408, 7
    %v2410 = vsub.s32 %v2407, %v2409
    %v2411 = vrot.slane %v2404, %v2410
    %v2413 = vunpack.c.l.s4 1966171168
    %v2414 = vunpack.c.0.s8 %v2413
    %v2415 = vlaneseq
    %v2416 = vshrl.u32 %v2415, 7
    %v2417 = vsub.s32 %v2414, %v2416
    %v2418 = vrot.slane %v686, %v2417
    %v2420 = vunpack.c.l.s4 1966171168
    %v2421 = vunpack.c.0.s8 %v2420
    %v2422 = vlaneseq
    %v2423 = vshrl.u32 %v2422, 7
    %v2424 = vsub.s32 %v2421, %v2423
    %v2425 = vrot.slane %v2418, %v2424
    %v2427 = vunpack.c.l.s4 1966171168
    %v2428 = vunpack.c.0.s8 %v2427
    %v2429 = vlaneseq
    %v2430 = vshrl.u32 %v2429, 7
    %v2431 = vsub.s32 %v2428, %v2430
    %v2432 = vrot.slane %v764, %v2431
    %v2434 = vunpack.c.l.s4 1966171168
    %v2435 = vunpack.c.0.s8 %v2434
    %v2436 = vlaneseq
    %v2437 = vshrl.u32 %v2436, 7
    %v2438 = vsub.s32 %v2435, %v2437
    %v2439 = vrot.slane %v2432, %v2438
    %v2441 = vunpack.c.l.s4 1966171168
    %v2442 = vunpack.c.0.s8 %v2441
    %v2443 = vlaneseq
    %v2444 = vshrl.u32 %v2443, 7
    %v2445 = vsub.s32 %v2442, %v2444
    %v2446 = vrot.slane %v803, %v2445
    %v2448 = vunpack.c.l.s4 1966171168
    %v2449 = vunpack.c.0.s8 %v2448
    %v2450 = vlaneseq
    %v2451 = vshrl.u32 %v2450, 7
    %v2452 = vsub.s32 %v2449, %v2451
    %v2453 = vrot.slane %v2446, %v2452
    %v2455 = vunpack.c.l.s4 1966171168
    %v2456 = vunpack.c.0.s8 %v2455
    %v2457 = vlaneseq
    %v2458 = vshrl.u32 %v2457, 7
    %v2459 = vsub.s32 %v2456, %v2458
    %v2460 = vrot.slane %v842, %v2459
    %v2462 = vunpack.c.l.s4 1966171168
    %v2463 = vunpack.c.0.s8 %v2462
    %v2464 = vlaneseq
    %v2465 = vshrl.u32 %v2464, 7
    %v2466 = vsub.s32 %v2463, %v2465
    %v2467 = vrot.slane %v2460, %v2466
    %v2468 = vunpack.c.l.b16 %v2383
    %v2469 = vunpack.c.l.b16 %v2397
    %v2470 = vunpack.c.l.b16 %v2411
    %v2471 = vunpack.c.l.b16 %v2425
    %v2472 = vunpack.c.l.b16 %v2439
    %v2473 = vunpack.c.l.b16 %v2453
    %v2474 = vunpack.c.l.b16 %v2467
    %v2475 = vsel %vm1632, %v1685, %v1604
    %v2476 = vsel %vm1635, %v1687, %v2475
    %v2477 = vrot.slane %v2468, 5
    %v2478 = vsel %vm1638, %v2477, %v2476
    %v2479 = vsel %vm1632, %v1691, %v1608
    %v2480 = vsel %vm1635, %v1693, %v2479
    %v2481 = vrot.slane %v2469, 5
    %v2482 = vsel %vm1638, %v2481, %v2480
    %v2483 = vsel %vm1632, %v1697, %v1612
    %v2484 = vsel %vm1635, %v1699, %v2483
    %v2485 = vrot.slane %v2470, 5
    %v2486 = vsel %vm1638, %v2485, %v2484
    %v2487 = vsel %vm1632, %v1703, %v1616
    %v2488 = vsel %vm1635, %v1705, %v2487
    %v2489 = vrot.slane %v2471, 5
    %v2490 = vsel %vm1638, %v2489, %v2488
    %v2491 = vsel %vm1632, %v1709, %v1620
    %v2492 = vsel %vm1635, %v1711, %v2491
    %v2493 = vrot.slane %v2472, 5
    %v2494 = vsel %vm1638, %v2493, %v2492
    %v2495 = vsel %vm1632, %v1715, %v1624
    %v2496 = vsel %vm1635, %v1717, %v2495
    %v2497 = vrot.slane %v2473, 5
    %v2498 = vsel %vm1638, %v2497, %v2496
    %v2499 = vsel %vm1632, %v1721, %v1628
    %v2500 = vsel %vm1635, %v1723, %v2499
    %v2501 = vrot.slane %v2474, 5
    %v2502 = vsel %vm1638, %v2501, %v2500
    %v2503 = vpack.c.b16 %v2478, %v2478
    %v2504 = vpack.c.b16 %v2482, %v2482
    %v2505 = vpack.c.b16 %v2486, %v2486
    %v2506 = vpack.c.b16 %v2490, %v2490
    %v2507 = vpack.c.b16 %v2494, %v2494
    %v2508 = vpack.c.b16 %v2498, %v2498
    %v2509 = vpack.c.b16 %v2502, %v2502
    %2510 = vrot.lane.b32.xlu0 %v2503, 32
    %v2511 = vpop.permute.xlu0 %2510
    %2512 = vrot.lane.b32.xlu0 %v2504, 32
    %v2513 = vpop.permute.xlu0 %2512
    %2514 = vrot.lane.b32.xlu0 %v2505, 32
    %v2515 = vpop.permute.xlu0 %2514
    %2516 = vrot.lane.b32.xlu0 %v2506, 32
    %v2517 = vpop.permute.xlu0 %2516
    %2518 = vrot.lane.b32.xlu0 %v2507, 32
    %v2519 = vpop.permute.xlu0 %2518
    %2520 = vrot.lane.b32.xlu0 %v2508, 32
    %v2521 = vpop.permute.xlu0 %2520
    %2522 = vrot.lane.b32.xlu0 %v2509, 32
    %v2523 = vpop.permute.xlu0 %2522
    %v2524 = vrot.slane %v1604, 1
    %v2525 = vsel %vm1632, %v1605, %v2524
    %v2526 = vrot.slane %v1606, 7
    %v2527 = vsel %vm1635, %v2526, %v2525
    %v2528 = vrot.slane %v2468, 6
    %v2529 = vsel %vm1638, %v2528, %v2527
    %v2530 = vrot.slane %v1608, 1
    %v2531 = vsel %vm1632, %v1609, %v2530
    %v2532 = vrot.slane %v1610, 7
    %v2533 = vsel %vm1635, %v2532, %v2531
    %v2534 = vrot.slane %v2469, 6
    %v2535 = vsel %vm1638, %v2534, %v2533
    %v2536 = vrot.slane %v1612, 1
    %v2537 = vsel %vm1632, %v1613, %v2536
    %v2538 = vrot.slane %v1614, 7
    %v2539 = vsel %vm1635, %v2538, %v2537
    %v2540 = vrot.slane %v2470, 6
    %v2541 = vsel %vm1638, %v2540, %v2539
    %v2542 = vrot.slane %v1616, 1
    %v2543 = vsel %vm1632, %v1617, %v2542
    %v2544 = vrot.slane %v1618, 7
    %v2545 = vsel %vm1635, %v2544, %v2543
    %v2546 = vrot.slane %v2471, 6
    %v2547 = vsel %vm1638, %v2546, %v2545
    %v2548 = vrot.slane %v1620, 1
    %v2549 = vsel %vm1632, %v1621, %v2548
    %v2550 = vrot.slane %v1622, 7
    %v2551 = vsel %vm1635, %v2550, %v2549
    %v2552 = vrot.slane %v2472, 6
    %v2553 = vsel %vm1638, %v2552, %v2551
    %v2554 = vrot.slane %v1624, 1
    %v2555 = vsel %vm1632, %v1625, %v2554
    %v2556 = vrot.slane %v1626, 7
    %v2557 = vsel %vm1635, %v2556, %v2555
    %v2558 = vrot.slane %v2473, 6
    %v2559 = vsel %vm1638, %v2558, %v2557
    %v2560 = vrot.slane %v1628, 1
    %v2561 = vsel %vm1632, %v1629, %v2560
    %v2562 = vrot.slane %v1630, 7
    %v2563 = vsel %vm1635, %v2562, %v2561
    %v2564 = vrot.slane %v2474, 6
    %v2565 = vsel %vm1638, %v2564, %v2563
    %v2566 = vpack.c.b16 %v2529, %v2529
    %v2567 = vpack.c.b16 %v2535, %v2535
    %v2568 = vpack.c.b16 %v2541, %v2541
    %v2569 = vpack.c.b16 %v2547, %v2547
    %v2570 = vpack.c.b16 %v2553, %v2553
    %v2571 = vpack.c.b16 %v2559, %v2559
    %v2572 = vpack.c.b16 %v2565, %v2565
    %2573 = vrot.lane.b32.xlu0 %v2566, 40
    %v2574 = vpop.permute.xlu0 %2573
    %2575 = vrot.lane.b32.xlu0 %v2567, 40
    %v2576 = vpop.permute.xlu0 %2575
    %2577 = vrot.lane.b32.xlu0 %v2568, 40
    %v2578 = vpop.permute.xlu0 %2577
    %2579 = vrot.lane.b32.xlu0 %v2569, 40
    %v2580 = vpop.permute.xlu0 %2579
    %2581 = vrot.lane.b32.xlu0 %v2570, 40
    %v2582 = vpop.permute.xlu0 %2581
    %2583 = vrot.lane.b32.xlu0 %v2571, 40
    %v2584 = vpop.permute.xlu0 %2583
    %2585 = vrot.lane.b32.xlu0 %v2572, 40
    %v2586 = vpop.permute.xlu0 %2585
    %v2588 = vunpack.c.l.s4 1966171168
    %v2589 = vunpack.c.0.s8 %v2588
    %v2590 = vlaneseq
    %v2591 = vshrl.u32 %v2590, 7
    %v2592 = vsub.s32 %v2589, %v2591
    %v2593 = vrot.slane %v928, %v2592
    %v2595 = vunpack.c.l.s4 1966171168
    %v2596 = vunpack.c.0.s8 %v2595
    %v2597 = vlaneseq
    %v2598 = vshrl.u32 %v2597, 7
    %v2599 = vsub.s32 %v2596, %v2598
    %v2600 = vrot.slane %v2593, %v2599
    %v2602 = vunpack.c.l.s4 1966171168
    %v2603 = vunpack.c.0.s8 %v2602
    %v2604 = vlaneseq
    %v2605 = vshrl.u32 %v2604, 7
    %v2606 = vsub.s32 %v2603, %v2605
    %v2607 = vrot.slane %v967, %v2606
    %v2609 = vunpack.c.l.s4 1966171168
    %v2610 = vunpack.c.0.s8 %v2609
    %v2611 = vlaneseq
    %v2612 = vshrl.u32 %v2611, 7
    %v2613 = vsub.s32 %v2610, %v2612
    %v2614 = vrot.slane %v2607, %v2613
    %v2616 = vunpack.c.l.s4 1966171168
    %v2617 = vunpack.c.0.s8 %v2616
    %v2618 = vlaneseq
    %v2619 = vshrl.u32 %v2618, 7
    %v2620 = vsub.s32 %v2617, %v2619
    %v2621 = vrot.slane %v1006, %v2620
    %v2623 = vunpack.c.l.s4 1966171168
    %v2624 = vunpack.c.0.s8 %v2623
    %v2625 = vlaneseq
    %v2626 = vshrl.u32 %v2625, 7
    %v2627 = vsub.s32 %v2624, %v2626
    %v2628 = vrot.slane %v2621, %v2627
    %v2630 = vunpack.c.l.s4 1966171168
    %v2631 = vunpack.c.0.s8 %v2630
    %v2632 = vlaneseq
    %v2633 = vshrl.u32 %v2632, 7
    %v2634 = vsub.s32 %v2631, %v2633
    %v2635 = vrot.slane %v1045, %v2634
    %v2637 = vunpack.c.l.s4 1966171168
    %v2638 = vunpack.c.0.s8 %v2637
    %v2639 = vlaneseq
    %v2640 = vshrl.u32 %v2639, 7
    %v2641 = vsub.s32 %v2638, %v2640
    %v2642 = vrot.slane %v2635, %v2641
    %v2644 = vunpack.c.l.s4 1966171168
    %v2645 = vunpack.c.0.s8 %v2644
    %v2646 = vlaneseq
    %v2647 = vshrl.u32 %v2646, 7
    %v2648 = vsub.s32 %v2645, %v2647
    %v2649 = vrot.slane %v1084, %v2648
    %v2651 = vunpack.c.l.s4 1966171168
    %v2652 = vunpack.c.0.s8 %v2651
    %v2653 = vlaneseq
    %v2654 = vshrl.u32 %v2653, 7
    %v2655 = vsub.s32 %v2652, %v2654
    %v2656 = vrot.slane %v2649, %v2655
    %v2658 = vunpack.c.l.s4 1966171168
    %v2659 = vunpack.c.0.s8 %v2658
    %v2660 = vlaneseq
    %v2661 = vshrl.u32 %v2660, 7
    %v2662 = vsub.s32 %v2659, %v2661
    %v2663 = vrot.slane %v1123, %v2662
    %v2665 = vunpack.c.l.s4 1966171168
    %v2666 = vunpack.c.0.s8 %v2665
    %v2667 = vlaneseq
    %v2668 = vshrl.u32 %v2667, 7
    %v2669 = vsub.s32 %v2666, %v2668
    %v2670 = vrot.slane %v2663, %v2669
    %v2672 = vunpack.c.l.s4 1966171168
    %v2673 = vunpack.c.0.s8 %v2672
    %v2674 = vlaneseq
    %v2675 = vshrl.u32 %v2674, 7
    %v2676 = vsub.s32 %v2673, %v2675
    %v2677 = vrot.slane %v1162, %v2676
    %v2679 = vunpack.c.l.s4 1966171168
    %v2680 = vunpack.c.0.s8 %v2679
    %v2681 = vlaneseq
    %v2682 = vshrl.u32 %v2681, 7
    %v2683 = vsub.s32 %v2680, %v2682
    %v2684 = vrot.slane %v2677, %v2683
    %v2686 = vunpack.c.l.s4 1966171168
    %v2687 = vunpack.c.0.s8 %v2686
    %v2688 = vlaneseq
    %v2689 = vshrl.u32 %v2688, 7
    %v2690 = vsub.s32 %v2687, %v2689
    %v2691 = vrot.slane %v1201, %v2690
    %v2693 = vunpack.c.l.s4 1966171168
    %v2694 = vunpack.c.0.s8 %v2693
    %v2695 = vlaneseq
    %v2696 = vshrl.u32 %v2695, 7
    %v2697 = vsub.s32 %v2694, %v2696
    %v2698 = vrot.slane %v2691, %v2697
    %v2699 = vunpack.c.l.b16 %v2600
    %v2700 = vunpack.c.l.b16 %v2614
    %v2701 = vunpack.c.l.b16 %v2628
    %v2702 = vunpack.c.l.b16 %v2642
    %v2703 = vunpack.c.l.b16 %v2656
    %v2704 = vunpack.c.l.b16 %v2670
    %v2705 = vunpack.c.l.b16 %v2684
    %v2706 = vunpack.c.l.b16 %v2698
    %v2707 = vsel %vm1632, %v2300, %v2195
    %v2708 = vsel %vm1635, %v2302, %v2707
    %v2709 = vrot.slane %v2699, 5
    %v2710 = vsel %vm1638, %v2709, %v2708
    %v2711 = vsel %vm1632, %v2306, %v2199
    %v2712 = vsel %vm1635, %v2308, %v2711
    %v2713 = vrot.slane %v2700, 5
    %v2714 = vsel %vm1638, %v2713, %v2712
    %v2715 = vsel %vm1632, %v2312, %v2203
    %v2716 = vsel %vm1635, %v2314, %v2715
    %v2717 = vrot.slane %v2701, 5
    %v2718 = vsel %vm1638, %v2717, %v2716
    %v2719 = vsel %vm1632, %v2318, %v2207
    %v2720 = vsel %vm1635, %v2320, %v2719
    %v2721 = vrot.slane %v2702, 5
    %v2722 = vsel %vm1638, %v2721, %v2720
    %v2723 = vsel %vm1632, %v2324, %v2211
    %v2724 = vsel %vm1635, %v2326, %v2723
    %v2725 = vrot.slane %v2703, 5
    %v2726 = vsel %vm1638, %v2725, %v2724
    %v2727 = vsel %vm1632, %v2330, %v2215
    %v2728 = vsel %vm1635, %v2332, %v2727
    %v2729 = vrot.slane %v2704, 5
    %v2730 = vsel %vm1638, %v2729, %v2728
    %v2731 = vsel %vm1632, %v2336, %v2219
    %v2732 = vsel %vm1635, %v2338, %v2731
    %v2733 = vrot.slane %v2705, 5
    %v2734 = vsel %vm1638, %v2733, %v2732
    %v2735 = vsel %vm1632, %v2342, %v2223
    %v2736 = vsel %vm1635, %v2344, %v2735
    %v2737 = vrot.slane %v2706, 5
    %v2738 = vsel %vm1638, %v2737, %v2736
    %v2739 = vpack.c.b16 %v2710, %v2710
    %v2740 = vpack.c.b16 %v2714, %v2714
    %v2741 = vpack.c.b16 %v2718, %v2718
    %v2742 = vpack.c.b16 %v2722, %v2722
    %v2743 = vpack.c.b16 %v2726, %v2726
    %v2744 = vpack.c.b16 %v2730, %v2730
    %v2745 = vpack.c.b16 %v2734, %v2734
    %v2746 = vpack.c.b16 %v2738, %v2738
    %2747 = vrot.lane.b32.xlu0 %v2739, 48
    %v2748 = vpop.permute.xlu0 %2747
    %2749 = vrot.lane.b32.xlu0 %v2740, 48
    %v2750 = vpop.permute.xlu0 %2749
    %2751 = vrot.lane.b32.xlu0 %v2741, 48
    %v2752 = vpop.permute.xlu0 %2751
    %2753 = vrot.lane.b32.xlu0 %v2742, 48
    %v2754 = vpop.permute.xlu0 %2753
    %2755 = vrot.lane.b32.xlu0 %v2743, 48
    %v2756 = vpop.permute.xlu0 %2755
    %2757 = vrot.lane.b32.xlu0 %v2744, 48
    %v2758 = vpop.permute.xlu0 %2757
    %2759 = vrot.lane.b32.xlu0 %v2745, 48
    %v2760 = vpop.permute.xlu0 %2759
    %2761 = vrot.lane.b32.xlu0 %v2746, 48
    %v2762 = vpop.permute.xlu0 %2761
    %v2763 = vrot.slane %v2195, 1
    %v2764 = vsel %vm1632, %v2196, %v2763
    %v2765 = vrot.slane %v2197, 7
    %v2766 = vsel %vm1635, %v2765, %v2764
    %v2767 = vrot.slane %v2699, 6
    %v2768 = vsel %vm1638, %v2767, %v2766
    %v2769 = vrot.slane %v2199, 1
    %v2770 = vsel %vm1632, %v2200, %v2769
    %v2771 = vrot.slane %v2201, 7
    %v2772 = vsel %vm1635, %v2771, %v2770
    %v2773 = vrot.slane %v2700, 6
    %v2774 = vsel %vm1638, %v2773, %v2772
    %v2775 = vrot.slane %v2203, 1
    %v2776 = vsel %vm1632, %v2204, %v2775
    %v2777 = vrot.slane %v2205, 7
    %v2778 = vsel %vm1635, %v2777, %v2776
    %v2779 = vrot.slane %v2701, 6
    %v2780 = vsel %vm1638, %v2779, %v2778
    %v2781 = vrot.slane %v2207, 1
    %v2782 = vsel %vm1632, %v2208, %v2781
    %v2783 = vrot.slane %v2209, 7
    %v2784 = vsel %vm1635, %v2783, %v2782
    %v2785 = vrot.slane %v2702, 6
    %v2786 = vsel %vm1638, %v2785, %v2784
    %v2787 = vrot.slane %v2211, 1
    %v2788 = vsel %vm1632, %v2212, %v2787
    %v2789 = vrot.slane %v2213, 7
    %v2790 = vsel %vm1635, %v2789, %v2788
    %v2791 = vrot.slane %v2703, 6
    %v2792 = vsel %vm1638, %v2791, %v2790
    %v2793 = vrot.slane %v2215, 1
    %v2794 = vsel %vm1632, %v2216, %v2793
    %v2795 = vrot.slane %v2217, 7
    %v2796 = vsel %vm1635, %v2795, %v2794
    %v2797 = vrot.slane %v2704, 6
    %v2798 = vsel %vm1638, %v2797, %v2796
    %v2799 = vrot.slane %v2219, 1
    %v2800 = vsel %vm1632, %v2220, %v2799
    %v2801 = vrot.slane %v2221, 7
    %v2802 = vsel %vm1635, %v2801, %v2800
    %v2803 = vrot.slane %v2705, 6
    %v2804 = vsel %vm1638, %v2803, %v2802
    %v2805 = vrot.slane %v2223, 1
    %v2806 = vsel %vm1632, %v2224, %v2805
    %v2807 = vrot.slane %v2225, 7
    %v2808 = vsel %vm1635, %v2807, %v2806
    %v2809 = vrot.slane %v2706, 6
    %v2810 = vsel %vm1638, %v2809, %v2808
    %v2811 = vpack.c.b16 %v2768, %v2768
    %v2812 = vpack.c.b16 %v2774, %v2774
    %v2813 = vpack.c.b16 %v2780, %v2780
    %v2814 = vpack.c.b16 %v2786, %v2786
    %v2815 = vpack.c.b16 %v2792, %v2792
    %v2816 = vpack.c.b16 %v2798, %v2798
    %v2817 = vpack.c.b16 %v2804, %v2804
    %v2818 = vpack.c.b16 %v2810, %v2810
    %2819 = vrot.lane.b32.xlu0 %v2811, 56
    %v2820 = vpop.permute.xlu0 %2819
    %2821 = vrot.lane.b32.xlu0 %v2812, 56
    %v2822 = vpop.permute.xlu0 %2821
    %2823 = vrot.lane.b32.xlu0 %v2813, 56
    %v2824 = vpop.permute.xlu0 %2823
    %2825 = vrot.lane.b32.xlu0 %v2814, 56
    %v2826 = vpop.permute.xlu0 %2825
    %2827 = vrot.lane.b32.xlu0 %v2815, 56
    %v2828 = vpop.permute.xlu0 %2827
    %2829 = vrot.lane.b32.xlu0 %v2816, 56
    %v2830 = vpop.permute.xlu0 %2829
    %2831 = vrot.lane.b32.xlu0 %v2817, 56
    %v2832 = vpop.permute.xlu0 %2831
    %2833 = vrot.lane.b32.xlu0 %v2818, 56
    %v2834 = vpop.permute.xlu0 %2833
    %v2836 = vunpack.c.l.s4 1966171168
    %v2837 = vunpack.c.0.s8 %v2836
    %v2838 = vlaneseq
    %v2839 = vshrl.u32 %v2838, 7
    %v2840 = vsub.s32 %v2837, %v2839
    %v2841 = vrot.slane %v718, %v2840
    %v2843 = vunpack.c.l.s4 1966171168
    %v2844 = vunpack.c.0.s8 %v2843
    %v2845 = vlaneseq
    %v2846 = vshrl.u32 %v2845, 7
    %v2847 = vsub.s32 %v2844, %v2846
    %v2848 = vrot.slane %v2841, %v2847
    %v2850 = vunpack.c.l.s4 1966171168
    %v2851 = vunpack.c.0.s8 %v2850
    %v2852 = vlaneseq
    %v2853 = vshrl.u32 %v2852, 7
    %v2854 = vsub.s32 %v2851, %v2853
    %v2855 = vrot.slane %v732, %v2854
    %v2857 = vunpack.c.l.s4 1966171168
    %v2858 = vunpack.c.0.s8 %v2857
    %v2859 = vlaneseq
    %v2860 = vshrl.u32 %v2859, 7
    %v2861 = vsub.s32 %v2858, %v2860
    %v2862 = vrot.slane %v2855, %v2861
    %v2864 = vunpack.c.l.s4 1966171168
    %v2865 = vunpack.c.0.s8 %v2864
    %v2866 = vlaneseq
    %v2867 = vshrl.u32 %v2866, 7
    %v2868 = vsub.s32 %v2865, %v2867
    %v2869 = vrot.slane %v733, %v2868
    %v2871 = vunpack.c.l.s4 1966171168
    %v2872 = vunpack.c.0.s8 %v2871
    %v2873 = vlaneseq
    %v2874 = vshrl.u32 %v2873, 7
    %v2875 = vsub.s32 %v2872, %v2874
    %v2876 = vrot.slane %v2869, %v2875
    %v2878 = vunpack.c.l.s4 1966171168
    %v2879 = vunpack.c.0.s8 %v2878
    %v2880 = vlaneseq
    %v2881 = vshrl.u32 %v2880, 7
    %v2882 = vsub.s32 %v2879, %v2881
    %v2883 = vrot.slane %v734, %v2882
    %v2885 = vunpack.c.l.s4 1966171168
    %v2886 = vunpack.c.0.s8 %v2885
    %v2887 = vlaneseq
    %v2888 = vshrl.u32 %v2887, 7
    %v2889 = vsub.s32 %v2886, %v2888
    %v2890 = vrot.slane %v2883, %v2889
    %v2892 = vunpack.c.l.s4 1966171168
    %v2893 = vunpack.c.0.s8 %v2892
    %v2894 = vlaneseq
    %v2895 = vshrl.u32 %v2894, 7
    %v2896 = vsub.s32 %v2893, %v2895
    %v2897 = vrot.slane %v874, %v2896
    %v2899 = vunpack.c.l.s4 1966171168
    %v2900 = vunpack.c.0.s8 %v2899
    %v2901 = vlaneseq
    %v2902 = vshrl.u32 %v2901, 7
    %v2903 = vsub.s32 %v2900, %v2902
    %v2904 = vrot.slane %v2897, %v2903
    %v2906 = vunpack.c.l.s4 1966171168
    %v2907 = vunpack.c.0.s8 %v2906
    %v2908 = vlaneseq
    %v2909 = vshrl.u32 %v2908, 7
    %v2910 = vsub.s32 %v2907, %v2909
    %v2911 = vrot.slane %v888, %v2910
    %v2913 = vunpack.c.l.s4 1966171168
    %v2914 = vunpack.c.0.s8 %v2913
    %v2915 = vlaneseq
    %v2916 = vshrl.u32 %v2915, 7
    %v2917 = vsub.s32 %v2914, %v2916
    %v2918 = vrot.slane %v2911, %v2917
    %v2920 = vunpack.c.l.s4 1966171168
    %v2921 = vunpack.c.0.s8 %v2920
    %v2922 = vlaneseq
    %v2923 = vshrl.u32 %v2922, 7
    %v2924 = vsub.s32 %v2921, %v2923
    %v2925 = vrot.slane %v889, %v2924
    %v2927 = vunpack.c.l.s4 1966171168
    %v2928 = vunpack.c.0.s8 %v2927
    %v2929 = vlaneseq
    %v2930 = vshrl.u32 %v2929, 7
    %v2931 = vsub.s32 %v2928, %v2930
    %v2932 = vrot.slane %v2925, %v2931
    %v2934 = vunpack.c.l.s4 1966171168
    %v2935 = vunpack.c.0.s8 %v2934
    %v2936 = vlaneseq
    %v2937 = vshrl.u32 %v2936, 7
    %v2938 = vsub.s32 %v2935, %v2937
    %v2939 = vrot.slane %v890, %v2938
    %v2941 = vunpack.c.l.s4 1966171168
    %v2942 = vunpack.c.0.s8 %v2941
    %v2943 = vlaneseq
    %v2944 = vshrl.u32 %v2943, 7
    %v2945 = vsub.s32 %v2942, %v2944
    %v2946 = vrot.slane %v2939, %v2945
    %v2947 = vunpack.c.l.b16 %v2848
    %v2948 = vunpack.c.l.b16 %v2862
    %v2949 = vunpack.c.l.b16 %v2876
    %v2950 = vunpack.c.l.b16 %v2890
    %v2951 = vunpack.c.l.b16 %v2904
    %v2952 = vunpack.c.l.b16 %v2918
    %v2953 = vunpack.c.l.b16 %v2932
    %v2954 = vunpack.c.l.b16 %v2946
    %v2955 = vrot.slane %v2948, 7
    %v2956 = vsel %vm1632, %v2955, %v2947
    %v2957 = vrot.slane %v2949, 6
    %v2958 = vsel %vm1635, %v2957, %v2956
    %v2959 = vrot.slane %v2950, 5
    %v2960 = vsel %vm1638, %v2959, %v2958
    %v2961 = vrot.slane %v2952, 7
    %v2962 = vsel %vm1632, %v2961, %v2951
    %v2963 = vrot.slane %v2953, 6
    %v2964 = vsel %vm1635, %v2963, %v2962
    %v2965 = vrot.slane %v2954, 5
    %v2966 = vsel %vm1638, %v2965, %v2964
    %v2967 = vpack.c.b16 %v2960, %v2960
    %v2968 = vpack.c.b16 %v2966, %v2966
    %2969 = vrot.lane.b32.xlu0 %v1677, 64
    %v2970 = vpop.permute.xlu0 %2969
    %2971 = vrot.lane.b32.xlu0 %v1678, 64
    %v2972 = vpop.permute.xlu0 %2971
    %2973 = vrot.lane.b32.xlu0 %v1679, 64
    %v2974 = vpop.permute.xlu0 %2973
    %2975 = vrot.lane.b32.xlu0 %v2967, 64
    %v2976 = vpop.permute.xlu0 %2975
    %2977 = vrot.lane.b32.xlu0 %v1680, 64
    %v2978 = vpop.permute.xlu0 %2977
    %2979 = vrot.lane.b32.xlu0 %v1681, 64
    %v2980 = vpop.permute.xlu0 %2979
    %2981 = vrot.lane.b32.xlu0 %v1682, 64
    %v2982 = vpop.permute.xlu0 %2981
    %2983 = vrot.lane.b32.xlu0 %v2968, 64
    %v2984 = vpop.permute.xlu0 %2983
    %v2985 = vrot.slane %v2947, 1
    %v2986 = vsel %vm1632, %v2948, %v2985
    %v2987 = vrot.slane %v2949, 7
    %v2988 = vsel %vm1635, %v2987, %v2986
    %v2989 = vrot.slane %v2950, 6
    %v2990 = vsel %vm1638, %v2989, %v2988
    %v2991 = vrot.slane %v2951, 1
    %v2992 = vsel %vm1632, %v2952, %v2991
    %v2993 = vrot.slane %v2953, 7
    %v2994 = vsel %vm1635, %v2993, %v2992
    %v2995 = vrot.slane %v2954, 6
    %v2996 = vsel %vm1638, %v2995, %v2994
    %v2997 = vpack.c.b16 %v2990, %v2990
    %v2998 = vpack.c.b16 %v2996, %v2996
    %2999 = vrot.lane.b32.xlu0 %v1726, 72
    %v3000 = vpop.permute.xlu0 %2999
    %3001 = vrot.lane.b32.xlu0 %v1727, 72
    %v3002 = vpop.permute.xlu0 %3001
    %3003 = vrot.lane.b32.xlu0 %v1728, 72
    %v3004 = vpop.permute.xlu0 %3003
    %3005 = vrot.lane.b32.xlu0 %v2997, 72
    %v3006 = vpop.permute.xlu0 %3005
    %3007 = vrot.lane.b32.xlu0 %v1729, 72
    %v3008 = vpop.permute.xlu0 %3007
    %3009 = vrot.lane.b32.xlu0 %v1730, 72
    %v3010 = vpop.permute.xlu0 %3009
    %3011 = vrot.lane.b32.xlu0 %v1731, 72
    %v3012 = vpop.permute.xlu0 %3011
    %3013 = vrot.lane.b32.xlu0 %v2998, 72
    %v3014 = vpop.permute.xlu0 %3013
    %3015 = vrot.lane.b32.xlu0 %v2275, 80
    %v3016 = vpop.permute.xlu0 %3015
    %3017 = vrot.lane.b32.xlu0 %v2276, 80
    %v3018 = vpop.permute.xlu0 %3017
    %3019 = vrot.lane.b32.xlu0 %v2277, 80
    %v3020 = vpop.permute.xlu0 %3019
    %3021 = vrot.lane.b32.xlu0 %v1676, 80
    %v3022 = vpop.permute.xlu0 %3021
    %3023 = vrot.lane.b32.xlu0 %v2279, 80
    %v3024 = vpop.permute.xlu0 %3023
    %3025 = vrot.lane.b32.xlu0 %v2280, 80
    %v3026 = vpop.permute.xlu0 %3025
    %3027 = vrot.lane.b32.xlu0 %v2281, 80
    %v3028 = vpop.permute.xlu0 %3027
    %3029 = vrot.lane.b32.xlu0 %v2347, 88
    %v3030 = vpop.permute.xlu0 %3029
    %3031 = vrot.lane.b32.xlu0 %v2348, 88
    %v3032 = vpop.permute.xlu0 %3031
    %3033 = vrot.lane.b32.xlu0 %v2349, 88
    %v3034 = vpop.permute.xlu0 %3033
    %3035 = vrot.lane.b32.xlu0 %v1725, 88
    %v3036 = vpop.permute.xlu0 %3035
    %3037 = vrot.lane.b32.xlu0 %v2351, 88
    %v3038 = vpop.permute.xlu0 %3037
    %3039 = vrot.lane.b32.xlu0 %v2352, 88
    %v3040 = vpop.permute.xlu0 %3039
    %3041 = vrot.lane.b32.xlu0 %v2353, 88
    %v3042 = vpop.permute.xlu0 %3041
    %v3044 = vunpack.c.l.s4 1966171168
    %v3045 = vunpack.c.0.s8 %v3044
    %v3046 = vlaneseq
    %v3047 = vshrl.u32 %v3046, 7
    %v3048 = vsub.s32 %v3045, %v3047
    %v3049 = vrot.slane %v725, %v3048
    %v3051 = vunpack.c.l.s4 1966171168
    %v3052 = vunpack.c.0.s8 %v3051
    %v3053 = vlaneseq
    %v3054 = vshrl.u32 %v3053, 7
    %v3055 = vsub.s32 %v3052, %v3054
    %v3056 = vrot.slane %v3049, %v3055
    %v3058 = vunpack.c.l.s4 1966171168
    %v3059 = vunpack.c.0.s8 %v3058
    %v3060 = vlaneseq
    %v3061 = vshrl.u32 %v3060, 7
    %v3062 = vsub.s32 %v3059, %v3061
    %v3063 = vrot.slane %v881, %v3062
    %v3065 = vunpack.c.l.s4 1966171168
    %v3066 = vunpack.c.0.s8 %v3065
    %v3067 = vlaneseq
    %v3068 = vshrl.u32 %v3067, 7
    %v3069 = vsub.s32 %v3066, %v3068
    %v3070 = vrot.slane %v3063, %v3069
    %v3071 = vunpack.c.l.b16 %v3056
    %v3072 = vunpack.c.l.b16 %v3070
    %v3073 = vsel %vm1632, %v2987, %v2948
    %v3074 = vsel %vm1635, %v2989, %v3073
    %v3075 = vrot.slane %v3071, 5
    %v3076 = vsel %vm1638, %v3075, %v3074
    %v3077 = vsel %vm1632, %v2993, %v2952
    %v3078 = vsel %vm1635, %v2995, %v3077
    %v3079 = vrot.slane %v3072, 5
    %v3080 = vsel %vm1638, %v3079, %v3078
    %v3081 = vpack.c.b16 %v3076, %v3076
    %v3082 = vpack.c.b16 %v3080, %v3080
    %3083 = vrot.lane.b32.xlu0 %v2504, 96
    %v3084 = vpop.permute.xlu0 %3083
    %3085 = vrot.lane.b32.xlu0 %v2505, 96
    %v3086 = vpop.permute.xlu0 %3085
    %3087 = vrot.lane.b32.xlu0 %v2506, 96
    %v3088 = vpop.permute.xlu0 %3087
    %3089 = vrot.lane.b32.xlu0 %v3081, 96
    %v3090 = vpop.permute.xlu0 %3089
    %3091 = vrot.lane.b32.xlu0 %v2507, 96
    %v3092 = vpop.permute.xlu0 %3091
    %3093 = vrot.lane.b32.xlu0 %v2508, 96
    %v3094 = vpop.permute.xlu0 %3093
    %3095 = vrot.lane.b32.xlu0 %v2509, 96
    %v3096 = vpop.permute.xlu0 %3095
    %3097 = vrot.lane.b32.xlu0 %v3082, 96
    %v3098 = vpop.permute.xlu0 %3097
    %v3099 = vrot.slane %v2948, 1
    %v3100 = vsel %vm1632, %v2949, %v3099
    %v3101 = vrot.slane %v2950, 7
    %v3102 = vsel %vm1635, %v3101, %v3100
    %v3103 = vrot.slane %v3071, 6
    %v3104 = vsel %vm1638, %v3103, %v3102
    %v3105 = vrot.slane %v2952, 1
    %v3106 = vsel %vm1632, %v2953, %v3105
    %v3107 = vrot.slane %v2954, 7
    %v3108 = vsel %vm1635, %v3107, %v3106
    %v3109 = vrot.slane %v3072, 6
    %v3110 = vsel %vm1638, %v3109, %v3108
    %v3111 = vpack.c.b16 %v3104, %v3104
    %v3112 = vpack.c.b16 %v3110, %v3110
    %3113 = vrot.lane.b32.xlu0 %v2567, 104
    %v3114 = vpop.permute.xlu0 %3113
    %3115 = vrot.lane.b32.xlu0 %v2568, 104
    %v3116 = vpop.permute.xlu0 %3115
    %3117 = vrot.lane.b32.xlu0 %v2569, 104
    %v3118 = vpop.permute.xlu0 %3117
    %3119 = vrot.lane.b32.xlu0 %v3111, 104
    %v3120 = vpop.permute.xlu0 %3119
    %3121 = vrot.lane.b32.xlu0 %v2570, 104
    %v3122 = vpop.permute.xlu0 %3121
    %3123 = vrot.lane.b32.xlu0 %v2571, 104
    %v3124 = vpop.permute.xlu0 %3123
    %3125 = vrot.lane.b32.xlu0 %v2572, 104
    %v3126 = vpop.permute.xlu0 %3125
    %3127 = vrot.lane.b32.xlu0 %v3112, 104
    %v3128 = vpop.permute.xlu0 %3127
    %3129 = vrot.lane.b32.xlu0 %v2740, 112
    %v3130 = vpop.permute.xlu0 %3129
    %3131 = vrot.lane.b32.xlu0 %v2741, 112
    %v3132 = vpop.permute.xlu0 %3131
    %3133 = vrot.lane.b32.xlu0 %v2742, 112
    %v3134 = vpop.permute.xlu0 %3133
    %3135 = vrot.lane.b32.xlu0 %v2503, 112
    %v3136 = vpop.permute.xlu0 %3135
    %3137 = vrot.lane.b32.xlu0 %v2744, 112
    %v3138 = vpop.permute.xlu0 %3137
    %3139 = vrot.lane.b32.xlu0 %v2745, 112
    %v3140 = vpop.permute.xlu0 %3139
    %3141 = vrot.lane.b32.xlu0 %v2746, 112
    %v3142 = vpop.permute.xlu0 %3141
    %3143 = vrot.lane.b32.xlu0 %v2812, 120
    %v3144 = vpop.permute.xlu0 %3143
    %3145 = vrot.lane.b32.xlu0 %v2813, 120
    %v3146 = vpop.permute.xlu0 %3145
    %3147 = vrot.lane.b32.xlu0 %v2814, 120
    %v3148 = vpop.permute.xlu0 %3147
    %3149 = vrot.lane.b32.xlu0 %v2566, 120
    %v3150 = vpop.permute.xlu0 %3149
    %3151 = vrot.lane.b32.xlu0 %v2816, 120
    %v3152 = vpop.permute.xlu0 %3151
    %3153 = vrot.lane.b32.xlu0 %v2817, 120
    %v3154 = vpop.permute.xlu0 %3153
    %3155 = vrot.lane.b32.xlu0 %v2818, 120
    %v3156 = vpop.permute.xlu0 %3155
    %vm3157 = vcmask 64512
    %v3160 = vsel %vm3157, %v1676, %v1733
    %v3163 = vsel %vm3157, %v1677, %v1735
    %v3166 = vsel %vm3157, %v1678, %v1737
    %v3169 = vsel %vm3157, %v1679, %v1739
    %v3172 = vsel %vm3157, %v1680, %v1741
    %v3175 = vsel %vm3157, %v1681, %v1743
    %v3178 = vsel %vm3157, %v1682, %v1745
    %vm3179 = vcmask 130048
    %v3181 = vsel %vm3179, %v3160, %v2283
    %v3183 = vsel %vm3179, %v3163, %v2285
    %v3185 = vsel %vm3179, %v3166, %v2287
    %v3187 = vsel %vm3179, %v3169, %v2289
    %v3189 = vsel %vm3179, %v3160, %v2291
    %v3191 = vsel %vm3179, %v3172, %v2293
    %v3193 = vsel %vm3179, %v3175, %v2295
    %v3195 = vsel %vm3179, %v3178, %v2297
    %vm3196 = vcmask 195584
    %v3198 = vsel %vm3196, %v3181, %v2355
    %v3200 = vsel %vm3196, %v3183, %v2357
    %v3202 = vsel %vm3196, %v3185, %v2359
    %v3204 = vsel %vm3196, %v3187, %v2361
    %v3206 = vsel %vm3196, %v3189, %v2363
    %v3208 = vsel %vm3196, %v3191, %v2365
    %v3210 = vsel %vm3196, %v3193, %v2367
    %v3212 = vsel %vm3196, %v3195, %v2369
    %vm3213 = vcmask 261120
    %v3215 = vsel %vm3213, %v3198, %v2511
    %v3217 = vsel %vm3213, %v3200, %v2513
    %v3219 = vsel %vm3213, %v3202, %v2515
    %v3221 = vsel %vm3213, %v3204, %v2517
    %v3222 = vsel %vm3213, %v3206, %v2511
    %v3224 = vsel %vm3213, %v3208, %v2519
    %v3226 = vsel %vm3213, %v3210, %v2521
    %v3228 = vsel %vm3213, %v3212, %v2523
    %vm3229 = vcmask 326656
    %v3231 = vsel %vm3229, %v3215, %v2574
    %v3233 = vsel %vm3229, %v3217, %v2576
    %v3235 = vsel %vm3229, %v3219, %v2578
    %v3237 = vsel %vm3229, %v3221, %v2580
    %v3238 = vsel %vm3229, %v3222, %v2574
    %v3240 = vsel %vm3229, %v3224, %v2582
    %v3242 = vsel %vm3229, %v3226, %v2584
    %v3244 = vsel %vm3229, %v3228, %v2586
    %vm3245 = vcmask 392192
    %v3247 = vsel %vm3245, %v3231, %v2748
    %v3249 = vsel %vm3245, %v3233, %v2750
    %v3251 = vsel %vm3245, %v3235, %v2752
    %v3253 = vsel %vm3245, %v3237, %v2754
    %v3255 = vsel %vm3245, %v3238, %v2756
    %v3257 = vsel %vm3245, %v3240, %v2758
    %v3259 = vsel %vm3245, %v3242, %v2760
    %v3261 = vsel %vm3245, %v3244, %v2762
    %vm3262 = vcmask 457728
    %v3264 = vsel %vm3262, %v3247, %v2820
    %v3266 = vsel %vm3262, %v3249, %v2822
    %v3268 = vsel %vm3262, %v3251, %v2824
    %v3270 = vsel %vm3262, %v3253, %v2826
    %v3272 = vsel %vm3262, %v3255, %v2828
    %v3274 = vsel %vm3262, %v3257, %v2830
    %v3276 = vsel %vm3262, %v3259, %v2832
    %v3278 = vsel %vm3262, %v3261, %v2834
    %vm3279 = vcmask 523264
    %v3281 = vsel %vm3279, %v3264, %v2970
    %v3283 = vsel %vm3279, %v3266, %v2972
    %v3285 = vsel %vm3279, %v3268, %v2974
    %v3287 = vsel %vm3279, %v3270, %v2976
    %v3289 = vsel %vm3279, %v3272, %v2978
    %v3291 = vsel %vm3279, %v3274, %v2980
    %v3293 = vsel %vm3279, %v3276, %v2982
    %v3295 = vsel %vm3279, %v3278, %v2984
    %vm3296 = vcmask 588800
    %v3298 = vsel %vm3296, %v3281, %v3000
    %v3300 = vsel %vm3296, %v3283, %v3002
    %v3302 = vsel %vm3296, %v3285, %v3004
    %v3304 = vsel %vm3296, %v3287, %v3006
    %v3306 = vsel %vm3296, %v3289, %v3008
    %v3308 = vsel %vm3296, %v3291, %v3010
    %v3310 = vsel %vm3296, %v3293, %v3012
    %v3312 = vsel %vm3296, %v3295, %v3014
    %vm3313 = vcmask 654336
    %v3315 = vsel %vm3313, %v3298, %v3016
    %v3317 = vsel %vm3313, %v3300, %v3018
    %v3319 = vsel %vm3313, %v3302, %v3020
    %v3321 = vsel %vm3313, %v3304, %v3022
    %v3323 = vsel %vm3313, %v3306, %v3024
    %v3325 = vsel %vm3313, %v3308, %v3026
    %v3327 = vsel %vm3313, %v3310, %v3028
    %v3328 = vsel %vm3313, %v3312, %v3022
    %vm3329 = vcmask 719872
    %v3331 = vsel %vm3329, %v3315, %v3030
    %v3333 = vsel %vm3329, %v3317, %v3032
    %v3335 = vsel %vm3329, %v3319, %v3034
    %v3337 = vsel %vm3329, %v3321, %v3036
    %v3339 = vsel %vm3329, %v3323, %v3038
    %v3341 = vsel %vm3329, %v3325, %v3040
    %v3343 = vsel %vm3329, %v3327, %v3042
    %v3344 = vsel %vm3329, %v3328, %v3036
    %vm3345 = vcmask 785408
    %v3347 = vsel %vm3345, %v3331, %v3084
    %v3349 = vsel %vm3345, %v3333, %v3086
    %v3351 = vsel %vm3345, %v3335, %v3088
    %v3353 = vsel %vm3345, %v3337, %v3090
    %v3355 = vsel %vm3345, %v3339, %v3092
    %v3357 = vsel %vm3345, %v3341, %v3094
    %v3359 = vsel %vm3345, %v3343, %v3096
    %v3361 = vsel %vm3345, %v3344, %v3098
    %vm3362 = vcmask 850944
    %v3364 = vsel %vm3362, %v3347, %v3114
    %v3366 = vsel %vm3362, %v3349, %v3116
    %v3368 = vsel %vm3362, %v3351, %v3118
    %v3370 = vsel %vm3362, %v3353, %v3120
    %v3372 = vsel %vm3362, %v3355, %v3122
    %v3374 = vsel %vm3362, %v3357, %v3124
    %v3376 = vsel %vm3362, %v3359, %v3126
    %v3378 = vsel %vm3362, %v3361, %v3128
    %vm3379 = vcmask 916480
    %v3381 = vsel %vm3379, %v3364, %v3130
    %v3383 = vsel %vm3379, %v3366, %v3132
    %v3385 = vsel %vm3379, %v3368, %v3134
    %v3387 = vsel %vm3379, %v3370, %v3136
    %v3389 = vsel %vm3379, %v3372, %v3138
    %v3391 = vsel %vm3379, %v3374, %v3140
    %v3393 = vsel %vm3379, %v3376, %v3142
    %v3394 = vsel %vm3379, %v3378, %v3136
    %vm3395 = vcmask 982016
    %v3397 = vsel %vm3395, %v3381, %v3144
    %v3399 = vsel %vm3395, %v3383, %v3146
    %v3401 = vsel %vm3395, %v3385, %v3148
    %v3403 = vsel %vm3395, %v3387, %v3150
    %v3405 = vsel %vm3395, %v3389, %v3152
    %v3407 = vsel %vm3395, %v3391, %v3154
    %v3409 = vsel %vm3395, %v3393, %v3156
    %v3410 = vsel %vm3395, %v3394, %v3150
    %v3412 = vlaneseq
    %v3413 = vshrl.u32 %v3412, 7
    %v3414 = vsub.s32 0, %v3413
    %v3415 = vrot.slane %v322, %v3414
    %v3425 = vcombine.low %v3397, %v3399
    %v3426 = vcombine.low %v3401, %v3403
    %v3428 = vunpack.c.l.s4 1983009808
    %v3429 = vunpack.c.0.s8 %v3428
    %v3430 = vlaneseq
    %v3431 = vshrl.u32 %v3430, 7
    %v3432 = vsub.s32 %v3429, %v3431
    %v3433 = vrot.slane %v3425, %v3432
    %v3435 = vunpack.c.l.s4 1983009808
    %v3436 = vunpack.c.0.s8 %v3435
    %v3437 = vlaneseq
    %v3438 = vshrl.u32 %v3437, 7
    %v3439 = vsub.s32 %v3436, %v3438
    %v3440 = vrot.slane %v3426, %v3439
    %v3441 = vcombine.low %v3433, %v3440
    %v3442 = vcombine.low %v3405, %v3407
    %v3443 = vcombine.low %v3409, %v3410
    %v3445 = vunpack.c.l.s4 1983009808
    %v3446 = vunpack.c.0.s8 %v3445
    %v3447 = vlaneseq
    %v3448 = vshrl.u32 %v3447, 7
    %v3449 = vsub.s32 %v3446, %v3448
    %v3450 = vrot.slane %v3442, %v3449
    %v3452 = vunpack.c.l.s4 1983009808
    %v3453 = vunpack.c.0.s8 %v3452
    %v3454 = vlaneseq
    %v3455 = vshrl.u32 %v3454, 7
    %v3456 = vsub.s32 %v3453, %v3455
    %v3457 = vrot.slane %v3443, %v3456
    %v3458 = vcombine.low %v3450, %v3457
    %v3477 = vunpack.c.l.b16 %v306
    %v3478 = vunpack.c.l.b16 %v307
    %v3479 = vunpack.c.l.b16 %v308
    %v3480 = vunpack.c.l.b16 %v309
    %v3481 = vunpack.c.l.b16 %v310
    %v3482 = vunpack.c.l.b16 %v311
    %v3483 = vunpack.c.l.b16 %v312
    %v3484 = vunpack.c.l.b16 %v313
    %v3485 = vunpack.c.l.b16 %v314
    %v3486 = vunpack.c.l.b16 %v315
    %v3487 = vunpack.c.l.b16 %v316
    %v3488 = vunpack.c.l.b16 %v317
    %v3489 = vunpack.c.l.b16 %v318
    %v3490 = vunpack.c.l.b16 %v319
    %v3491 = vunpack.c.l.b16 %v320
    %v3492 = vunpack.c.l.b16 %v321
    %v3493 = vpack.c.b16 %v3478, %v3477
    %v3494 = vpack.c.b16 %v3480, %v3479
    %v3495 = vpack.c.b16 %v3482, %v3481
    %v3496 = vpack.c.b16 %v3484, %v3483
    %v3497 = vpack.c.b16 %v3486, %v3485
    %v3498 = vpack.c.b16 %v3488, %v3487
    %v3499 = vpack.c.b16 %v3490, %v3489
    %v3500 = vpack.c.b16 %v3492, %v3491
    %3509 = vmatprep.subr.bf16.mxu0 0
    %3510 = vmatpush1.bf16.msra.mxu0 %v3493
    %3511 = vmatprep.subr.bf16.mxu0 0
    %3512 = vmatpush1.bf16.msra.mxu0 %v3494
    %3513 = vmatprep.subr.bf16.mxu0 0
    %3514 = vmatpush1.bf16.msra.mxu0 %v3495
    %3515 = vmatprep.subr.bf16.mxu0 0
    %3516 = vmatpush1.bf16.msra.mxu0 %v3496
    %3517 = vmatprep.subr.bf16.mxu0 0
    %3518 = vmatpush1.bf16.msra.mxu0 %v3497
    %3519 = vmatprep.subr.bf16.mxu0 0
    %3520 = vmatpush1.bf16.msra.mxu0 %v3498
    %3521 = vmatprep.subr.bf16.mxu0 0
    %3522 = vmatpush1.bf16.msra.mxu0 %v3499
    %3523 = vmatprep.subr.bf16.mxu0 0
    %3524 = vmatpush1.bf16.msra.mxu0 %v3500
    %3525 = vmatprep.subr.bf16.mxu0 0
    %3526 = vmatpush1.bf16.msra.mxu0 0
    %3527 = vmatprep.subr.bf16.mxu0 0
    %3528 = vmatpush1.bf16.msra.mxu0 0
    %3529 = vmatprep.subr.bf16.mxu0 0
    %3530 = vmatpush1.bf16.msra.mxu0 0
    %3531 = vmatprep.subr.bf16.mxu0 0
    %3532 = vmatpush1.bf16.msra.mxu0 0
    %3533 = vmatprep.subr.bf16.mxu0 0
    %3534 = vmatpush1.bf16.msra.mxu0 0
    %3535 = vmatprep.subr.bf16.mxu0 0
    %3536 = vmatpush1.bf16.msra.mxu0 0
    %3537 = vmatprep.subr.bf16.mxu0 0
    %3538 = vmatpush1.bf16.msra.mxu0 0
    %3539 = vmatprep.subr.bf16.mxu0 0
    %3540 = vmatpush1.bf16.msra.mxu0 0
    %3541 = vmatprep.mubr.bf16.mxu0 0
    %3542 = vmatmul.mubr.bf16.gmra.mrb[0].mxu0 %v3441
    %v3543 = vpop.f32.mrb[0].mxu0
    %v3544 = vadd.f32 %v3415, %v3543
    %v3545 = vpop.f32.mrb[0].mxu0
    %v3546 = vpop.f32.mrb[0].mxu0
    %v3547 = vadd.f32 %v3415, %v3546
    %v3548 = vpop.f32.mrb[0].mxu0
    %3549 = vmatprep.mubr.bf16.mxu0 0
    %3550 = vmatmul.mubr.bf16.gmra.mrb[0].mxu0 %v3458
    %v3551 = vpop.f32.mrb[0].mxu0
    %v3552 = vadd.f32 %v3415, %v3551
    %v3553 = vpop.f32.mrb[0].mxu0
    %v3554 = vpop.f32.mrb[0].mxu0
    %v3555 = vadd.f32 %v3415, %v3554
    %v3556 = vpop.f32.mrb[0].mxu0
    %3557 = vdwg.mxu0
    %v3558 = vadd.f32 %v3544, %v3547
    %v3559 = vadd.f32 %v3558, %v3552
    %v3560 = vadd.f32 %v3559, %v3555
    %v3561 = vrot.slane %v3560, 4
    %v3562 = vadd.f32 %v3560, %v3561
    %v3563 = vrot.slane %v3562, 2
    %v3564 = vadd.f32 %v3562, %v3563
    %v3565 = vrot.slane %v3564, 1
    %v3566 = vadd.f32 %v3564, %v3565
    %v3567 = vrcp.pop 32.0
    %v3568 = vmul.f32 %v3566, %v3567
    %v3569 = vsub.f32 %v3544, %v3568
    %v3570 = vsub.f32 %v3547, %v3568
    %v3571 = vsub.f32 %v3552, %v3568
    %v3572 = vsub.f32 %v3555, %v3568
    %v3573 = vmul.f32 %v3569, %v3569
    %v3574 = vmul.f32 %v3570, %v3570
    %v3575 = vmul.f32 %v3571, %v3571
    %v3576 = vmul.f32 %v3572, %v3572
    %v3577 = vadd.f32 %v3573, %v3574
    %v3578 = vadd.f32 %v3577, %v3575
    %v3579 = vadd.f32 %v3578, %v3576
    %v3580 = vrot.slane %v3579, 4
    %v3581 = vadd.f32 %v3579, %v3580
    %v3582 = vrot.slane %v3581, 2
    %v3583 = vadd.f32 %v3581, %v3582
    %v3584 = vrot.slane %v3583, 1
    %v3585 = vadd.f32 %v3583, %v3584
    %v3586 = vmul.f32 %v3585, %v3567
    %v3587 = vadd.f32 %v3586, 1e-05
    %v3588 = vrsqrt.pop %v3587
    %v3589 = vmul.f32 %v3569, %v3588
    %v3590 = vmul.f32 %v3570, %v3588
    %v3591 = vmul.f32 %v3571, %v3588
    %v3592 = vmul.f32 %v3572, %v3588
    %v3594 = vlaneseq
    %v3595 = vshrl.u32 %v3594, 7
    %v3596 = vsub.s32 0, %v3595
    %v3597 = vrot.slane %v323, %v3596
    %v3599 = vmul.f32 %v3589, %v3597
    %v3600 = vmul.f32 %v3590, %v3597
    %v3601 = vmul.f32 %v3591, %v3597
    %v3602 = vmul.f32 %v3592, %v3597
    %v3604 = vlaneseq
    %v3605 = vshrl.u32 %v3604, 7
    %v3606 = vsub.s32 0, %v3605
    %v3607 = vrot.slane %v324, %v3606
    %v3609 = vadd.f32 %v3599, %v3607
    %v3610 = vadd.f32 %v3600, %v3607
    %v3611 = vadd.f32 %v3601, %v3607
    %v3612 = vadd.f32 %v3602, %v3607
    %v3613 = vmul.f32 %v3609, 0.2
    %v3614 = vmul.f32 %v3610, 0.2
    %v3615 = vmul.f32 %v3611, 0.2
    %v3616 = vmul.f32 %v3612, 0.2
    %v3617 = vmax.f32 %v3609, %v3613
    %v3618 = vmax.f32 %v3610, %v3614
    %v3619 = vmax.f32 %v3611, %v3615
    %v3620 = vmax.f32 %v3612, %v3616
    %v3621 = vpack.c.bf16 %v3618, %v3617
    %v3622 = vpack.c.bf16 %v3620, %v3619
    %v3623 = vld [vmem:[%s7] sm:$0xf]
    %v3624 = vld [vmem:[%s7 + $0x4] sm:$0xf]
    %v3625 = vld [vmem:[%s7 + $0x8] sm:$0xf]
    %v3626 = vld [vmem:[%s7 + $0xc] sm:$0xf]
    %v3627 = vld [vmem:[%s7 + $0x10] sm:$0xf]
    %v3628 = vld [vmem:[%s7 + $0x14] sm:$0xf]
    %v3629 = vld [vmem:[%s7 + $0x18] sm:$0xf]
    %v3630 = vld [vmem:[%s7 + $0x1c] sm:$0xf]
    %v3631 = vld [vmem:[%s7 + $0x20] sm:$0xf]
    %v3632 = vld [vmem:[%s7 + $0x24] sm:$0xf]
    %v3633 = vld [vmem:[%s7 + $0x28] sm:$0xf]
    %v3634 = vld [vmem:[%s7 + $0x2c] sm:$0xf]
    %v3635 = vld [vmem:[%s7 + $0x30] sm:$0xf]
    %v3636 = vld [vmem:[%s7 + $0x34] sm:$0xf]
    %v3637 = vld [vmem:[%s7 + $0x38] sm:$0xf]
    %v3638 = vld [vmem:[%s7 + $0x3c] sm:$0xf]
    %v3639 = vld [vmem:[%s7 + $0x40] sm:$0xf]
    %v3640 = vld [vmem:[%s7 + $0x44] sm:$0xf]
    %v3641 = vld [vmem:[%s7 + $0x48] sm:$0xf]
    %v3642 = vld [vmem:[%s7 + $0x4c] sm:$0xf]
    %v3643 = vld [vmem:[%s7 + $0x50] sm:$0xf]
    %v3644 = vld [vmem:[%s7 + $0x54] sm:$0xf]
    %v3645 = vld [vmem:[%s7 + $0x58] sm:$0xf]
    %v3646 = vld [vmem:[%s7 + $0x5c] sm:$0xf]
    %v3647 = vld [vmem:[%s7 + $0x60] sm:$0xf]
    %v3648 = vld [vmem:[%s7 + $0x64] sm:$0xf]
    %v3649 = vld [vmem:[%s7 + $0x68] sm:$0xf]
    %v3650 = vld [vmem:[%s7 + $0x6c] sm:$0xf]
    %v3651 = vld [vmem:[%s7 + $0x70] sm:$0xf]
    %v3652 = vld [vmem:[%s7 + $0x74] sm:$0xf]
    %v3653 = vld [vmem:[%s7 + $0x78] sm:$0xf]
    %v3654 = vld [vmem:[%s7 + $0x7c] sm:$0xf]
    %v3655 = vld [vmem:[%s8] sm:$0x1]
    %v3658 = vunpack.c.l.b16 %v3621
    %v3659 = vunpack.c.l.b16 %v3622
    %v3660 = vrot.slane %v3659, 7
    %v3661 = vsel %vm1632, %v3660, %v3658
    %v3662 = vpack.c.b16 %v3661, %v3661
    %v3663 = vrot.slane %v3658, 1
    %v3664 = vsel %vm1632, %v3659, %v3663
    %v3665 = vpack.c.b16 %v3664, %v3664
    %3666 = vrot.lane.b32.xlu0 %v3665, 16
    %v3667 = vpop.permute.xlu0 %3666
    %v3668 = vrot.slane %v3658, 2
    %v3669 = vrot.slane %v3659, 1
    %v3670 = vsel %vm1632, %v3669, %v3668
    %v3671 = vpack.c.b16 %v3670, %v3670
    %3672 = vrot.lane.b32.xlu0 %v3671, 32
    %v3673 = vpop.permute.xlu0 %3672
    %v3674 = vrot.slane %v3658, 3
    %v3675 = vrot.slane %v3659, 2
    %v3676 = vsel %vm1632, %v3675, %v3674
    %v3677 = vpack.c.b16 %v3676, %v3676
    %3678 = vrot.lane.b32.xlu0 %v3677, 48
    %v3679 = vpop.permute.xlu0 %3678
    %v3680 = vrot.slane %v3658, 4
    %v3681 = vrot.slane %v3659, 3
    %v3682 = vsel %vm1632, %v3681, %v3680
    %v3683 = vpack.c.b16 %v3682, %v3682
    %3684 = vrot.lane.b32.xlu0 %v3683, 64
    %v3685 = vpop.permute.xlu0 %3684
    %v3686 = vrot.slane %v3658, 5
    %v3687 = vrot.slane %v3659, 4
    %v3688 = vsel %vm1632, %v3687, %v3686
    %v3689 = vpack.c.b16 %v3688, %v3688
    %3690 = vrot.lane.b32.xlu0 %v3689, 80
    %v3691 = vpop.permute.xlu0 %3690
    %v3692 = vrot.slane %v3658, 6
    %v3693 = vrot.slane %v3659, 5
    %v3694 = vsel %vm1632, %v3693, %v3692
    %v3695 = vpack.c.b16 %v3694, %v3694
    %3696 = vrot.lane.b32.xlu0 %v3695, 96
    %v3697 = vpop.permute.xlu0 %3696
    %v3698 = vrot.slane %v3658, 7
    %v3699 = vrot.slane %v3659, 6
    %v3700 = vsel %vm1632, %v3699, %v3698
    %v3701 = vpack.c.b16 %v3700, %v3700
    %3702 = vrot.lane.b32.xlu0 %v3701, 112
    %v3703 = vpop.permute.xlu0 %3702
    %v3704 = vunpack.c.h.b16 %v3621
    %v3705 = vunpack.c.h.b16 %v3622
    %v3706 = vrot.slane %v3705, 7
    %v3707 = vsel %vm1632, %v3706, %v3704
    %v3708 = vpack.c.b16 %v3707, %v3707
    %v3709 = vrot.slane %v3704, 1
    %v3710 = vsel %vm1632, %v3705, %v3709
    %v3711 = vpack.c.b16 %v3710, %v3710
    %3712 = vrot.lane.b32.xlu0 %v3711, 16
    %v3713 = vpop.permute.xlu0 %3712
    %v3714 = vrot.slane %v3704, 2
    %v3715 = vrot.slane %v3705, 1
    %v3716 = vsel %vm1632, %v3715, %v3714
    %v3717 = vpack.c.b16 %v3716, %v3716
    %3718 = vrot.lane.b32.xlu0 %v3717, 32
    %v3719 = vpop.permute.xlu0 %3718
    %v3720 = vrot.slane %v3704, 3
    %v3721 = vrot.slane %v3705, 2
    %v3722 = vsel %vm1632, %v3721, %v3720
    %v3723 = vpack.c.b16 %v3722, %v3722
    %3724 = vrot.lane.b32.xlu0 %v3723, 48
    %v3725 = vpop.permute.xlu0 %3724
    %v3726 = vrot.slane %v3704, 4
    %v3727 = vrot.slane %v3705, 3
    %v3728 = vsel %vm1632, %v3727, %v3726
    %v3729 = vpack.c.b16 %v3728, %v3728
    %3730 = vrot.lane.b32.xlu0 %v3729, 64
    %v3731 = vpop.permute.xlu0 %3730
    %v3732 = vrot.slane %v3704, 5
    %v3733 = vrot.slane %v3705, 4
    %v3734 = vsel %vm1632, %v3733, %v3732
    %v3735 = vpack.c.b16 %v3734, %v3734
    %3736 = vrot.lane.b32.xlu0 %v3735, 80
    %v3737 = vpop.permute.xlu0 %3736
    %v3738 = vrot.slane %v3704, 6
    %v3739 = vrot.slane %v3705, 5
    %v3740 = vsel %vm1632, %v3739, %v3738
    %v3741 = vpack.c.b16 %v3740, %v3740
    %3742 = vrot.lane.b32.xlu0 %v3741, 96
    %v3743 = vpop.permute.xlu0 %3742
    %v3744 = vrot.slane %v3704, 7
    %v3745 = vrot.slane %v3705, 6
    %v3746 = vsel %vm1632, %v3745, %v3744
    %v3747 = vpack.c.b16 %v3746, %v3746
    %3748 = vrot.lane.b32.xlu0 %v3747, 112
    %v3749 = vpop.permute.xlu0 %3748
    %v3752 = vsel %vm3179, %v3662, %v3667
    %v3754 = vsel %vm3213, %v3752, %v3673
    %v3756 = vsel %vm3245, %v3754, %v3679
    %v3758 = vsel %vm3279, %v3756, %v3685
    %v3760 = vsel %vm3313, %v3758, %v3691
    %v3762 = vsel %vm3345, %v3760, %v3697
    %v3764 = vsel %vm3379, %v3762, %v3703
    %v3768 = vsel %vm3179, %v3708, %v3713
    %v3770 = vsel %vm3213, %v3768, %v3719
    %v3772 = vsel %vm3245, %v3770, %v3725
    %v3774 = vsel %vm3279, %v3772, %v3731
    %v3776 = vsel %vm3313, %v3774, %v3737
    %v3778 = vsel %vm3345, %v3776, %v3743
    %v3780 = vsel %vm3379, %v3778, %v3749
    %v3783 = vlaneseq
    %v3784 = vshrl.u32 %v3783, 7
    %v3785 = vsub.s32 0, %v3784
    %v3786 = vrot.slane %v3655, %v3785
    %v3820 = vunpack.c.l.b16 %v3623
    %v3821 = vunpack.c.l.b16 %v3624
    %v3822 = vunpack.c.l.b16 %v3625
    %v3823 = vunpack.c.l.b16 %v3626
    %v3824 = vunpack.c.l.b16 %v3627
    %v3825 = vunpack.c.l.b16 %v3628
    %v3826 = vunpack.c.l.b16 %v3629
    %v3827 = vunpack.c.l.b16 %v3630
    %v3828 = vunpack.c.l.b16 %v3631
    %v3829 = vunpack.c.l.b16 %v3632
    %v3830 = vunpack.c.l.b16 %v3633
    %v3831 = vunpack.c.l.b16 %v3634
    %v3832 = vunpack.c.l.b16 %v3635
    %v3833 = vunpack.c.l.b16 %v3636
    %v3834 = vunpack.c.l.b16 %v3637
    %v3835 = vunpack.c.l.b16 %v3638
    %v3836 = vunpack.c.l.b16 %v3639
    %v3837 = vunpack.c.l.b16 %v3640
    %v3838 = vunpack.c.l.b16 %v3641
    %v3839 = vunpack.c.l.b16 %v3642
    %v3840 = vunpack.c.l.b16 %v3643
    %v3841 = vunpack.c.l.b16 %v3644
    %v3842 = vunpack.c.l.b16 %v3645
    %v3843 = vunpack.c.l.b16 %v3646
    %v3844 = vunpack.c.l.b16 %v3647
    %v3845 = vunpack.c.l.b16 %v3648
    %v3846 = vunpack.c.l.b16 %v3649
    %v3847 = vunpack.c.l.b16 %v3650
    %v3848 = vunpack.c.l.b16 %v3651
    %v3849 = vunpack.c.l.b16 %v3652
    %v3850 = vunpack.c.l.b16 %v3653
    %v3851 = vunpack.c.l.b16 %v3654
    %v3852 = vpack.c.b16 %v3821, %v3820
    %v3853 = vpack.c.b16 %v3823, %v3822
    %v3854 = vpack.c.b16 %v3825, %v3824
    %v3855 = vpack.c.b16 %v3827, %v3826
    %v3856 = vpack.c.b16 %v3829, %v3828
    %v3857 = vpack.c.b16 %v3831, %v3830
    %v3858 = vpack.c.b16 %v3833, %v3832
    %v3859 = vpack.c.b16 %v3835, %v3834
    %v3860 = vpack.c.b16 %v3837, %v3836
    %v3861 = vpack.c.b16 %v3839, %v3838
    %v3862 = vpack.c.b16 %v3841, %v3840
    %v3863 = vpack.c.b16 %v3843, %v3842
    %v3864 = vpack.c.b16 %v3845, %v3844
    %v3865 = vpack.c.b16 %v3847, %v3846
    %v3866 = vpack.c.b16 %v3849, %v3848
    %v3867 = vpack.c.b16 %v3851, %v3850
    %3884 = vmatprep.subr.bf16.mxu0 0
    %3885 = vmatpush1.bf16.msra.mxu0 %v3852
    %3886 = vmatprep.subr.bf16.mxu0 0
    %3887 = vmatpush1.bf16.msra.mxu0 %v3853
    %3888 = vmatprep.subr.bf16.mxu0 0
    %3889 = vmatpush1.bf16.msra.mxu0 %v3854
    %3890 = vmatprep.subr.bf16.mxu0 0
    %3891 = vmatpush1.bf16.msra.mxu0 %v3855
    %3892 = vmatprep.subr.bf16.mxu0 0
    %3893 = vmatpush1.bf16.msra.mxu0 %v3856
    %3894 = vmatprep.subr.bf16.mxu0 0
    %3895 = vmatpush1.bf16.msra.mxu0 %v3857
    %3896 = vmatprep.subr.bf16.mxu0 0
    %3897 = vmatpush1.bf16.msra.mxu0 %v3858
    %3898 = vmatprep.subr.bf16.mxu0 0
    %3899 = vmatpush1.bf16.msra.mxu0 %v3859
    %3900 = vmatprep.subr.bf16.mxu0 0
    %3901 = vmatpush1.bf16.msra.mxu0 %v3860
    %3902 = vmatprep.subr.bf16.mxu0 0
    %3903 = vmatpush1.bf16.msra.mxu0 %v3861
    %3904 = vmatprep.subr.bf16.mxu0 0
    %3905 = vmatpush1.bf16.msra.mxu0 %v3862
    %3906 = vmatprep.subr.bf16.mxu0 0
    %3907 = vmatpush1.bf16.msra.mxu0 %v3863
    %3908 = vmatprep.subr.bf16.mxu0 0
    %3909 = vmatpush1.bf16.msra.mxu0 %v3864
    %3910 = vmatprep.subr.bf16.mxu0 0
    %3911 = vmatpush1.bf16.msra.mxu0 %v3865
    %3912 = vmatprep.subr.bf16.mxu0 0
    %3913 = vmatpush1.bf16.msra.mxu0 %v3866
    %3914 = vmatprep.subr.bf16.mxu0 0
    %3915 = vmatpush1.bf16.msra.mxu0 %v3867
    %3916 = vmatprep.mubr.bf16.mxu0 %v3780
    %3917 = vmatmul.mubr.bf16.gmra.mrb[0].mxu0 %v3764
    %v3918 = vpop.f32.mrb[0].mxu0
    %v3919 = vadd.f32 %v3786, %v3918
    %v3920 = vpop.f32.mrb[0].mxu0
    %v3921 = vpop.f32.mrb[0].mxu0
    %v3922 = vpop.f32.mrb[0].mxu0
    %3923 = vdwg.mxu0
    %3924 = vst [vmem:[#allocation2] sm:$0x3] %v3919
    // Predicated region
    $region38: #{encoder_forward.1} parent=1 // pred_check
      _
    $region39: #{encoder_forward.1} parent=1 // pred_check_branch
      %3926 = sbr.rel (0) target = $region41
    $region40: #{encoder_forward.1} parent=1 // pred_region
      %s3928 = ssub.s32 32, 32
      %3929 = vsyncadd [#allocation3], %s3928
      %s3931 = sshll.u32 [#allocation2], 4
      %s3932 = int_to_ptr.vmem [resolvable:$true] %s3931
      %3934 = dma.vmem_to_hbm [thread:$0]  %s3932, 32, %s9, [#allocation3]
    $region41: #{encoder_forward.1} parent=1 // pred_fallthru
      _
    // Predicated region
    $region42: #{encoder_forward.1} parent=1 // pred_check
      _
    $region43: #{encoder_forward.1} parent=1 // pred_check_branch
      %3936 = sbr.rel (0) target = $region45
    $region44: #{encoder_forward.1} parent=1 // pred_region
      %3937 = dma.done [#allocation3], 32
    $region45: #{encoder_forward.1} parent=1 // pred_fallthru
      _
    %3938 = vsyncpa [#allocation3], 1

</llo_original>
